<compile_context>
chip_gen: v7x
topology: tpu7x:2x2x1
jax: 0.10.0
libtpu: 0.0.40
codegen_flags: <defaults>
</compile_context>

<pallas_src>
import functools

import jax
import jax.numpy as jnp
from jax.experimental import pallas as pl
from jax.experimental.pallas import tpu as pltpu

_LANE = 128
_SUBLANE = 8
# MXU-operand dtype for weights & activation casts; accumulation stays f32 via
# preferred_element_type.  bf16 is beneficial on v5e/v6e/v7x alike.
_MXU_DTYPE = jnp.bfloat16
_SUBLANE_ROWS = 16 if _MXU_DTYPE == jnp.bfloat16 else 8   # one sublane tile of rows

# Pack-time gate handling: PyTorch/source order is [i, f, g, o]; packed order is
# [i | f | o | g] (each gate block Hp lanes wide), and i/f/o columns are
# pre-scaled by 0.5 so sigmoid(x) == 0.5*(1 + tanh(packed_preact)).
_GATE_PERM = (0, 1, 3, 2)          # dest block k <- source gate _GATE_PERM[k]
_GATE_SCALE = (0.5, 0.5, 0.5, 1.0)  # scale for dest blocks [i, f, o, g]


# ------------------------------ fused kernel ---------------------------------
def _fused_lstm_fc_kernel(T, B, hidden_pads, *refs):
    """Inputs : x2 (T*B, Din_p) [VMEM, mm dtype],
                layer 0: w_ih, w_hh [VMEM, mm dtype], b [VMEM, f32],
                layers >=1: w_ih, w_hh [HBM via pl.ANY], b [VMEM, f32],
                fc_w [HBM via pl.ANY], fc_b [VMEM, f32].
       Output : (B, Op) f32 (Op = 128-lane padded output width).
       Scratch: VMEM buffers for each manually prefetched weight + DMA sems."""
    L = len(hidden_pads)
    it = iter(refs)
    x_ref = next(it)
    w_ih_in = [next(it)]            # layer 0: VMEM ref
    w_hh_in = [next(it)]
    b_in = [next(it)]
    for _ in range(1, L):           # layers >= 1: HBM (ANY) weight refs, VMEM bias
        w_ih_in.append(next(it))
        w_hh_in.append(next(it))
        b_in.append(next(it))
    fc_w_hbm = next(it)
    fc_b_ref = next(it)
    out_ref = next(it)
    w_ih_vmem = [None]
    w_hh_vmem = [None]
    for _ in range(1, L):
        w_ih_vmem.append(next(it))
        w_hh_vmem.append(next(it))
    fc_w_vmem = next(it)
    sem = next(it)

    mm_dtype = x_ref.dtype

    # ---- kick off prefetch of layer>=1 weights and the FC weight (overlaps ----
    # ---- with layer-0's serial recurrence; waited right before first use). ----
    copies = {}
    k = 0
    for l in range(1, L):
        copies[("ih", l)] = pltpu.make_async_copy(w_ih_in[l], w_ih_vmem[l], sem.at[k]); k += 1
        copies[("hh", l)] = pltpu.make_async_copy(w_hh_in[l], w_hh_vmem[l], sem.at[k]); k += 1
    copies["fc"] = pltpu.make_async_copy(fc_w_hbm, fc_w_vmem, sem.at[k])
    for cp in copies.values():
        cp.start()

    seq = x_ref[...]                                  # (T*B, Din_p), time-major rows
    h = None
    for l in range(L):
        Hp = hidden_pads[l]
        if l == 0:
            w_ih = w_ih_in[0][...]
            w_hh = w_hh_in[0][...]
        else:
            copies[("ih", l)].wait()
            copies[("hh", l)].wait()
            w_ih = w_ih_vmem[l][...]
            w_hh = w_hh_vmem[l][...]
        b = b_in[l][...]                              # (1, 4*Hp) f32

        # Hoisted input projection for ALL timesteps + bias: one MXU matmul.
        gx = jnp.dot(seq, w_ih, preferred_element_type=jnp.float32) + b

        c = jnp.zeros((B, Hp), jnp.float32)
        hs = []
        # T is small & static: fully unrolled; all slices are static and every
        # gate boundary is a multiple of 128 lanes.
        for t in range(T):
            g = gx[t * B:(t + 1) * B, :]
            if t > 0:                                 # h_{-1} == 0: skip dead matmul
                g = g + jnp.dot(h.astype(mm_dtype), w_hh,
                                preferred_element_type=jnp.float32)
            # Single wide tanh over all gates (i/f/o pre-scaled by 0.5 at pack
            # time): sigmoid(x) = 0.5*(1 + tanh(x/2)).
            tg = jnp.tanh(g)
            i_t = 0.5 + 0.5 * tg[:, 0 * Hp:1 * Hp]
            f_t = 0.5 + 0.5 * tg[:, 1 * Hp:2 * Hp]
            o_t = 0.5 + 0.5 * tg[:, 2 * Hp:3 * Hp]
            g_t = tg[:, 3 * Hp:4 * Hp]
            c = f_t * c + i_t * g_t
            h = o_t * jnp.tanh(c)
            if l < L - 1:
                hs.append(h)                          # keep the sequence in vregs
        if l < L - 1:
            # (T*B, Hp), time-major rows, never leaves registers/VMEM values.
            seq = jnp.concatenate(hs, axis=0).astype(mm_dtype)

    # Final Linear on the last timestep of the last layer (128-lane padded out).
    copies["fc"].wait()
    out = jnp.dot(h.astype(mm_dtype), fc_w_vmem[...],
                  preferred_element_type=jnp.float32) + fc_b_ref[...]
    out_ref[...] = out.astype(out_ref.dtype)


def _full_vmem_spec(shape):
    nd = len(shape)
    return pl.BlockSpec(shape, lambda i, _nd=nd: (0,) * _nd)


@functools.partial(jax.jit, static_argnames=("out_features",))
def lstm_model_forward(x_btd, padded_params, *, out_features):
    """x_btd: (B, T, D) batch-first (PyTorch layout); padded_params from
    prepare_padded_params.  Returns (B, out_features) f32."""
    B, T, D = x_btd.shape
    layer_ps = padded_params["lstm"]
    L = len(layer_ps)
    hidden_pads = tuple(p["w_hh"].shape[0] for p in layer_ps)
    fc_w = padded_params["fc_w"]
    fc_b = padded_params["fc_b"]
    Dp = layer_ps[0]["w_ih"].shape[0]
    Op = fc_w.shape[1]

    # time-major flattened rows: row t*B + b == x[b, t, :]; pad feature dim to Dp.
    x2 = jnp.transpose(x_btd, (1, 0, 2)).reshape(T * B, D)
    if Dp > D:
        x2 = jnp.pad(x2, ((0, 0), (0, Dp - D)))
    x2 = x2.astype(_MXU_DTYPE)

    inputs = [x2]
    in_specs = [_full_vmem_spec(x2.shape)]
    # layer 0 weights: auto-DMA (needed immediately).
    p0 = layer_ps[0]
    inputs += [p0["w_ih"], p0["w_hh"], p0["b"]]
    in_specs += [_full_vmem_spec(p0["w_ih"].shape),
                 _full_vmem_spec(p0["w_hh"].shape),
                 _full_vmem_spec(p0["b"].shape)]
    # layers >= 1: big weights stay in HBM (pl.ANY) and are prefetched manually;
    # tiny biases go through the normal auto-DMA path.
    for p in layer_ps[1:]:
        inputs += [p["w_ih"], p["w_hh"], p["b"]]
        in_specs += [pl.BlockSpec(memory_space=pl.ANY),
                     pl.BlockSpec(memory_space=pl.ANY),
                     _full_vmem_spec(p["b"].shape)]
    inputs += [fc_w, fc_b]
    in_specs += [pl.BlockSpec(memory_space=pl.ANY), _full_vmem_spec(fc_b.shape)]

    scratch = []
    for p in layer_ps[1:]:
        scratch += [pltpu.VMEM(p["w_ih"].shape, p["w_ih"].dtype),
                    pltpu.VMEM(p["w_hh"].shape, p["w_hh"].dtype)]
    scratch += [pltpu.VMEM(fc_w.shape, fc_w.dtype)]
    n_copies = 2 * (L - 1) + 1
    scratch += [pltpu.SemaphoreType.DMA((n_copies,))]

    kernel = functools.partial(_fused_lstm_fc_kernel, T, B, hidden_pads)
    out_padded = pl.pallas_call(
        kernel,
        out_shape=jax.ShapeDtypeStruct((B, Op), jnp.float32),
        grid_spec=pltpu.PrefetchScalarGridSpec(
            num_scalar_prefetch=0,
            grid=(1,),
            in_specs=in_specs,
            out_specs=pl.BlockSpec((B, Op), lambda i: (0, 0)),
            scratch_shapes=scratch,
        ),
        compiler_params=pltpu.CompilerParams(
            dimension_semantics=("arbitrary",)),
    )(*inputs)
    return out_padded[:, :out_features]


# ------------------------- parameter init & padding ---------------------------
def init_params(key, input_size, hidden_sizes, output_size):
    """PyTorch-equivalent params, stored transposed for right-multiplication:
    w_ih (Din, 4H), w_hh (H, 4H), b = b_ih + b_hh (1, 4H); gate order [i,f,g,o]."""
    params = {"lstm": []}
    prev = input_size
    for hs in hidden_sizes:
        key, k1, k2, k3, k4 = jax.random.split(key, 5)
        bound = 1.0 / jnp.sqrt(hs)
        w_ih = jax.random.uniform(k1, (prev, 4 * hs), jnp.float32, -bound, bound)
        w_hh = jax.random.uniform(k2, (hs, 4 * hs), jnp.float32, -bound, bound)
        b_ih = jax.random.uniform(k3, (4 * hs,), jnp.float32, -bound, bound)
        b_hh = jax.random.uniform(k4, (4 * hs,), jnp.float32, -bound, bound)
        params["lstm"].append(
            {"w_ih": w_ih, "w_hh": w_hh, "b": (b_ih + b_hh)[None, :]})
        prev = hs
    key, k1, k2 = jax.random.split(key, 3)
    bound = 1.0 / jnp.sqrt(prev)
    params["fc_w"] = jax.random.uniform(k1, (prev, output_size), jnp.float32,
                                        -bound, bound)
    params["fc_b"] = jax.random.uniform(k2, (1, output_size), jnp.float32,
                                        -bound, bound)
    return params


def _round_up(x, m):
    return (x + m - 1) // m * m


def _pack_gate_cols(w, H, Hp):
    """(R, 4H) in [i,f,g,o] order -> (R, 4Hp) in [i,f,o,g] order; gate block k
    occupies columns [k*Hp, k*Hp+H); i/f/o columns pre-scaled by 0.5; rest 0."""
    R = w.shape[0]
    out = jnp.zeros((R, 4 * Hp), w.dtype)
    for k in range(4):
        src, scale = _GATE_PERM[k], _GATE_SCALE[k]
        out = out.at[:, k * Hp:k * Hp + H].set(scale * w[:, src * H:(src + 1) * H])
    return out


def _pad_rows(w, Rp):
    R = w.shape[0]
    return w if R == Rp else jnp.pad(w, ((0, Rp - R), (0, 0)))


def prepare_padded_params(params):
    """One-time, lane-aligned repacking of the weights (outside the hot path):
    gate blocks padded to 128 lanes, gate order [i|f|o|g] with i/f/o pre-scaled
    by 0.5 (single-tanh gate evaluation), weights cast to _MXU_DTYPE, biases f32,
    FC output padded to 128 lanes."""
    padded = {"lstm": []}
    prev_rows = None
    for idx, p in enumerate(params["lstm"]):
        w_ih, w_hh, b = p["w_ih"], p["w_hh"], p["b"]
        Din, four_h = w_ih.shape
        H = four_h // 4
        Hp = _round_up(H, _LANE)
        rows_in = _round_up(Din, _SUBLANE_ROWS) if idx == 0 else prev_rows
        padded["lstm"].append({
            "w_ih": _pad_rows(_pack_gate_cols(w_ih, H, Hp), rows_in).astype(_MXU_DTYPE),
            "w_hh": _pad_rows(_pack_gate_cols(w_hh, H, Hp), Hp).astype(_MXU_DTYPE),
            "b": _pack_gate_cols(b, H, Hp),                    # stays f32
        })
        prev_rows = Hp
    H_last, O = params["fc_w"].shape
    Op = _round_up(O, _LANE)
    fc_w = jnp.zeros((prev_rows, Op), jnp.float32).at[:H_last, :O].set(params["fc_w"])
    fc_b = jnp.zeros((1, Op), jnp.float32).at[:, :O].set(params["fc_b"])
    padded["fc_w"] = fc_w.astype(_MXU_DTYPE)
    padded["fc_b"] = fc_b
    return padded


# --------------------------- pure-JAX reference -------------------------------
def lstm_reference(x_btd, params):
    x = x_btd
    for p in params["lstm"]:
        w_ih, w_hh, b = p["w_ih"], p["w_hh"], p["b"]
        H = w_hh.shape[0]
        B = x.shape[0]

        def step(carry, x_t, w_ih=w_ih, w_hh=w_hh, b=b, H=H):
            h, c = carry
            g = (jnp.dot(x_t, w_ih, precision="highest")
                 + jnp.dot(h, w_hh, precision="highest") + b)
            i = jax.nn.sigmoid(g[:, 0 * H:1 * H])
            f = jax.nn.sigmoid(g[:, 1 * H:2 * H])
            gg = jnp.tanh(g[:, 2 * H:3 * H])
            o = jax.nn.sigmoid(g[:, 3 * H:4 * H])
            c = f * c + i * gg
            h = o * jnp.tanh(c)
            return (h, c), h

        init = (jnp.zeros((B, H), jnp.float32), jnp.zeros((B, H), jnp.float32))
        _, ys = jax.lax.scan(step, init, jnp.transpose(x, (1, 0, 2)))
        x = jnp.transpose(ys, (1, 0, 2))
    return (jnp.dot(x[:, -1, :], params["fc_w"], precision="highest")
            + params["fc_b"])


# ------------------------------------ main ------------------------------------
if __name__ == "__main__":
    key = jax.random.PRNGKey(0)
    k_param, k_input = jax.random.split(key)

    batch, seq_len, input_size = 2, 8, 4
    hidden_sizes, output_size = [16, 8], 1

    params = init_params(k_param, input_size, hidden_sizes, output_size)
    padded = prepare_padded_params(params)
    x = jax.random.normal(k_input, (batch, seq_len, input_size), jnp.float32)

    out = lstm_model_forward(x, padded, out_features=output_size)
    jax.block_until_ready(out)
    assert out.shape == (batch, output_size)

    ref = lstm_reference(x, params)
    # bf16 MXU operands (weights + per-step h casts) compound small rounding
    # error over the T*L recurrence -> looser tolerance than a pure-f32 kernel.
    # Structural bugs (gate order / scaling / recurrence) produce O(0.1+) errors.
    assert jnp.allclose(out, ref, atol=2e-2, rtol=2e-2), (out, ref)

    print("KERNEL_OK")
</pallas_src>

<mosaic_0001>
module attributes {stable_mosaic.version = 11 : i64} {
  func.func @_fused_lstm_fc_kernel(%arg0: i32, %arg1: memref<16x16xbf16, #tpu.memory_space<vmem>>, %arg2: memref<16x512xbf16, #tpu.memory_space<vmem>>, %arg3: memref<128x512xbf16, #tpu.memory_space<vmem>>, %arg4: memref<1x512xf32, #tpu.memory_space<vmem>>, %arg5: memref<128x512xbf16, #tpu.memory_space<any>>, %arg6: memref<128x512xbf16, #tpu.memory_space<any>>, %arg7: memref<1x512xf32, #tpu.memory_space<vmem>>, %arg8: memref<128x128xbf16, #tpu.memory_space<any>>, %arg9: memref<1x128xf32, #tpu.memory_space<vmem>>, %arg10: memref<2x128xf32, #tpu.memory_space<vmem>>, %arg11: memref<128x512xbf16, #tpu.memory_space<vmem>>, %arg12: memref<128x512xbf16, #tpu.memory_space<vmem>>, %arg13: memref<128x128xbf16, #tpu.memory_space<vmem>>, %arg14: memref<3x!tpu.dma_semaphore, #tpu.memory_space<semaphore_mem>>) attributes {dimension_semantics = [#tpu.dimension_semantics<arbitrary>], iteration_bounds = array<i64: 1>, scalar_prefetch = 0 : i64, scratch_operands = 4 : i64, tpu.core_type = #tpu.core_type<tc>, window_params = [{pipeline_mode = #tpu.pipeline_mode<synchronous>, transform_indices = @transform_0, window_bounds = array<i64: 16, 16>}, {pipeline_mode = #tpu.pipeline_mode<synchronous>, transform_indices = @transform_1, window_bounds = array<i64: 16, 512>}, {pipeline_mode = #tpu.pipeline_mode<synchronous>, transform_indices = @transform_2, window_bounds = array<i64: 128, 512>}, {pipeline_mode = #tpu.pipeline_mode<synchronous>, transform_indices = @transform_3, window_bounds = array<i64: 1, 512>}, {}, {}, {pipeline_mode = #tpu.pipeline_mode<synchronous>, transform_indices = @transform_6, window_bounds = array<i64: 1, 512>}, {}, {pipeline_mode = #tpu.pipeline_mode<synchronous>, transform_indices = @transform_8, window_bounds = array<i64: 1, 128>}, {pipeline_mode = #tpu.pipeline_mode<synchronous>, transform_indices = @transform_9, window_bounds = array<i64: 2, 128>}]} {
    %c0_i32 = arith.constant 0 : i32
    %0 = tpu.memref_slice %arg14[%c0_i32] : memref<3x!tpu.dma_semaphore, #tpu.memory_space<semaphore_mem>> -> memref<1x!tpu.dma_semaphore, #tpu.memory_space<semaphore_mem>>
    %1 = tpu.memref_squeeze %0 : memref<1x!tpu.dma_semaphore, #tpu.memory_space<semaphore_mem>> -> memref<!tpu.dma_semaphore, #tpu.memory_space<semaphore_mem>>
    tpu.enqueue_dma source(%arg5 : memref<128x512xbf16, #tpu.memory_space<any>>) target(%arg11 : memref<128x512xbf16, #tpu.memory_space<vmem>>) target_semaphore(%1 : memref<!tpu.dma_semaphore, #tpu.memory_space<semaphore_mem>>)
    %c1_i32 = arith.constant 1 : i32
    %2 = tpu.memref_slice %arg14[%c1_i32] : memref<3x!tpu.dma_semaphore, #tpu.memory_space<semaphore_mem>> -> memref<1x!tpu.dma_semaphore, #tpu.memory_space<semaphore_mem>>
    %3 = tpu.memref_squeeze %2 : memref<1x!tpu.dma_semaphore, #tpu.memory_space<semaphore_mem>> -> memref<!tpu.dma_semaphore, #tpu.memory_space<semaphore_mem>>
    tpu.enqueue_dma source(%arg6 : memref<128x512xbf16, #tpu.memory_space<any>>) target(%arg12 : memref<128x512xbf16, #tpu.memory_space<vmem>>) target_semaphore(%3 : memref<!tpu.dma_semaphore, #tpu.memory_space<semaphore_mem>>)
    %c2_i32 = arith.constant 2 : i32
    %4 = tpu.memref_slice %arg14[%c2_i32] : memref<3x!tpu.dma_semaphore, #tpu.memory_space<semaphore_mem>> -> memref<1x!tpu.dma_semaphore, #tpu.memory_space<semaphore_mem>>
    %5 = tpu.memref_squeeze %4 : memref<1x!tpu.dma_semaphore, #tpu.memory_space<semaphore_mem>> -> memref<!tpu.dma_semaphore, #tpu.memory_space<semaphore_mem>>
    tpu.enqueue_dma source(%arg8 : memref<128x128xbf16, #tpu.memory_space<any>>) target(%arg13 : memref<128x128xbf16, #tpu.memory_space<vmem>>) target_semaphore(%5 : memref<!tpu.dma_semaphore, #tpu.memory_space<semaphore_mem>>)
    %c0 = arith.constant 0 : index
    %c0_0 = arith.constant 0 : index
    %6 = vector.load %arg1[%c0, %c0_0] : memref<16x16xbf16, #tpu.memory_space<vmem>>, vector<16x16xbf16>
    %c0_1 = arith.constant 0 : index
    %c0_2 = arith.constant 0 : index
    %7 = vector.load %arg2[%c0_1, %c0_2] : memref<16x512xbf16, #tpu.memory_space<vmem>>, vector<16x512xbf16>
    %c0_3 = arith.constant 0 : index
    %c0_4 = arith.constant 0 : index
    %8 = vector.load %arg3[%c0_3, %c0_4] : memref<128x512xbf16, #tpu.memory_space<vmem>>, vector<128x512xbf16>
    %c0_5 = arith.constant 0 : index
    %c0_6 = arith.constant 0 : index
    %9 = vector.load %arg4[%c0_5, %c0_6] : memref<1x512xf32, #tpu.memory_space<vmem>>, vector<1x512xf32>
    %cst = arith.constant dense<0.000000e+00> : vector<16x512xf32>
    %10 = tpu.matmul %6, %7, %cst {dimension_numbers = #tpu.dot_dimension_numbers<[1], [0], [0], [1], [0, 0, 1, 1], [], []>} : vector<16x16xbf16>, vector<16x512xbf16>, vector<16x512xf32> -> vector<16x512xf32>
    %11 = vector.broadcast %9 : vector<1x512xf32> to vector<16x512xf32>
    %12 = arith.addf %10, %11 : vector<16x512xf32>
    %cst_7 = arith.constant 0.000000e+00 : f32
    %13 = vector.broadcast %cst_7 : f32 to vector<2x128xf32>
    %14 = vector.extract_strided_slice %12 {offsets = [0, 0], sizes = [2, 512], strides = [1, 1]} : vector<16x512xf32> to vector<2x512xf32>
    %15 = math.tanh %14 : vector<2x512xf32>
    %16 = vector.extract_strided_slice %15 {offsets = [0, 0], sizes = [2, 128], strides = [1, 1]} : vector<2x512xf32> to vector<2x128xf32>
    %cst_8 = arith.constant 5.000000e-01 : f32
    %17 = vector.broadcast %cst_8 : f32 to vector<2x128xf32>
    %18 = arith.mulf %17, %16 : vector<2x128xf32>
    %cst_9 = arith.constant 5.000000e-01 : f32
    %19 = vector.broadcast %cst_9 : f32 to vector<2x128xf32>
    %20 = arith.addf %19, %18 : vector<2x128xf32>
    %21 = vector.extract_strided_slice %15 {offsets = [0, 128], sizes = [2, 128], strides = [1, 1]} : vector<2x512xf32> to vector<2x128xf32>
    %cst_10 = arith.constant 5.000000e-01 : f32
    %22 = vector.broadcast %cst_10 : f32 to vector<2x128xf32>
    %23 = arith.mulf %22, %21 : vector<2x128xf32>
    %cst_11 = arith.constant 5.000000e-01 : f32
    %24 = vector.broadcast %cst_11 : f32 to vector<2x128xf32>
    %25 = arith.addf %24, %23 : vector<2x128xf32>
    %26 = vector.extract_strided_slice %15 {offsets = [0, 256], sizes = [2, 128], strides = [1, 1]} : vector<2x512xf32> to vector<2x128xf32>
    %cst_12 = arith.constant 5.000000e-01 : f32
    %27 = vector.broadcast %cst_12 : f32 to vector<2x128xf32>
    %28 = arith.mulf %27, %26 : vector<2x128xf32>
    %cst_13 = arith.constant 5.000000e-01 : f32
    %29 = vector.broadcast %cst_13 : f32 to vector<2x128xf32>
    %30 = arith.addf %29, %28 : vector<2x128xf32>
    %31 = vector.extract_strided_slice %15 {offsets = [0, 384], sizes = [2, 128], strides = [1, 1]} : vector<2x512xf32> to vector<2x128xf32>
    %32 = arith.mulf %25, %13 : vector<2x128xf32>
    %33 = arith.mulf %20, %31 : vector<2x128xf32>
    %34 = arith.addf %32, %33 : vector<2x128xf32>
    %35 = math.tanh %34 : vector<2x128xf32>
    %36 = arith.mulf %30, %35 : vector<2x128xf32>
    %37 = vector.extract_strided_slice %12 {offsets = [2, 0], sizes = [2, 512], strides = [1, 1]} : vector<16x512xf32> to vector<2x512xf32>
    %38 = arith.truncf %36 : vector<2x128xf32> to vector<2x128xbf16>
    %cst_14 = arith.constant dense<0.000000e+00> : vector<2x512xf32>
    %39 = tpu.matmul %38, %8, %cst_14 {dimension_numbers = #tpu.dot_dimension_numbers<[1], [0], [0], [1], [0, 0, 1, 1], [], []>} : vector<2x128xbf16>, vector<128x512xbf16>, vector<2x512xf32> -> vector<2x512xf32>
    %40 = arith.addf %37, %39 : vector<2x512xf32>
    %41 = math.tanh %40 : vector<2x512xf32>
    %42 = vector.extract_strided_slice %41 {offsets = [0, 0], sizes = [2, 128], strides = [1, 1]} : vector<2x512xf32> to vector<2x128xf32>
    %cst_15 = arith.constant 5.000000e-01 : f32
    %43 = vector.broadcast %cst_15 : f32 to vector<2x128xf32>
    %44 = arith.mulf %43, %42 : vector<2x128xf32>
    %cst_16 = arith.constant 5.000000e-01 : f32
    %45 = vector.broadcast %cst_16 : f32 to vector<2x128xf32>
    %46 = arith.addf %45, %44 : vector<2x128xf32>
    %47 = vector.extract_strided_slice %41 {offsets = [0, 128], sizes = [2, 128], strides = [1, 1]} : vector<2x512xf32> to vector<2x128xf32>
    %cst_17 = arith.constant 5.000000e-01 : f32
    %48 = vector.broadcast %cst_17 : f32 to vector<2x128xf32>
    %49 = arith.mulf %48, %47 : vector<2x128xf32>
    %cst_18 = arith.constant 5.000000e-01 : f32
    %50 = vector.broadcast %cst_18 : f32 to vector<2x128xf32>
    %51 = arith.addf %50, %49 : vector<2x128xf32>
    %52 = vector.extract_strided_slice %41 {offsets = [0, 256], sizes = [2, 128], strides = [1, 1]} : vector<2x512xf32> to vector<2x128xf32>
    %cst_19 = arith.constant 5.000000e-01 : f32
    %53 = vector.broadcast %cst_19 : f32 to vector<2x128xf32>
    %54 = arith.mulf %53, %52 : vector<2x128xf32>
    %cst_20 = arith.constant 5.000000e-01 : f32
    %55 = vector.broadcast %cst_20 : f32 to vector<2x128xf32>
    %56 = arith.addf %55, %54 : vector<2x128xf32>
    %57 = vector.extract_strided_slice %41 {offsets = [0, 384], sizes = [2, 128], strides = [1, 1]} : vector<2x512xf32> to vector<2x128xf32>
    %58 = arith.mulf %51, %34 : vector<2x128xf32>
    %59 = arith.mulf %46, %57 : vector<2x128xf32>
    %60 = arith.addf %58, %59 : vector<2x128xf32>
    %61 = math.tanh %60 : vector<2x128xf32>
    %62 = arith.mulf %56, %61 : vector<2x128xf32>
    %63 = vector.extract_strided_slice %12 {offsets = [4, 0], sizes = [2, 512], strides = [1, 1]} : vector<16x512xf32> to vector<2x512xf32>
    %64 = arith.truncf %62 : vector<2x128xf32> to vector<2x128xbf16>
    %cst_21 = arith.constant dense<0.000000e+00> : vector<2x512xf32>
    %65 = tpu.matmul %64, %8, %cst_21 {dimension_numbers = #tpu.dot_dimension_numbers<[1], [0], [0], [1], [0, 0, 1, 1], [], []>} : vector<2x128xbf16>, vector<128x512xbf16>, vector<2x512xf32> -> vector<2x512xf32>
    %66 = arith.addf %63, %65 : vector<2x512xf32>
    %67 = math.tanh %66 : vector<2x512xf32>
    %68 = vector.extract_strided_slice %67 {offsets = [0, 0], sizes = [2, 128], strides = [1, 1]} : vector<2x512xf32> to vector<2x128xf32>
    %cst_22 = arith.constant 5.000000e-01 : f32
    %69 = vector.broadcast %cst_22 : f32 to vector<2x128xf32>
    %70 = arith.mulf %69, %68 : vector<2x128xf32>
    %cst_23 = arith.constant 5.000000e-01 : f32
    %71 = vector.broadcast %cst_23 : f32 to vector<2x128xf32>
    %72 = arith.addf %71, %70 : vector<2x128xf32>
    %73 = vector.extract_strided_slice %67 {offsets = [0, 128], sizes = [2, 128], strides = [1, 1]} : vector<2x512xf32> to vector<2x128xf32>
    %cst_24 = arith.constant 5.000000e-01 : f32
    %74 = vector.broadcast %cst_24 : f32 to vector<2x128xf32>
    %75 = arith.mulf %74, %73 : vector<2x128xf32>
    %cst_25 = arith.constant 5.000000e-01 : f32
    %76 = vector.broadcast %cst_25 : f32 to vector<2x128xf32>
    %77 = arith.addf %76, %75 : vector<2x128xf32>
    %78 = vector.extract_strided_slice %67 {offsets = [0, 256], sizes = [2, 128], strides = [1, 1]} : vector<2x512xf32> to vector<2x128xf32>
    %cst_26 = arith.constant 5.000000e-01 : f32
    %79 = vector.broadcast %cst_26 : f32 to vector<2x128xf32>
    %80 = arith.mulf %79, %78 : vector<2x128xf32>
    %cst_27 = arith.constant 5.000000e-01 : f32
    %81 = vector.broadcast %cst_27 : f32 to vector<2x128xf32>
    %82 = arith.addf %81, %80 : vector<2x128xf32>
    %83 = vector.extract_strided_slice %67 {offsets = [0, 384], sizes = [2, 128], strides = [1, 1]} : vector<2x512xf32> to vector<2x128xf32>
    %84 = arith.mulf %77, %60 : vector<2x128xf32>
    %85 = arith.mulf %72, %83 : vector<2x128xf32>
    %86 = arith.addf %84, %85 : vector<2x128xf32>
    %87 = math.tanh %86 : vector<2x128xf32>
    %88 = arith.mulf %82, %87 : vector<2x128xf32>
    %89 = vector.extract_strided_slice %12 {offsets = [6, 0], sizes = [2, 512], strides = [1, 1]} : vector<16x512xf32> to vector<2x512xf32>
    %90 = arith.truncf %88 : vector<2x128xf32> to vector<2x128xbf16>
    %cst_28 = arith.constant dense<0.000000e+00> : vector<2x512xf32>
    %91 = tpu.matmul %90, %8, %cst_28 {dimension_numbers = #tpu.dot_dimension_numbers<[1], [0], [0], [1], [0, 0, 1, 1], [], []>} : vector<2x128xbf16>, vector<128x512xbf16>, vector<2x512xf32> -> vector<2x512xf32>
    %92 = arith.addf %89, %91 : vector<2x512xf32>
    %93 = math.tanh %92 : vector<2x512xf32>
    %94 = vector.extract_strided_slice %93 {offsets = [0, 0], sizes = [2, 128], strides = [1, 1]} : vector<2x512xf32> to vector<2x128xf32>
    %cst_29 = arith.constant 5.000000e-01 : f32
    %95 = vector.broadcast %cst_29 : f32 to vector<2x128xf32>
    %96 = arith.mulf %95, %94 : vector<2x128xf32>
    %cst_30 = arith.constant 5.000000e-01 : f32
    %97 = vector.broadcast %cst_30 : f32 to vector<2x128xf32>
    %98 = arith.addf %97, %96 : vector<2x128xf32>
    %99 = vector.extract_strided_slice %93 {offsets = [0, 128], sizes = [2, 128], strides = [1, 1]} : vector<2x512xf32> to vector<2x128xf32>
    %cst_31 = arith.constant 5.000000e-01 : f32
    %100 = vector.broadcast %cst_31 : f32 to vector<2x128xf32>
    %101 = arith.mulf %100, %99 : vector<2x128xf32>
    %cst_32 = arith.constant 5.000000e-01 : f32
    %102 = vector.broadcast %cst_32 : f32 to vector<2x128xf32>
    %103 = arith.addf %102, %101 : vector<2x128xf32>
    %104 = vector.extract_strided_slice %93 {offsets = [0, 256], sizes = [2, 128], strides = [1, 1]} : vector<2x512xf32> to vector<2x128xf32>
    %cst_33 = arith.constant 5.000000e-01 : f32
    %105 = vector.broadcast %cst_33 : f32 to vector<2x128xf32>
    %106 = arith.mulf %105, %104 : vector<2x128xf32>
    %cst_34 = arith.constant 5.000000e-01 : f32
    %107 = vector.broadcast %cst_34 : f32 to vector<2x128xf32>
    %108 = arith.addf %107, %106 : vector<2x128xf32>
    %109 = vector.extract_strided_slice %93 {offsets = [0, 384], sizes = [2, 128], strides = [1, 1]} : vector<2x512xf32> to vector<2x128xf32>
    %110 = arith.mulf %103, %86 : vector<2x128xf32>
    %111 = arith.mulf %98, %109 : vector<2x128xf32>
    %112 = arith.addf %110, %111 : vector<2x128xf32>
    %113 = math.tanh %112 : vector<2x128xf32>
    %114 = arith.mulf %108, %113 : vector<2x128xf32>
    %115 = vector.extract_strided_slice %12 {offsets = [8, 0], sizes = [2, 512], strides = [1, 1]} : vector<16x512xf32> to vector<2x512xf32>
    %116 = arith.truncf %114 : vector<2x128xf32> to vector<2x128xbf16>
    %cst_35 = arith.constant dense<0.000000e+00> : vector<2x512xf32>
    %117 = tpu.matmul %116, %8, %cst_35 {dimension_numbers = #tpu.dot_dimension_numbers<[1], [0], [0], [1], [0, 0, 1, 1], [], []>} : vector<2x128xbf16>, vector<128x512xbf16>, vector<2x512xf32> -> vector<2x512xf32>
    %118 = arith.addf %115, %117 : vector<2x512xf32>
    %119 = math.tanh %118 : vector<2x512xf32>
    %120 = vector.extract_strided_slice %119 {offsets = [0, 0], sizes = [2, 128], strides = [1, 1]} : vector<2x512xf32> to vector<2x128xf32>
    %cst_36 = arith.constant 5.000000e-01 : f32
    %121 = vector.broadcast %cst_36 : f32 to vector<2x128xf32>
    %122 = arith.mulf %121, %120 : vector<2x128xf32>
    %cst_37 = arith.constant 5.000000e-01 : f32
    %123 = vector.broadcast %cst_37 : f32 to vector<2x128xf32>
    %124 = arith.addf %123, %122 : vector<2x128xf32>
    %125 = vector.extract_strided_slice %119 {offsets = [0, 128], sizes = [2, 128], strides = [1, 1]} : vector<2x512xf32> to vector<2x128xf32>
    %cst_38 = arith.constant 5.000000e-01 : f32
    %126 = vector.broadcast %cst_38 : f32 to vector<2x128xf32>
    %127 = arith.mulf %126, %125 : vector<2x128xf32>
    %cst_39 = arith.constant 5.000000e-01 : f32
    %128 = vector.broadcast %cst_39 : f32 to vector<2x128xf32>
    %129 = arith.addf %128, %127 : vector<2x128xf32>
    %130 = vector.extract_strided_slice %119 {offsets = [0, 256], sizes = [2, 128], strides = [1, 1]} : vector<2x512xf32> to vector<2x128xf32>
    %cst_40 = arith.constant 5.000000e-01 : f32
    %131 = vector.broadcast %cst_40 : f32 to vector<2x128xf32>
    %132 = arith.mulf %131, %130 : vector<2x128xf32>
    %cst_41 = arith.constant 5.000000e-01 : f32
    %133 = vector.broadcast %cst_41 : f32 to vector<2x128xf32>
    %134 = arith.addf %133, %132 : vector<2x128xf32>
    %135 = vector.extract_strided_slice %119 {offsets = [0, 384], sizes = [2, 128], strides = [1, 1]} : vector<2x512xf32> to vector<2x128xf32>
    %136 = arith.mulf %129, %112 : vector<2x128xf32>
    %137 = arith.mulf %124, %135 : vector<2x128xf32>
    %138 = arith.addf %136, %137 : vector<2x128xf32>
    %139 = math.tanh %138 : vector<2x128xf32>
    %140 = arith.mulf %134, %139 : vector<2x128xf32>
    %141 = vector.extract_strided_slice %12 {offsets = [10, 0], sizes = [2, 512], strides = [1, 1]} : vector<16x512xf32> to vector<2x512xf32>
    %142 = arith.truncf %140 : vector<2x128xf32> to vector<2x128xbf16>
    %cst_42 = arith.constant dense<0.000000e+00> : vector<2x512xf32>
    %143 = tpu.matmul %142, %8, %cst_42 {dimension_numbers = #tpu.dot_dimension_numbers<[1], [0], [0], [1], [0, 0, 1, 1], [], []>} : vector<2x128xbf16>, vector<128x512xbf16>, vector<2x512xf32> -> vector<2x512xf32>
    %144 = arith.addf %141, %143 : vector<2x512xf32>
    %145 = math.tanh %144 : vector<2x512xf32>
    %146 = vector.extract_strided_slice %145 {offsets = [0, 0], sizes = [2, 128], strides = [1, 1]} : vector<2x512xf32> to vector<2x128xf32>
    %cst_43 = arith.constant 5.000000e-01 : f32
    %147 = vector.broadcast %cst_43 : f32 to vector<2x128xf32>
    %148 = arith.mulf %147, %146 : vector<2x128xf32>
    %cst_44 = arith.constant 5.000000e-01 : f32
    %149 = vector.broadcast %cst_44 : f32 to vector<2x128xf32>
    %150 = arith.addf %149, %148 : vector<2x128xf32>
    %151 = vector.extract_strided_slice %145 {offsets = [0, 128], sizes = [2, 128], strides = [1, 1]} : vector<2x512xf32> to vector<2x128xf32>
    %cst_45 = arith.constant 5.000000e-01 : f32
    %152 = vector.broadcast %cst_45 : f32 to vector<2x128xf32>
    %153 = arith.mulf %152, %151 : vector<2x128xf32>
    %cst_46 = arith.constant 5.000000e-01 : f32
    %154 = vector.broadcast %cst_46 : f32 to vector<2x128xf32>
    %155 = arith.addf %154, %153 : vector<2x128xf32>
    %156 = vector.extract_strided_slice %145 {offsets = [0, 256], sizes = [2, 128], strides = [1, 1]} : vector<2x512xf32> to vector<2x128xf32>
    %cst_47 = arith.constant 5.000000e-01 : f32
    %157 = vector.broadcast %cst_47 : f32 to vector<2x128xf32>
    %158 = arith.mulf %157, %156 : vector<2x128xf32>
    %cst_48 = arith.constant 5.000000e-01 : f32
    %159 = vector.broadcast %cst_48 : f32 to vector<2x128xf32>
    %160 = arith.addf %159, %158 : vector<2x128xf32>
    %161 = vector.extract_strided_slice %145 {offsets = [0, 384], sizes = [2, 128], strides = [1, 1]} : vector<2x512xf32> to vector<2x128xf32>
    %162 = arith.mulf %155, %138 : vector<2x128xf32>
    %163 = arith.mulf %150, %161 : vector<2x128xf32>
    %164 = arith.addf %162, %163 : vector<2x128xf32>
    %165 = math.tanh %164 : vector<2x128xf32>
    %166 = arith.mulf %160, %165 : vector<2x128xf32>
    %167 = vector.extract_strided_slice %12 {offsets = [12, 0], sizes = [2, 512], strides = [1, 1]} : vector<16x512xf32> to vector<2x512xf32>
    %168 = arith.truncf %166 : vector<2x128xf32> to vector<2x128xbf16>
    %cst_49 = arith.constant dense<0.000000e+00> : vector<2x512xf32>
    %169 = tpu.matmul %168, %8, %cst_49 {dimension_numbers = #tpu.dot_dimension_numbers<[1], [0], [0], [1], [0, 0, 1, 1], [], []>} : vector<2x128xbf16>, vector<128x512xbf16>, vector<2x512xf32> -> vector<2x512xf32>
    %170 = arith.addf %167, %169 : vector<2x512xf32>
    %171 = math.tanh %170 : vector<2x512xf32>
    %172 = vector.extract_strided_slice %171 {offsets = [0, 0], sizes = [2, 128], strides = [1, 1]} : vector<2x512xf32> to vector<2x128xf32>
    %cst_50 = arith.constant 5.000000e-01 : f32
    %173 = vector.broadcast %cst_50 : f32 to vector<2x128xf32>
    %174 = arith.mulf %173, %172 : vector<2x128xf32>
    %cst_51 = arith.constant 5.000000e-01 : f32
    %175 = vector.broadcast %cst_51 : f32 to vector<2x128xf32>
    %176 = arith.addf %175, %174 : vector<2x128xf32>
    %177 = vector.extract_strided_slice %171 {offsets = [0, 128], sizes = [2, 128], strides = [1, 1]} : vector<2x512xf32> to vector<2x128xf32>
    %cst_52 = arith.constant 5.000000e-01 : f32
    %178 = vector.broadcast %cst_52 : f32 to vector<2x128xf32>
    %179 = arith.mulf %178, %177 : vector<2x128xf32>
    %cst_53 = arith.constant 5.000000e-01 : f32
    %180 = vector.broadcast %cst_53 : f32 to vector<2x128xf32>
    %181 = arith.addf %180, %179 : vector<2x128xf32>
    %182 = vector.extract_strided_slice %171 {offsets = [0, 256], sizes = [2, 128], strides = [1, 1]} : vector<2x512xf32> to vector<2x128xf32>
    %cst_54 = arith.constant 5.000000e-01 : f32
    %183 = vector.broadcast %cst_54 : f32 to vector<2x128xf32>
    %184 = arith.mulf %183, %182 : vector<2x128xf32>
    %cst_55 = arith.constant 5.000000e-01 : f32
    %185 = vector.broadcast %cst_55 : f32 to vector<2x128xf32>
    %186 = arith.addf %185, %184 : vector<2x128xf32>
    %187 = vector.extract_strided_slice %171 {offsets = [0, 384], sizes = [2, 128], strides = [1, 1]} : vector<2x512xf32> to vector<2x128xf32>
    %188 = arith.mulf %181, %164 : vector<2x128xf32>
    %189 = arith.mulf %176, %187 : vector<2x128xf32>
    %190 = arith.addf %188, %189 : vector<2x128xf32>
    %191 = math.tanh %190 : vector<2x128xf32>
    %192 = arith.mulf %186, %191 : vector<2x128xf32>
    %193 = vector.extract_strided_slice %12 {offsets = [14, 0], sizes = [2, 512], strides = [1, 1]} : vector<16x512xf32> to vector<2x512xf32>
    %194 = arith.truncf %192 : vector<2x128xf32> to vector<2x128xbf16>
    %cst_56 = arith.constant dense<0.000000e+00> : vector<2x512xf32>
    %195 = tpu.matmul %194, %8, %cst_56 {dimension_numbers = #tpu.dot_dimension_numbers<[1], [0], [0], [1], [0, 0, 1, 1], [], []>} : vector<2x128xbf16>, vector<128x512xbf16>, vector<2x512xf32> -> vector<2x512xf32>
    %196 = arith.addf %193, %195 : vector<2x512xf32>
    %197 = math.tanh %196 : vector<2x512xf32>
    %198 = vector.extract_strided_slice %197 {offsets = [0, 0], sizes = [2, 128], strides = [1, 1]} : vector<2x512xf32> to vector<2x128xf32>
    %cst_57 = arith.constant 5.000000e-01 : f32
    %199 = vector.broadcast %cst_57 : f32 to vector<2x128xf32>
    %200 = arith.mulf %199, %198 : vector<2x128xf32>
    %cst_58 = arith.constant 5.000000e-01 : f32
    %201 = vector.broadcast %cst_58 : f32 to vector<2x128xf32>
    %202 = arith.addf %201, %200 : vector<2x128xf32>
    %203 = vector.extract_strided_slice %197 {offsets = [0, 128], sizes = [2, 128], strides = [1, 1]} : vector<2x512xf32> to vector<2x128xf32>
    %cst_59 = arith.constant 5.000000e-01 : f32
    %204 = vector.broadcast %cst_59 : f32 to vector<2x128xf32>
    %205 = arith.mulf %204, %203 : vector<2x128xf32>
    %cst_60 = arith.constant 5.000000e-01 : f32
    %206 = vector.broadcast %cst_60 : f32 to vector<2x128xf32>
    %207 = arith.addf %206, %205 : vector<2x128xf32>
    %208 = vector.extract_strided_slice %197 {offsets = [0, 256], sizes = [2, 128], strides = [1, 1]} : vector<2x512xf32> to vector<2x128xf32>
    %cst_61 = arith.constant 5.000000e-01 : f32
    %209 = vector.broadcast %cst_61 : f32 to vector<2x128xf32>
    %210 = arith.mulf %209, %208 : vector<2x128xf32>
    %cst_62 = arith.constant 5.000000e-01 : f32
    %211 = vector.broadcast %cst_62 : f32 to vector<2x128xf32>
    %212 = arith.addf %211, %210 : vector<2x128xf32>
    %213 = vector.extract_strided_slice %197 {offsets = [0, 384], sizes = [2, 128], strides = [1, 1]} : vector<2x512xf32> to vector<2x128xf32>
    %214 = arith.mulf %207, %190 : vector<2x128xf32>
    %215 = arith.mulf %202, %213 : vector<2x128xf32>
    %216 = arith.addf %214, %215 : vector<2x128xf32>
    %217 = math.tanh %216 : vector<2x128xf32>
    %218 = arith.mulf %212, %217 : vector<2x128xf32>
    %219 = tpu.concatenate %36, %62, %88, %114, %140, %166, %192, %218 in 0 : vector<2x128xf32>, vector<2x128xf32>, vector<2x128xf32>, vector<2x128xf32>, vector<2x128xf32>, vector<2x128xf32>, vector<2x128xf32>, vector<2x128xf32> -> vector<16x128xf32>
    %220 = arith.truncf %219 : vector<16x128xf32> to vector<16x128xbf16>
    %c0_i32_63 = arith.constant 0 : i32
    %221 = tpu.memref_slice %arg14[%c0_i32_63] : memref<3x!tpu.dma_semaphore, #tpu.memory_space<semaphore_mem>> -> memref<1x!tpu.dma_semaphore, #tpu.memory_space<semaphore_mem>>
    %222 = tpu.memref_squeeze %221 : memref<1x!tpu.dma_semaphore, #tpu.memory_space<semaphore_mem>> -> memref<!tpu.dma_semaphore, #tpu.memory_space<semaphore_mem>>
    tpu.wait_dma2 semaphore(%222 : memref<!tpu.dma_semaphore, #tpu.memory_space<semaphore_mem>>) src(%arg5 : memref<128x512xbf16, #tpu.memory_space<any>>) dst(%arg11 : memref<128x512xbf16, #tpu.memory_space<vmem>>)
    %c1_i32_64 = arith.constant 1 : i32
    %223 = tpu.memref_slice %arg14[%c1_i32_64] : memref<3x!tpu.dma_semaphore, #tpu.memory_space<semaphore_mem>> -> memref<1x!tpu.dma_semaphore, #tpu.memory_space<semaphore_mem>>
    %224 = tpu.memref_squeeze %223 : memref<1x!tpu.dma_semaphore, #tpu.memory_space<semaphore_mem>> -> memref<!tpu.dma_semaphore, #tpu.memory_space<semaphore_mem>>
    tpu.wait_dma2 semaphore(%224 : memref<!tpu.dma_semaphore, #tpu.memory_space<semaphore_mem>>) src(%arg6 : memref<128x512xbf16, #tpu.memory_space<any>>) dst(%arg12 : memref<128x512xbf16, #tpu.memory_space<vmem>>)
    %c0_65 = arith.constant 0 : index
    %c0_66 = arith.constant 0 : index
    %225 = vector.load %arg11[%c0_65, %c0_66] : memref<128x512xbf16, #tpu.memory_space<vmem>>, vector<128x512xbf16>
    %c0_67 = arith.constant 0 : index
    %c0_68 = arith.constant 0 : index
    %226 = vector.load %arg12[%c0_67, %c0_68] : memref<128x512xbf16, #tpu.memory_space<vmem>>, vector<128x512xbf16>
    %c0_69 = arith.constant 0 : index
    %c0_70 = arith.constant 0 : index
    %227 = vector.load %arg7[%c0_69, %c0_70] : memref<1x512xf32, #tpu.memory_space<vmem>>, vector<1x512xf32>
    %cst_71 = arith.constant dense<0.000000e+00> : vector<16x512xf32>
    %228 = tpu.matmul %220, %225, %cst_71 {dimension_numbers = #tpu.dot_dimension_numbers<[1], [0], [0], [1], [0, 0, 1, 1], [], []>} : vector<16x128xbf16>, vector<128x512xbf16>, vector<16x512xf32> -> vector<16x512xf32>
    %229 = vector.broadcast %227 : vector<1x512xf32> to vector<16x512xf32>
    %230 = arith.addf %228, %229 : vector<16x512xf32>
    %cst_72 = arith.constant 0.000000e+00 : f32
    %231 = vector.broadcast %cst_72 : f32 to vector<2x128xf32>
    %232 = vector.extract_strided_slice %230 {offsets = [0, 0], sizes = [2, 512], strides = [1, 1]} : vector<16x512xf32> to vector<2x512xf32>
    %233 = math.tanh %232 : vector<2x512xf32>
    %234 = vector.extract_strided_slice %233 {offsets = [0, 0], sizes = [2, 128], strides = [1, 1]} : vector<2x512xf32> to vector<2x128xf32>
    %cst_73 = arith.constant 5.000000e-01 : f32
    %235 = vector.broadcast %cst_73 : f32 to vector<2x128xf32>
    %236 = arith.mulf %235, %234 : vector<2x128xf32>
    %cst_74 = arith.constant 5.000000e-01 : f32
    %237 = vector.broadcast %cst_74 : f32 to vector<2x128xf32>
    %238 = arith.addf %237, %236 : vector<2x128xf32>
    %239 = vector.extract_strided_slice %233 {offsets = [0, 128], sizes = [2, 128], strides = [1, 1]} : vector<2x512xf32> to vector<2x128xf32>
    %cst_75 = arith.constant 5.000000e-01 : f32
    %240 = vector.broadcast %cst_75 : f32 to vector<2x128xf32>
    %241 = arith.mulf %240, %239 : vector<2x128xf32>
    %cst_76 = arith.constant 5.000000e-01 : f32
    %242 = vector.broadcast %cst_76 : f32 to vector<2x128xf32>
    %243 = arith.addf %242, %241 : vector<2x128xf32>
    %244 = vector.extract_strided_slice %233 {offsets = [0, 256], sizes = [2, 128], strides = [1, 1]} : vector<2x512xf32> to vector<2x128xf32>
    %cst_77 = arith.constant 5.000000e-01 : f32
    %245 = vector.broadcast %cst_77 : f32 to vector<2x128xf32>
    %246 = arith.mulf %245, %244 : vector<2x128xf32>
    %cst_78 = arith.constant 5.000000e-01 : f32
    %247 = vector.broadcast %cst_78 : f32 to vector<2x128xf32>
    %248 = arith.addf %247, %246 : vector<2x128xf32>
    %249 = vector.extract_strided_slice %233 {offsets = [0, 384], sizes = [2, 128], strides = [1, 1]} : vector<2x512xf32> to vector<2x128xf32>
    %250 = arith.mulf %243, %231 : vector<2x128xf32>
    %251 = arith.mulf %238, %249 : vector<2x128xf32>
    %252 = arith.addf %250, %251 : vector<2x128xf32>
    %253 = math.tanh %252 : vector<2x128xf32>
    %254 = arith.mulf %248, %253 : vector<2x128xf32>
    %255 = vector.extract_strided_slice %230 {offsets = [2, 0], sizes = [2, 512], strides = [1, 1]} : vector<16x512xf32> to vector<2x512xf32>
    %256 = arith.truncf %254 : vector<2x128xf32> to vector<2x128xbf16>
    %cst_79 = arith.constant dense<0.000000e+00> : vector<2x512xf32>
    %257 = tpu.matmul %256, %226, %cst_79 {dimension_numbers = #tpu.dot_dimension_numbers<[1], [0], [0], [1], [0, 0, 1, 1], [], []>} : vector<2x128xbf16>, vector<128x512xbf16>, vector<2x512xf32> -> vector<2x512xf32>
    %258 = arith.addf %255, %257 : vector<2x512xf32>
    %259 = math.tanh %258 : vector<2x512xf32>
    %260 = vector.extract_strided_slice %259 {offsets = [0, 0], sizes = [2, 128], strides = [1, 1]} : vector<2x512xf32> to vector<2x128xf32>
    %cst_80 = arith.constant 5.000000e-01 : f32
    %261 = vector.broadcast %cst_80 : f32 to vector<2x128xf32>
    %262 = arith.mulf %261, %260 : vector<2x128xf32>
    %cst_81 = arith.constant 5.000000e-01 : f32
    %263 = vector.broadcast %cst_81 : f32 to vector<2x128xf32>
    %264 = arith.addf %263, %262 : vector<2x128xf32>
    %265 = vector.extract_strided_slice %259 {offsets = [0, 128], sizes = [2, 128], strides = [1, 1]} : vector<2x512xf32> to vector<2x128xf32>
    %cst_82 = arith.constant 5.000000e-01 : f32
    %266 = vector.broadcast %cst_82 : f32 to vector<2x128xf32>
    %267 = arith.mulf %266, %265 : vector<2x128xf32>
    %cst_83 = arith.constant 5.000000e-01 : f32
    %268 = vector.broadcast %cst_83 : f32 to vector<2x128xf32>
    %269 = arith.addf %268, %267 : vector<2x128xf32>
    %270 = vector.extract_strided_slice %259 {offsets = [0, 256], sizes = [2, 128], strides = [1, 1]} : vector<2x512xf32> to vector<2x128xf32>
    %cst_84 = arith.constant 5.000000e-01 : f32
    %271 = vector.broadcast %cst_84 : f32 to vector<2x128xf32>
    %272 = arith.mulf %271, %270 : vector<2x128xf32>
    %cst_85 = arith.constant 5.000000e-01 : f32
    %273 = vector.broadcast %cst_85 : f32 to vector<2x128xf32>
    %274 = arith.addf %273, %272 : vector<2x128xf32>
    %275 = vector.extract_strided_slice %259 {offsets = [0, 384], sizes = [2, 128], strides = [1, 1]} : vector<2x512xf32> to vector<2x128xf32>
    %276 = arith.mulf %269, %252 : vector<2x128xf32>
    %277 = arith.mulf %264, %275 : vector<2x128xf32>
    %278 = arith.addf %276, %277 : vector<2x128xf32>
    %279 = math.tanh %278 : vector<2x128xf32>
    %280 = arith.mulf %274, %279 : vector<2x128xf32>
    %281 = vector.extract_strided_slice %230 {offsets = [4, 0], sizes = [2, 512], strides = [1, 1]} : vector<16x512xf32> to vector<2x512xf32>
    %282 = arith.truncf %280 : vector<2x128xf32> to vector<2x128xbf16>
    %cst_86 = arith.constant dense<0.000000e+00> : vector<2x512xf32>
    %283 = tpu.matmul %282, %226, %cst_86 {dimension_numbers = #tpu.dot_dimension_numbers<[1], [0], [0], [1], [0, 0, 1, 1], [], []>} : vector<2x128xbf16>, vector<128x512xbf16>, vector<2x512xf32> -> vector<2x512xf32>
    %284 = arith.addf %281, %283 : vector<2x512xf32>
    %285 = math.tanh %284 : vector<2x512xf32>
    %286 = vector.extract_strided_slice %285 {offsets = [0, 0], sizes = [2, 128], strides = [1, 1]} : vector<2x512xf32> to vector<2x128xf32>
    %cst_87 = arith.constant 5.000000e-01 : f32
    %287 = vector.broadcast %cst_87 : f32 to vector<2x128xf32>
    %288 = arith.mulf %287, %286 : vector<2x128xf32>
    %cst_88 = arith.constant 5.000000e-01 : f32
    %289 = vector.broadcast %cst_88 : f32 to vector<2x128xf32>
    %290 = arith.addf %289, %288 : vector<2x128xf32>
    %291 = vector.extract_strided_slice %285 {offsets = [0, 128], sizes = [2, 128], strides = [1, 1]} : vector<2x512xf32> to vector<2x128xf32>
    %cst_89 = arith.constant 5.000000e-01 : f32
    %292 = vector.broadcast %cst_89 : f32 to vector<2x128xf32>
    %293 = arith.mulf %292, %291 : vector<2x128xf32>
    %cst_90 = arith.constant 5.000000e-01 : f32
    %294 = vector.broadcast %cst_90 : f32 to vector<2x128xf32>
    %295 = arith.addf %294, %293 : vector<2x128xf32>
    %296 = vector.extract_strided_slice %285 {offsets = [0, 256], sizes = [2, 128], strides = [1, 1]} : vector<2x512xf32> to vector<2x128xf32>
    %cst_91 = arith.constant 5.000000e-01 : f32
    %297 = vector.broadcast %cst_91 : f32 to vector<2x128xf32>
    %298 = arith.mulf %297, %296 : vector<2x128xf32>
    %cst_92 = arith.constant 5.000000e-01 : f32
    %299 = vector.broadcast %cst_92 : f32 to vector<2x128xf32>
    %300 = arith.addf %299, %298 : vector<2x128xf32>
    %301 = vector.extract_strided_slice %285 {offsets = [0, 384], sizes = [2, 128], strides = [1, 1]} : vector<2x512xf32> to vector<2x128xf32>
    %302 = arith.mulf %295, %278 : vector<2x128xf32>
    %303 = arith.mulf %290, %301 : vector<2x128xf32>
    %304 = arith.addf %302, %303 : vector<2x128xf32>
    %305 = math.tanh %304 : vector<2x128xf32>
    %306 = arith.mulf %300, %305 : vector<2x128xf32>
    %307 = vector.extract_strided_slice %230 {offsets = [6, 0], sizes = [2, 512], strides = [1, 1]} : vector<16x512xf32> to vector<2x512xf32>
    %308 = arith.truncf %306 : vector<2x128xf32> to vector<2x128xbf16>
    %cst_93 = arith.constant dense<0.000000e+00> : vector<2x512xf32>
    %309 = tpu.matmul %308, %226, %cst_93 {dimension_numbers = #tpu.dot_dimension_numbers<[1], [0], [0], [1], [0, 0, 1, 1], [], []>} : vector<2x128xbf16>, vector<128x512xbf16>, vector<2x512xf32> -> vector<2x512xf32>
    %310 = arith.addf %307, %309 : vector<2x512xf32>
    %311 = math.tanh %310 : vector<2x512xf32>
    %312 = vector.extract_strided_slice %311 {offsets = [0, 0], sizes = [2, 128], strides = [1, 1]} : vector<2x512xf32> to vector<2x128xf32>
    %cst_94 = arith.constant 5.000000e-01 : f32
    %313 = vector.broadcast %cst_94 : f32 to vector<2x128xf32>
    %314 = arith.mulf %313, %312 : vector<2x128xf32>
    %cst_95 = arith.constant 5.000000e-01 : f32
    %315 = vector.broadcast %cst_95 : f32 to vector<2x128xf32>
    %316 = arith.addf %315, %314 : vector<2x128xf32>
    %317 = vector.extract_strided_slice %311 {offsets = [0, 128], sizes = [2, 128], strides = [1, 1]} : vector<2x512xf32> to vector<2x128xf32>
    %cst_96 = arith.constant 5.000000e-01 : f32
    %318 = vector.broadcast %cst_96 : f32 to vector<2x128xf32>
    %319 = arith.mulf %318, %317 : vector<2x128xf32>
    %cst_97 = arith.constant 5.000000e-01 : f32
    %320 = vector.broadcast %cst_97 : f32 to vector<2x128xf32>
    %321 = arith.addf %320, %319 : vector<2x128xf32>
    %322 = vector.extract_strided_slice %311 {offsets = [0, 256], sizes = [2, 128], strides = [1, 1]} : vector<2x512xf32> to vector<2x128xf32>
    %cst_98 = arith.constant 5.000000e-01 : f32
    %323 = vector.broadcast %cst_98 : f32 to vector<2x128xf32>
    %324 = arith.mulf %323, %322 : vector<2x128xf32>
    %cst_99 = arith.constant 5.000000e-01 : f32
    %325 = vector.broadcast %cst_99 : f32 to vector<2x128xf32>
    %326 = arith.addf %325, %324 : vector<2x128xf32>
    %327 = vector.extract_strided_slice %311 {offsets = [0, 384], sizes = [2, 128], strides = [1, 1]} : vector<2x512xf32> to vector<2x128xf32>
    %328 = arith.mulf %321, %304 : vector<2x128xf32>
    %329 = arith.mulf %316, %327 : vector<2x128xf32>
    %330 = arith.addf %328, %329 : vector<2x128xf32>
    %331 = math.tanh %330 : vector<2x128xf32>
    %332 = arith.mulf %326, %331 : vector<2x128xf32>
    %333 = vector.extract_strided_slice %230 {offsets = [8, 0], sizes = [2, 512], strides = [1, 1]} : vector<16x512xf32> to vector<2x512xf32>
    %334 = arith.truncf %332 : vector<2x128xf32> to vector<2x128xbf16>
    %cst_100 = arith.constant dense<0.000000e+00> : vector<2x512xf32>
    %335 = tpu.matmul %334, %226, %cst_100 {dimension_numbers = #tpu.dot_dimension_numbers<[1], [0], [0], [1], [0, 0, 1, 1], [], []>} : vector<2x128xbf16>, vector<128x512xbf16>, vector<2x512xf32> -> vector<2x512xf32>
    %336 = arith.addf %333, %335 : vector<2x512xf32>
    %337 = math.tanh %336 : vector<2x512xf32>
    %338 = vector.extract_strided_slice %337 {offsets = [0, 0], sizes = [2, 128], strides = [1, 1]} : vector<2x512xf32> to vector<2x128xf32>
    %cst_101 = arith.constant 5.000000e-01 : f32
    %339 = vector.broadcast %cst_101 : f32 to vector<2x128xf32>
    %340 = arith.mulf %339, %338 : vector<2x128xf32>
    %cst_102 = arith.constant 5.000000e-01 : f32
    %341 = vector.broadcast %cst_102 : f32 to vector<2x128xf32>
    %342 = arith.addf %341, %340 : vector<2x128xf32>
    %343 = vector.extract_strided_slice %337 {offsets = [0, 128], sizes = [2, 128], strides = [1, 1]} : vector<2x512xf32> to vector<2x128xf32>
    %cst_103 = arith.constant 5.000000e-01 : f32
    %344 = vector.broadcast %cst_103 : f32 to vector<2x128xf32>
    %345 = arith.mulf %344, %343 : vector<2x128xf32>
    %cst_104 = arith.constant 5.000000e-01 : f32
    %346 = vector.broadcast %cst_104 : f32 to vector<2x128xf32>
    %347 = arith.addf %346, %345 : vector<2x128xf32>
    %348 = vector.extract_strided_slice %337 {offsets = [0, 256], sizes = [2, 128], strides = [1, 1]} : vector<2x512xf32> to vector<2x128xf32>
    %cst_105 = arith.constant 5.000000e-01 : f32
    %349 = vector.broadcast %cst_105 : f32 to vector<2x128xf32>
    %350 = arith.mulf %349, %348 : vector<2x128xf32>
    %cst_106 = arith.constant 5.000000e-01 : f32
    %351 = vector.broadcast %cst_106 : f32 to vector<2x128xf32>
    %352 = arith.addf %351, %350 : vector<2x128xf32>
    %353 = vector.extract_strided_slice %337 {offsets = [0, 384], sizes = [2, 128], strides = [1, 1]} : vector<2x512xf32> to vector<2x128xf32>
    %354 = arith.mulf %347, %330 : vector<2x128xf32>
    %355 = arith.mulf %342, %353 : vector<2x128xf32>
    %356 = arith.addf %354, %355 : vector<2x128xf32>
    %357 = math.tanh %356 : vector<2x128xf32>
    %358 = arith.mulf %352, %357 : vector<2x128xf32>
    %359 = vector.extract_strided_slice %230 {offsets = [10, 0], sizes = [2, 512], strides = [1, 1]} : vector<16x512xf32> to vector<2x512xf32>
    %360 = arith.truncf %358 : vector<2x128xf32> to vector<2x128xbf16>
    %cst_107 = arith.constant dense<0.000000e+00> : vector<2x512xf32>
    %361 = tpu.matmul %360, %226, %cst_107 {dimension_numbers = #tpu.dot_dimension_numbers<[1], [0], [0], [1], [0, 0, 1, 1], [], []>} : vector<2x128xbf16>, vector<128x512xbf16>, vector<2x512xf32> -> vector<2x512xf32>
    %362 = arith.addf %359, %361 : vector<2x512xf32>
    %363 = math.tanh %362 : vector<2x512xf32>
    %364 = vector.extract_strided_slice %363 {offsets = [0, 0], sizes = [2, 128], strides = [1, 1]} : vector<2x512xf32> to vector<2x128xf32>
    %cst_108 = arith.constant 5.000000e-01 : f32
    %365 = vector.broadcast %cst_108 : f32 to vector<2x128xf32>
    %366 = arith.mulf %365, %364 : vector<2x128xf32>
    %cst_109 = arith.constant 5.000000e-01 : f32
    %367 = vector.broadcast %cst_109 : f32 to vector<2x128xf32>
    %368 = arith.addf %367, %366 : vector<2x128xf32>
    %369 = vector.extract_strided_slice %363 {offsets = [0, 128], sizes = [2, 128], strides = [1, 1]} : vector<2x512xf32> to vector<2x128xf32>
    %cst_110 = arith.constant 5.000000e-01 : f32
    %370 = vector.broadcast %cst_110 : f32 to vector<2x128xf32>
    %371 = arith.mulf %370, %369 : vector<2x128xf32>
    %cst_111 = arith.constant 5.000000e-01 : f32
    %372 = vector.broadcast %cst_111 : f32 to vector<2x128xf32>
    %373 = arith.addf %372, %371 : vector<2x128xf32>
    %374 = vector.extract_strided_slice %363 {offsets = [0, 256], sizes = [2, 128], strides = [1, 1]} : vector<2x512xf32> to vector<2x128xf32>
    %cst_112 = arith.constant 5.000000e-01 : f32
    %375 = vector.broadcast %cst_112 : f32 to vector<2x128xf32>
    %376 = arith.mulf %375, %374 : vector<2x128xf32>
    %cst_113 = arith.constant 5.000000e-01 : f32
    %377 = vector.broadcast %cst_113 : f32 to vector<2x128xf32>
    %378 = arith.addf %377, %376 : vector<2x128xf32>
    %379 = vector.extract_strided_slice %363 {offsets = [0, 384], sizes = [2, 128], strides = [1, 1]} : vector<2x512xf32> to vector<2x128xf32>
    %380 = arith.mulf %373, %356 : vector<2x128xf32>
    %381 = arith.mulf %368, %379 : vector<2x128xf32>
    %382 = arith.addf %380, %381 : vector<2x128xf32>
    %383 = math.tanh %382 : vector<2x128xf32>
    %384 = arith.mulf %378, %383 : vector<2x128xf32>
    %385 = vector.extract_strided_slice %230 {offsets = [12, 0], sizes = [2, 512], strides = [1, 1]} : vector<16x512xf32> to vector<2x512xf32>
    %386 = arith.truncf %384 : vector<2x128xf32> to vector<2x128xbf16>
    %cst_114 = arith.constant dense<0.000000e+00> : vector<2x512xf32>
    %387 = tpu.matmul %386, %226, %cst_114 {dimension_numbers = #tpu.dot_dimension_numbers<[1], [0], [0], [1], [0, 0, 1, 1], [], []>} : vector<2x128xbf16>, vector<128x512xbf16>, vector<2x512xf32> -> vector<2x512xf32>
    %388 = arith.addf %385, %387 : vector<2x512xf32>
    %389 = math.tanh %388 : vector<2x512xf32>
    %390 = vector.extract_strided_slice %389 {offsets = [0, 0], sizes = [2, 128], strides = [1, 1]} : vector<2x512xf32> to vector<2x128xf32>
    %cst_115 = arith.constant 5.000000e-01 : f32
    %391 = vector.broadcast %cst_115 : f32 to vector<2x128xf32>
    %392 = arith.mulf %391, %390 : vector<2x128xf32>
    %cst_116 = arith.constant 5.000000e-01 : f32
    %393 = vector.broadcast %cst_116 : f32 to vector<2x128xf32>
    %394 = arith.addf %393, %392 : vector<2x128xf32>
    %395 = vector.extract_strided_slice %389 {offsets = [0, 128], sizes = [2, 128], strides = [1, 1]} : vector<2x512xf32> to vector<2x128xf32>
    %cst_117 = arith.constant 5.000000e-01 : f32
    %396 = vector.broadcast %cst_117 : f32 to vector<2x128xf32>
    %397 = arith.mulf %396, %395 : vector<2x128xf32>
    %cst_118 = arith.constant 5.000000e-01 : f32
    %398 = vector.broadcast %cst_118 : f32 to vector<2x128xf32>
    %399 = arith.addf %398, %397 : vector<2x128xf32>
    %400 = vector.extract_strided_slice %389 {offsets = [0, 256], sizes = [2, 128], strides = [1, 1]} : vector<2x512xf32> to vector<2x128xf32>
    %cst_119 = arith.constant 5.000000e-01 : f32
    %401 = vector.broadcast %cst_119 : f32 to vector<2x128xf32>
    %402 = arith.mulf %401, %400 : vector<2x128xf32>
    %cst_120 = arith.constant 5.000000e-01 : f32
    %403 = vector.broadcast %cst_120 : f32 to vector<2x128xf32>
    %404 = arith.addf %403, %402 : vector<2x128xf32>
    %405 = vector.extract_strided_slice %389 {offsets = [0, 384], sizes = [2, 128], strides = [1, 1]} : vector<2x512xf32> to vector<2x128xf32>
    %406 = arith.mulf %399, %382 : vector<2x128xf32>
    %407 = arith.mulf %394, %405 : vector<2x128xf32>
    %408 = arith.addf %406, %407 : vector<2x128xf32>
    %409 = math.tanh %408 : vector<2x128xf32>
    %410 = arith.mulf %404, %409 : vector<2x128xf32>
    %411 = vector.extract_strided_slice %230 {offsets = [14, 0], sizes = [2, 512], strides = [1, 1]} : vector<16x512xf32> to vector<2x512xf32>
    %412 = arith.truncf %410 : vector<2x128xf32> to vector<2x128xbf16>
    %cst_121 = arith.constant dense<0.000000e+00> : vector<2x512xf32>
    %413 = tpu.matmul %412, %226, %cst_121 {dimension_numbers = #tpu.dot_dimension_numbers<[1], [0], [0], [1], [0, 0, 1, 1], [], []>} : vector<2x128xbf16>, vector<128x512xbf16>, vector<2x512xf32> -> vector<2x512xf32>
    %414 = arith.addf %411, %413 : vector<2x512xf32>
    %415 = math.tanh %414 : vector<2x512xf32>
    %416 = vector.extract_strided_slice %415 {offsets = [0, 0], sizes = [2, 128], strides = [1, 1]} : vector<2x512xf32> to vector<2x128xf32>
    %cst_122 = arith.constant 5.000000e-01 : f32
    %417 = vector.broadcast %cst_122 : f32 to vector<2x128xf32>
    %418 = arith.mulf %417, %416 : vector<2x128xf32>
    %cst_123 = arith.constant 5.000000e-01 : f32
    %419 = vector.broadcast %cst_123 : f32 to vector<2x128xf32>
    %420 = arith.addf %419, %418 : vector<2x128xf32>
    %421 = vector.extract_strided_slice %415 {offsets = [0, 128], sizes = [2, 128], strides = [1, 1]} : vector<2x512xf32> to vector<2x128xf32>
    %cst_124 = arith.constant 5.000000e-01 : f32
    %422 = vector.broadcast %cst_124 : f32 to vector<2x128xf32>
    %423 = arith.mulf %422, %421 : vector<2x128xf32>
    %cst_125 = arith.constant 5.000000e-01 : f32
    %424 = vector.broadcast %cst_125 : f32 to vector<2x128xf32>
    %425 = arith.addf %424, %423 : vector<2x128xf32>
    %426 = vector.extract_strided_slice %415 {offsets = [0, 256], sizes = [2, 128], strides = [1, 1]} : vector<2x512xf32> to vector<2x128xf32>
    %cst_126 = arith.constant 5.000000e-01 : f32
    %427 = vector.broadcast %cst_126 : f32 to vector<2x128xf32>
    %428 = arith.mulf %427, %426 : vector<2x128xf32>
    %cst_127 = arith.constant 5.000000e-01 : f32
    %429 = vector.broadcast %cst_127 : f32 to vector<2x128xf32>
    %430 = arith.addf %429, %428 : vector<2x128xf32>
    %431 = vector.extract_strided_slice %415 {offsets = [0, 384], sizes = [2, 128], strides = [1, 1]} : vector<2x512xf32> to vector<2x128xf32>
    %432 = arith.mulf %425, %408 : vector<2x128xf32>
    %433 = arith.mulf %420, %431 : vector<2x128xf32>
    %434 = arith.addf %432, %433 : vector<2x128xf32>
    %435 = math.tanh %434 : vector<2x128xf32>
    %436 = arith.mulf %430, %435 : vector<2x128xf32>
    %c2_i32_128 = arith.constant 2 : i32
    %437 = tpu.memref_slice %arg14[%c2_i32_128] : memref<3x!tpu.dma_semaphore, #tpu.memory_space<semaphore_mem>> -> memref<1x!tpu.dma_semaphore, #tpu.memory_space<semaphore_mem>>
    %438 = tpu.memref_squeeze %437 : memref<1x!tpu.dma_semaphore, #tpu.memory_space<semaphore_mem>> -> memref<!tpu.dma_semaphore, #tpu.memory_space<semaphore_mem>>
    tpu.wait_dma2 semaphore(%438 : memref<!tpu.dma_semaphore, #tpu.memory_space<semaphore_mem>>) src(%arg8 : memref<128x128xbf16, #tpu.memory_space<any>>) dst(%arg13 : memref<128x128xbf16, #tpu.memory_space<vmem>>)
    %439 = arith.truncf %436 : vector<2x128xf32> to vector<2x128xbf16>
    %c0_129 = arith.constant 0 : index
    %c0_130 = arith.constant 0 : index
    %440 = vector.load %arg13[%c0_129, %c0_130] : memref<128x128xbf16, #tpu.memory_space<vmem>>, vector<128x128xbf16>
    %cst_131 = arith.constant dense<0.000000e+00> : vector<2x128xf32>
    %441 = tpu.matmul %439, %440, %cst_131 {dimension_numbers = #tpu.dot_dimension_numbers<[1], [0], [0], [1], [0, 0, 1, 1], [], []>} : vector<2x128xbf16>, vector<128x128xbf16>, vector<2x128xf32> -> vector<2x128xf32>
    %c0_132 = arith.constant 0 : index
    %c0_133 = arith.constant 0 : index
    %442 = vector.load %arg9[%c0_132, %c0_133] : memref<1x128xf32, #tpu.memory_space<vmem>>, vector<1x128xf32>
    %443 = vector.broadcast %442 : vector<1x128xf32> to vector<2x128xf32>
    %444 = arith.addf %441, %443 : vector<2x128xf32>
    %c0_134 = arith.constant 0 : index
    %c0_135 = arith.constant 0 : index
    %445 = vector.load %arg10[%c0_134, %c0_135] : memref<2x128xf32, #tpu.memory_space<vmem>>, vector<2x128xf32>
    tpu.vector_store %arg10[%c0_134, %c0_135], %444 {strides = array<i32>} : memref<2x128xf32, #tpu.memory_space<vmem>>, vector<2x128xf32>,
    return
  }
  func.func @transform_0(%arg0: i32) -> (i32, i32) {
    %c0_i32 = arith.constant 0 : i32
    %c0_i32_0 = arith.constant 0 : i32
    %c0_i32_1 = arith.constant 0 : i32
    return %c0_i32, %c0_i32_0 : i32, i32
  }
  func.func @transform_1(%arg0: i32) -> (i32, i32) {
    %c0_i32 = arith.constant 0 : i32
    %c0_i32_0 = arith.constant 0 : i32
    %c0_i32_1 = arith.constant 0 : i32
    return %c0_i32, %c0_i32_0 : i32, i32
  }
  func.func @transform_2(%arg0: i32) -> (i32, i32) {
    %c0_i32 = arith.constant 0 : i32
    %c0_i32_0 = arith.constant 0 : i32
    %c0_i32_1 = arith.constant 0 : i32
    return %c0_i32, %c0_i32_0 : i32, i32
  }
  func.func @transform_3(%arg0: i32) -> (i32, i32) {
    %c0_i32 = arith.constant 0 : i32
    %c0_i32_0 = arith.constant 0 : i32
    %c0_i32_1 = arith.constant 0 : i32
    return %c0_i32, %c0_i32_0 : i32, i32
  }
  func.func @transform_6(%arg0: i32) -> (i32, i32) {
    %c0_i32 = arith.constant 0 : i32
    %c0_i32_0 = arith.constant 0 : i32
    %c0_i32_1 = arith.constant 0 : i32
    return %c0_i32, %c0_i32_0 : i32, i32
  }
  func.func @transform_8(%arg0: i32) -> (i32, i32) {
    %c0_i32 = arith.constant 0 : i32
    %c0_i32_0 = arith.constant 0 : i32
    %c0_i32_1 = arith.constant 0 : i32
    return %c0_i32, %c0_i32_0 : i32, i32
  }
  func.func @transform_9(%arg0: i32) -> (i32, i32) {
    %c0_i32 = arith.constant 0 : i32
    %c0_i32_0 = arith.constant 0 : i32
    %c0_i32_1 = arith.constant 0 : i32
    return %c0_i32, %c0_i32_0 : i32, i32
  }
}

</mosaic_0001>

<llo_original>
// kernel: lstm_model_forward.1
$region0: #{lstm_model_forward.1}
  #allocation0 [shape = 'u32[]', space=smem, size = 0x4, offset = 0x4, fixed_abs, tag = 'smem constant byte address 0x4 - core index']
  #allocation1 [shape = 'u32[144,128]{1,0:T(1,128)}', space=vmem, size = 0x12000, scoped, tag = 'internal scratch']
  #allocation2 [shape = 'bf16[128,512]{1,0:T(16,128)(2,1)}', space=vmem, size = 0x20000, scoped, tag = 'scratch operand']
  #allocation3 [shape = 'bf16[128,512]{1,0:T(16,128)(2,1)}', space=vmem, size = 0x20000, scoped, tag = 'scratch operand']
  #allocation4 [shape = 'bf16[128,128]{1,0:T(16,128)(2,1)}', space=vmem, size = 0x8000, scoped, tag = 'scratch operand']
  #allocation5 [shape = 's32[3]{0}', space=sflag, size = 0xc, scoped, tag = 'scratch operand']
  #allocation8 [shape = 's32[]', space=sflag, size = 0x4, offset = 0, fixed_abs, tag = 'sflag constant byte address 0x0 - dummy sync flag']
  #allocation10 [shape = 's32[]', space=sflag, size = 0x4, offset = 0, fixed_abs, tag = 'sflag constant byte address 0x0 - dummy sync flag']
  #allocation12 [shape = 's32[]', space=sflag, size = 0x4, offset = 0, fixed_abs, tag = 'sflag constant byte address 0x0 - dummy sync flag']
  #allocation13 [shape = 's32[]', space=sflag, size = 0x4, offset = 0, fixed_abs, tag = 'sflag constant byte address 0x0 - dummy sync flag']
  #allocation14 [shape = 'u32[]', space=smem, size = 0x4, offset = 0x44, fixed_abs, tag = 'smem constant byte address 0x44 - assertion arg 0']
  #allocation15 [shape = 'u32[]', space=smem, size = 0x4, offset = 0x48, fixed_abs, tag = 'smem constant byte address 0x48 - assertion arg 1']
  %s0 = inlined_call_operand.vmem [shape: bf16[16,16], index: 0, kind: input, shape index: {}]
  %s1 = inlined_call_operand.vmem [shape: bf16[16,512], index: 1, kind: input, shape index: {}]
  %s2 = inlined_call_operand.hbm [shape: bf16[128,512], index: 2, kind: input, shape index: {}]
  %s3 = inlined_call_operand.vmem [shape: f32[1,512], index: 3, kind: input, shape index: {}]
  %s4 = inlined_call_operand.hbm [shape: bf16[128,512], index: 4, kind: input, shape index: {}]
  %s5 = inlined_call_operand.hbm [shape: bf16[128,512], index: 5, kind: input, shape index: {}]
  %s6 = inlined_call_operand.vmem [shape: f32[1,512], index: 6, kind: input, shape index: {}]
  %s7 = inlined_call_operand.hbm [shape: bf16[128,128], index: 7, kind: input, shape index: {}]
  %s8 = inlined_call_operand.vmem [shape: f32[1,128], index: 8, kind: input, shape index: {}]
  %s9 = inlined_call_operand.vmem [shape: f32[2,128], index: 9, kind: output, shape index: {}]
  %s10 = sld [smem:[#allocation0]]
  $region42: #{lstm_model_forward.1} parent=0
    _
  %s12 = ssub.s32 1, %s10
  %s13 = scalar_select 0, %s12, %s10
  $region1: #{lstm_model_forward.1} parent=0
    #allocation6 [shape = 'u8[131072]{0}', space=vmem, size = 0x20000, scoped, tag = 'input window, operand 2, single buffered']
    #allocation7 [shape = 's32[1]{0}', space=sflag, size = 0x4, scoped, tag = 'scoped memory for lstm_model_forward.1']
    #allocation9 [shape = 'u32[9]{0}', space=smem, size = 0x24, scoped, tag = 'DMA stride descriptor']
    #allocation11 [shape = 'u32[9]{0}', space=smem, size = 0x24, scoped, tag = 'DMA stride descriptor']
    %14 = vsyncpa [#allocation7], 0
    // Predicated region
    $region2: #{lstm_model_forward.1} parent=1 // pred_check
      _
    $region3: #{lstm_model_forward.1} parent=1 // pred_check_branch
      %16 = sbr.rel (0) target = $region5
    $region4: #{lstm_model_forward.1} parent=1 // pred_region
      _
    $region5: #{lstm_model_forward.1} parent=1 // pred_fallthru
      _
    // Predicated region
    $region6: #{lstm_model_forward.1} parent=1 // pred_check
      _
    $region7: #{lstm_model_forward.1} parent=1 // pred_check_branch
      %18 = sbr.rel (0) target = $region9
    $region8: #{lstm_model_forward.1} parent=1 // pred_region
      _
    $region9: #{lstm_model_forward.1} parent=1 // pred_fallthru
      _
    // Predicated region
    $region10: #{lstm_model_forward.1} parent=1 // pred_check
      _
    $region11: #{lstm_model_forward.1} parent=1 // pred_check_branch
      %20 = sbr.rel (0) target = $region13
    $region12: #{lstm_model_forward.1} parent=1 // pred_region
      %s22 = ssub.s32 4096, 4096
      %23 = vsyncadd [#allocation7], %s22
      %s24 = sshll.u32 [#allocation6], 4
      %s25 = int_to_ptr.vmem [resolvable:$true] %s24
      %30 = dma.hbm_to_vmem [thread:$0]  %s2, 4096, %s25, [#allocation7], 256, 256, 16
    $region13: #{lstm_model_forward.1} parent=1 // pred_fallthru
      _
    // Predicated region
    $region14: #{lstm_model_forward.1} parent=1 // pred_check
      _
    $region15: #{lstm_model_forward.1} parent=1 // pred_check_branch
      %32 = sbr.rel (0) target = $region17
    $region16: #{lstm_model_forward.1} parent=1 // pred_region
      _
    $region17: #{lstm_model_forward.1} parent=1 // pred_fallthru
      _
    // Predicated region
    $region18: #{lstm_model_forward.1} parent=1 // pred_check
      _
    $region19: #{lstm_model_forward.1} parent=1 // pred_check_branch
      %34 = sbr.rel (0) target = $region21
    $region20: #{lstm_model_forward.1} parent=1 // pred_region
      _
    $region21: #{lstm_model_forward.1} parent=1 // pred_fallthru
      _
    // Predicated region
    $region22: #{lstm_model_forward.1} parent=1 // pred_check
      _
    $region23: #{lstm_model_forward.1} parent=1 // pred_check_branch
      %36 = sbr.rel (0) target = $region25
    $region24: #{lstm_model_forward.1} parent=1 // pred_region
      _
    $region25: #{lstm_model_forward.1} parent=1 // pred_fallthru
      _
    // Predicated region
    $region26: #{lstm_model_forward.1} parent=1 // pred_check
      _
    $region27: #{lstm_model_forward.1} parent=1 // pred_check_branch
      %38 = sbr.rel (0) target = $region29
    $region28: #{lstm_model_forward.1} parent=1 // pred_region
      %39 = dma.done [#allocation7], 4096
    $region29: #{lstm_model_forward.1} parent=1 // pred_fallthru
      _
    %s42 = sshll.u32 1, 14
    %s43 = sxor.u32 4294967295, %s42
    %s45 = sld [smem:[#allocation0]]
    %s46 = sadd.s32 2, %s45
    %s48 = sshll.u32 7, 26
    %s49 = sxor.u32 4294967295, %s48
    %s50 = sand.u32 0, %s49
    %s51 = sshll.u32 %s46, 26
    %s52 = sor.u32 %s50, %s51
    %s53 = sshll.u32 [#allocation2], 4
    %s54 = int_to_ptr.vmem [resolvable:$true] %s53
    %57 = sst [smem:[#allocation9]] 512
    %s58 = scalar_lea.smem [#allocation9], 1
    %59 = sst [smem:[%s58]] 512
    %s60 = scalar_lea.smem [#allocation9], 2
    %61 = sst [smem:[%s60]] 4
    %s62 = scalar_lea.smem [#allocation9], 3
    %63 = sst [smem:[%s62]] 64
    %s64 = scalar_lea.smem [#allocation9], 4
    %65 = sst [smem:[%s64]] 128
    %s66 = scalar_lea.smem [#allocation9], 5
    %67 = sst [smem:[%s66]] 2
    %s68 = scalar_lea.smem [#allocation9], 6
    %69 = sst [smem:[%s68]] 256
    %s70 = scalar_lea.smem [#allocation9], 7
    %71 = sst [smem:[%s70]] 64
    %s72 = scalar_lea.smem [#allocation9], 8
    %73 = sst [smem:[%s72]] 4
    %75 = dma.general %s4, 4096, %s54, [#allocation5], [#allocation8], [#allocation9], %s52, 0
    %s76 = scalar_lea.sflag [#allocation5], 1
    %s78 = sshll.u32 1, 14
    %s79 = sxor.u32 4294967295, %s78
    %s81 = sadd.s32 2, %s45
    %s83 = sshll.u32 7, 26
    %s84 = sxor.u32 4294967295, %s83
    %s85 = sand.u32 0, %s84
    %s86 = sshll.u32 %s81, 26
    %s87 = sor.u32 %s85, %s86
    %s88 = sshll.u32 [#allocation3], 4
    %s89 = int_to_ptr.vmem [resolvable:$true] %s88
    %92 = sst [smem:[#allocation11]] 512
    %s93 = scalar_lea.smem [#allocation11], 1
    %94 = sst [smem:[%s93]] 512
    %s95 = scalar_lea.smem [#allocation11], 2
    %96 = sst [smem:[%s95]] 4
    %s97 = scalar_lea.smem [#allocation11], 3
    %98 = sst [smem:[%s97]] 64
    %s99 = scalar_lea.smem [#allocation11], 4
    %100 = sst [smem:[%s99]] 128
    %s101 = scalar_lea.smem [#allocation11], 5
    %102 = sst [smem:[%s101]] 2
    %s103 = scalar_lea.smem [#allocation11], 6
    %104 = sst [smem:[%s103]] 256
    %s105 = scalar_lea.smem [#allocation11], 7
    %106 = sst [smem:[%s105]] 64
    %s107 = scalar_lea.smem [#allocation11], 8
    %108 = sst [smem:[%s107]] 4
    %110 = dma.general %s5, 4096, %s89, %s76, [#allocation10], [#allocation11], %s87, 0
    %s111 = scalar_lea.sflag [#allocation5], 2
    // Predicated region
    $region30: #{lstm_model_forward.1} parent=1 // pred_check
      _
    $region31: #{lstm_model_forward.1} parent=1 // pred_check_branch
      %113 = sbr.rel target = $region33
    $region32: #{lstm_model_forward.1} parent=1 // pred_region
      %114 = sst [smem:[#allocation14]] [#allocation13]
      %115 = sst [smem:[#allocation15]] [#allocation12]
    $region33: #{lstm_model_forward.1} parent=1 // pred_fallthru
      _
    %117 = shalt.err (0)
    %s119 = sshll.u32 [#allocation4], 4
    %s120 = int_to_ptr.vmem [resolvable:$true] %s119
    %122 = dma.hbm_to_vmem [thread:$0]  %s7, 1024, %s120, %s111
    %v123 = vld [vmem:[%s0] sm:$0xf]
    %v124 = vld [vmem:[%s0 + $0x4] sm:$0xf]
    %v125 = vld [vmem:[%s1] sm:$0xff]
    %v126 = vld [vmem:[%s1 + $0x8] sm:$0xff]
    %v127 = vld [vmem:[%s1 + $0x10] sm:$0xff]
    %v128 = vld [vmem:[%s1 + $0x18] sm:$0xff]
    %v129 = vld [vmem:[#allocation6] sm:$0xff]
    %v130 = vld [vmem:[#allocation6 + $0x8] sm:$0xff]
    %v131 = vld [vmem:[#allocation6 + $0x10] sm:$0xff]
    %v132 = vld [vmem:[#allocation6 + $0x18] sm:$0xff]
    %v133 = vld [vmem:[#allocation6 + $0x20] sm:$0xff]
    %v134 = vld [vmem:[#allocation6 + $0x28] sm:$0xff]
    %v135 = vld [vmem:[#allocation6 + $0x30] sm:$0xff]
    %v136 = vld [vmem:[#allocation6 + $0x38] sm:$0xff]
    %v137 = vld [vmem:[#allocation6 + $0x40] sm:$0xff]
    %v138 = vld [vmem:[#allocation6 + $0x48] sm:$0xff]
    %v139 = vld [vmem:[#allocation6 + $0x50] sm:$0xff]
    %v140 = vld [vmem:[#allocation6 + $0x58] sm:$0xff]
    %v141 = vld [vmem:[#allocation6 + $0x60] sm:$0xff]
    %v142 = vld [vmem:[#allocation6 + $0x68] sm:$0xff]
    %v143 = vld [vmem:[#allocation6 + $0x70] sm:$0xff]
    %v144 = vld [vmem:[#allocation6 + $0x78] sm:$0xff]
    %v145 = vld [vmem:[#allocation6 + $0x80] sm:$0xff]
    %v146 = vld [vmem:[#allocation6 + $0x88] sm:$0xff]
    %v147 = vld [vmem:[#allocation6 + $0x90] sm:$0xff]
    %v148 = vld [vmem:[#allocation6 + $0x98] sm:$0xff]
    %v149 = vld [vmem:[#allocation6 + $0xa0] sm:$0xff]
    %v150 = vld [vmem:[#allocation6 + $0xa8] sm:$0xff]
    %v151 = vld [vmem:[#allocation6 + $0xb0] sm:$0xff]
    %v152 = vld [vmem:[#allocation6 + $0xb8] sm:$0xff]
    %v153 = vld [vmem:[#allocation6 + $0xc0] sm:$0xff]
    %v154 = vld [vmem:[#allocation6 + $0xc8] sm:$0xff]
    %v155 = vld [vmem:[#allocation6 + $0xd0] sm:$0xff]
    %v156 = vld [vmem:[#allocation6 + $0xd8] sm:$0xff]
    %v157 = vld [vmem:[#allocation6 + $0xe0] sm:$0xff]
    %v158 = vld [vmem:[#allocation6 + $0xe8] sm:$0xff]
    %v159 = vld [vmem:[#allocation6 + $0xf0] sm:$0xff]
    %v160 = vld [vmem:[#allocation6 + $0xf8] sm:$0xff]
    %v161 = vld [vmem:[%s3] sm:$0xf]
    %v163 = vlaneseq
    %v164 = vshrl.u32 %v163, 7
    %v165 = vsub.s32 0, %v164
    %v166 = vrot.slane %v161, %v165
    %v167 = vlaneseq
    %v168 = vshrl.u32 %v167, 7
    %v169 = vsub.s32 1, %v168
    %v170 = vrot.slane %v161, %v169
    %v171 = vlaneseq
    %v172 = vshrl.u32 %v171, 7
    %v173 = vsub.s32 2, %v172
    %v174 = vrot.slane %v161, %v173
    %v175 = vlaneseq
    %v176 = vshrl.u32 %v175, 7
    %v177 = vsub.s32 3, %v176
    %v178 = vrot.slane %v161, %v177
    %v185 = vunpack.c.l.b16 %v123
    %v186 = vunpack.c.l.b16 %v124
    %v187 = vpack.c.b16 %v186, %v185
    %v192 = vunpack.c.l.b16 %v125
    %v193 = vunpack.c.h.b16 %v125
    %v194 = vunpack.c.l.b16 %v126
    %v195 = vunpack.c.h.b16 %v126
    %v196 = vunpack.c.l.b16 %v127
    %v197 = vunpack.c.h.b16 %v127
    %v198 = vunpack.c.l.b16 %v128
    %v199 = vunpack.c.h.b16 %v128
    %v200 = vpack.c.b16 %v196, %v192
    %v201 = vpack.c.b16 %v197, %v193
    %v202 = vpack.c.b16 %v198, %v194
    %v203 = vpack.c.b16 %v199, %v195
    %vm208 = vcmask 130048
    %v210 = vsel %vm208, %v187, 0
    %212 = vmatprep.subr.bf16.mxu0 %v201
    %213 = vmatpush1.bf16.msra.mxu0 %v200
    %214 = vmatprep.subr.bf16.mxu0 0
    %215 = vmatpush1.bf16.msra.mxu0 0
    %216 = vmatprep.subr.bf16.mxu0 0
    %217 = vmatpush1.bf16.msra.mxu0 0
    %218 = vmatprep.subr.bf16.mxu0 0
    %219 = vmatpush1.bf16.msra.mxu0 0
    %220 = vmatprep.subr.bf16.mxu0 0
    %221 = vmatpush1.bf16.msra.mxu0 0
    %222 = vmatprep.subr.bf16.mxu0 0
    %223 = vmatpush1.bf16.msra.mxu0 0
    %224 = vmatprep.subr.bf16.mxu0 0
    %225 = vmatpush1.bf16.msra.mxu0 0
    %226 = vmatprep.subr.bf16.mxu0 0
    %227 = vmatpush1.bf16.msra.mxu0 0
    %228 = vmatprep.subr.bf16.mxu0 0
    %229 = vmatpush1.bf16.msra.mxu0 0
    %230 = vmatprep.subr.bf16.mxu0 0
    %231 = vmatpush1.bf16.msra.mxu0 0
    %232 = vmatprep.subr.bf16.mxu0 0
    %233 = vmatpush1.bf16.msra.mxu0 0
    %234 = vmatprep.subr.bf16.mxu0 0
    %235 = vmatpush1.bf16.msra.mxu0 0
    %236 = vmatprep.subr.bf16.mxu0 0
    %237 = vmatpush1.bf16.msra.mxu0 0
    %238 = vmatprep.subr.bf16.mxu0 0
    %239 = vmatpush1.bf16.msra.mxu0 0
    %240 = vmatprep.subr.bf16.mxu0 0
    %241 = vmatpush1.bf16.msra.mxu0 0
    %242 = vmatprep.subr.bf16.mxu0 0
    %243 = vmatpush1.bf16.msra.mxu0 0
    %244 = vmatprep.mubr.bf16.mxu0 0
    %245 = vmatmul.mubr.bf16.gmra.mrb[0].mxu0 %v210
    %v246 = vpop.f32.mrb[0].mxu0
    %v247 = vadd.f32 %v166, %v246
    %v248 = vpop.f32.mrb[0].mxu0
    %v249 = vadd.f32 %v170, %v248
    %v250 = vpop.f32.mrb[0].mxu0
    %v251 = vadd.f32 %v166, %v250
    %v252 = vpop.f32.mrb[0].mxu0
    %v253 = vadd.f32 %v170, %v252
    %254 = vdwg.mxu0
    %255 = vmatprep.subr.bf16.mxu0 %v203
    %256 = vmatpush1.bf16.msra.mxu0 %v202
    %257 = vmatprep.subr.bf16.mxu0 0
    %258 = vmatpush1.bf16.msra.mxu0 0
    %259 = vmatprep.subr.bf16.mxu0 0
    %260 = vmatpush1.bf16.msra.mxu0 0
    %261 = vmatprep.subr.bf16.mxu0 0
    %262 = vmatpush1.bf16.msra.mxu0 0
    %263 = vmatprep.subr.bf16.mxu0 0
    %264 = vmatpush1.bf16.msra.mxu0 0
    %265 = vmatprep.subr.bf16.mxu0 0
    %266 = vmatpush1.bf16.msra.mxu0 0
    %267 = vmatprep.subr.bf16.mxu0 0
    %268 = vmatpush1.bf16.msra.mxu0 0
    %269 = vmatprep.subr.bf16.mxu0 0
    %270 = vmatpush1.bf16.msra.mxu0 0
    %271 = vmatprep.subr.bf16.mxu0 0
    %272 = vmatpush1.bf16.msra.mxu0 0
    %273 = vmatprep.subr.bf16.mxu0 0
    %274 = vmatpush1.bf16.msra.mxu0 0
    %275 = vmatprep.subr.bf16.mxu0 0
    %276 = vmatpush1.bf16.msra.mxu0 0
    %277 = vmatprep.subr.bf16.mxu0 0
    %278 = vmatpush1.bf16.msra.mxu0 0
    %279 = vmatprep.subr.bf16.mxu0 0
    %280 = vmatpush1.bf16.msra.mxu0 0
    %281 = vmatprep.subr.bf16.mxu0 0
    %282 = vmatpush1.bf16.msra.mxu0 0
    %283 = vmatprep.subr.bf16.mxu0 0
    %284 = vmatpush1.bf16.msra.mxu0 0
    %285 = vmatprep.subr.bf16.mxu0 0
    %286 = vmatpush1.bf16.msra.mxu0 0
    %287 = vmatprep.mubr.bf16.mxu0 0
    %288 = vmatmul.mubr.bf16.gmra.mrb[0].mxu0 %v210
    %v289 = vpop.f32.mrb[0].mxu0
    %v290 = vadd.f32 %v174, %v289
    %v291 = vpop.f32.mrb[0].mxu0
    %v292 = vadd.f32 %v178, %v291
    %v293 = vpop.f32.mrb[0].mxu0
    %v294 = vadd.f32 %v174, %v293
    %v295 = vpop.f32.mrb[0].mxu0
    %v296 = vadd.f32 %v178, %v295
    %297 = vdwg.mxu0
    %v298 = vtanh.pop %v247
    %v299 = vtanh.pop %v249
    %v300 = vtanh.pop %v290
    %v301 = vtanh.pop %v292
    %v302 = vmul.f32 %v298, 0.5
    %v303 = vadd.f32 %v302, 0.5
    %v304 = vmul.f32 %v299, 0.5
    %v305 = vadd.f32 %v304, 0.5
    %v306 = vmul.f32 %v300, 0.5
    %v307 = vadd.f32 %v306, 0.5
    %v308 = vmul.f32 %v305, 0.0
    %v309 = vmul.f32 %v303, %v301
    %v310 = vadd.f32 %v308, %v309
    %v311 = vtanh.pop %v310
    %v312 = vmul.f32 %v307, %v311
    %v313 = vpack.c.bf16 %v312, %v312
    %v346 = vunpack.c.l.b16 %v129
    %v347 = vunpack.c.h.b16 %v129
    %v348 = vunpack.c.l.b16 %v130
    %v349 = vunpack.c.h.b16 %v130
    %v350 = vunpack.c.l.b16 %v131
    %v351 = vunpack.c.h.b16 %v131
    %v352 = vunpack.c.l.b16 %v132
    %v353 = vunpack.c.h.b16 %v132
    %v354 = vunpack.c.l.b16 %v133
    %v355 = vunpack.c.h.b16 %v133
    %v356 = vunpack.c.l.b16 %v134
    %v357 = vunpack.c.h.b16 %v134
    %v358 = vunpack.c.l.b16 %v135
    %v359 = vunpack.c.h.b16 %v135
    %v360 = vunpack.c.l.b16 %v136
    %v361 = vunpack.c.h.b16 %v136
    %v362 = vunpack.c.l.b16 %v137
    %v363 = vunpack.c.h.b16 %v137
    %v364 = vunpack.c.l.b16 %v138
    %v365 = vunpack.c.h.b16 %v138
    %v366 = vunpack.c.l.b16 %v139
    %v367 = vunpack.c.h.b16 %v139
    %v368 = vunpack.c.l.b16 %v140
    %v369 = vunpack.c.h.b16 %v140
    %v370 = vunpack.c.l.b16 %v141
    %v371 = vunpack.c.h.b16 %v141
    %v372 = vunpack.c.l.b16 %v142
    %v373 = vunpack.c.h.b16 %v142
    %v374 = vunpack.c.l.b16 %v143
    %v375 = vunpack.c.h.b16 %v143
    %v376 = vunpack.c.l.b16 %v144
    %v377 = vunpack.c.h.b16 %v144
    %v378 = vunpack.c.l.b16 %v145
    %v379 = vunpack.c.h.b16 %v145
    %v380 = vunpack.c.l.b16 %v146
    %v381 = vunpack.c.h.b16 %v146
    %v382 = vunpack.c.l.b16 %v147
    %v383 = vunpack.c.h.b16 %v147
    %v384 = vunpack.c.l.b16 %v148
    %v385 = vunpack.c.h.b16 %v148
    %v386 = vunpack.c.l.b16 %v149
    %v387 = vunpack.c.h.b16 %v149
    %v388 = vunpack.c.l.b16 %v150
    %v389 = vunpack.c.h.b16 %v150
    %v390 = vunpack.c.l.b16 %v151
    %v391 = vunpack.c.h.b16 %v151
    %v392 = vunpack.c.l.b16 %v152
    %v393 = vunpack.c.h.b16 %v152
    %v394 = vunpack.c.l.b16 %v153
    %v395 = vunpack.c.h.b16 %v153
    %v396 = vunpack.c.l.b16 %v154
    %v397 = vunpack.c.h.b16 %v154
    %v398 = vunpack.c.l.b16 %v155
    %v399 = vunpack.c.h.b16 %v155
    %v400 = vunpack.c.l.b16 %v156
    %v401 = vunpack.c.h.b16 %v156
    %v402 = vunpack.c.l.b16 %v157
    %v403 = vunpack.c.h.b16 %v157
    %v404 = vunpack.c.l.b16 %v158
    %v405 = vunpack.c.h.b16 %v158
    %v406 = vunpack.c.l.b16 %v159
    %v407 = vunpack.c.h.b16 %v159
    %v408 = vunpack.c.l.b16 %v160
    %v409 = vunpack.c.h.b16 %v160
    %v410 = vpack.c.b16 %v350, %v346
    %v411 = vpack.c.b16 %v351, %v347
    %v412 = vpack.c.b16 %v352, %v348
    %v413 = vpack.c.b16 %v353, %v349
    %v414 = vpack.c.b16 %v358, %v354
    %v415 = vpack.c.b16 %v359, %v355
    %v416 = vpack.c.b16 %v360, %v356
    %v417 = vpack.c.b16 %v361, %v357
    %v418 = vpack.c.b16 %v366, %v362
    %v419 = vpack.c.b16 %v367, %v363
    %v420 = vpack.c.b16 %v368, %v364
    %v421 = vpack.c.b16 %v369, %v365
    %v422 = vpack.c.b16 %v374, %v370
    %v423 = vpack.c.b16 %v375, %v371
    %v424 = vpack.c.b16 %v376, %v372
    %v425 = vpack.c.b16 %v377, %v373
    %v426 = vpack.c.b16 %v382, %v378
    %v427 = vpack.c.b16 %v383, %v379
    %v428 = vpack.c.b16 %v384, %v380
    %v429 = vpack.c.b16 %v385, %v381
    %v430 = vpack.c.b16 %v390, %v386
    %v431 = vpack.c.b16 %v391, %v387
    %v432 = vpack.c.b16 %v392, %v388
    %v433 = vpack.c.b16 %v393, %v389
    %v434 = vpack.c.b16 %v398, %v394
    %v435 = vpack.c.b16 %v399, %v395
    %v436 = vpack.c.b16 %v400, %v396
    %v437 = vpack.c.b16 %v401, %v397
    %v438 = vpack.c.b16 %v406, %v402
    %v439 = vpack.c.b16 %v407, %v403
    %v440 = vpack.c.b16 %v408, %v404
    %v441 = vpack.c.b16 %v409, %v405
    %474 = vmatprep.subr.bf16.mxu0 %v411
    %475 = vmatpush1.bf16.msra.mxu0 %v410
    %476 = vmatprep.subr.bf16.mxu0 %v415
    %477 = vmatpush1.bf16.msra.mxu0 %v414
    %478 = vmatprep.subr.bf16.mxu0 %v419
    %479 = vmatpush1.bf16.msra.mxu0 %v418
    %480 = vmatprep.subr.bf16.mxu0 %v423
    %481 = vmatpush1.bf16.msra.mxu0 %v422
    %482 = vmatprep.subr.bf16.mxu0 %v427
    %483 = vmatpush1.bf16.msra.mxu0 %v426
    %484 = vmatprep.subr.bf16.mxu0 %v431
    %485 = vmatpush1.bf16.msra.mxu0 %v430
    %486 = vmatprep.subr.bf16.mxu0 %v435
    %487 = vmatpush1.bf16.msra.mxu0 %v434
    %488 = vmatprep.subr.bf16.mxu0 %v439
    %489 = vmatpush1.bf16.msra.mxu0 %v438
    %490 = vmatprep.subr.bf16.mxu0 0
    %491 = vmatpush1.bf16.msra.mxu0 0
    %492 = vmatprep.subr.bf16.mxu0 0
    %493 = vmatpush1.bf16.msra.mxu0 0
    %494 = vmatprep.subr.bf16.mxu0 0
    %495 = vmatpush1.bf16.msra.mxu0 0
    %496 = vmatprep.subr.bf16.mxu0 0
    %497 = vmatpush1.bf16.msra.mxu0 0
    %498 = vmatprep.subr.bf16.mxu0 0
    %499 = vmatpush1.bf16.msra.mxu0 0
    %500 = vmatprep.subr.bf16.mxu0 0
    %501 = vmatpush1.bf16.msra.mxu0 0
    %502 = vmatprep.subr.bf16.mxu0 0
    %503 = vmatpush1.bf16.msra.mxu0 0
    %504 = vmatprep.subr.bf16.mxu0 0
    %505 = vmatpush1.bf16.msra.mxu0 0
    %506 = vmatprep.mubr.bf16.mxu0 0
    %507 = vmatmul.mubr.bf16.gmra.mrb[0].mxu0 %v313
    %v508 = vpop.f32.mrb[0].mxu0
    %v509 = vadd.f32 0.0, %v508
    %v510 = vpop.f32.mrb[0].mxu0
    %v511 = vadd.f32 0.0, %v510
    %v512 = vpop.f32.mrb[0].mxu0
    %v513 = vpop.f32.mrb[0].mxu0
    %514 = vdwg.mxu0
    %515 = vmatprep.subr.bf16.mxu0 %v413
    %516 = vmatpush1.bf16.msra.mxu0 %v412
    %517 = vmatprep.subr.bf16.mxu0 %v417
    %518 = vmatpush1.bf16.msra.mxu0 %v416
    %519 = vmatprep.subr.bf16.mxu0 %v421
    %520 = vmatpush1.bf16.msra.mxu0 %v420
    %521 = vmatprep.subr.bf16.mxu0 %v425
    %522 = vmatpush1.bf16.msra.mxu0 %v424
    %523 = vmatprep.subr.bf16.mxu0 %v429
    %524 = vmatpush1.bf16.msra.mxu0 %v428
    %525 = vmatprep.subr.bf16.mxu0 %v433
    %526 = vmatpush1.bf16.msra.mxu0 %v432
    %527 = vmatprep.subr.bf16.mxu0 %v437
    %528 = vmatpush1.bf16.msra.mxu0 %v436
    %529 = vmatprep.subr.bf16.mxu0 %v441
    %530 = vmatpush1.bf16.msra.mxu0 %v440
    %531 = vmatprep.subr.bf16.mxu0 0
    %532 = vmatpush1.bf16.msra.mxu0 0
    %533 = vmatprep.subr.bf16.mxu0 0
    %534 = vmatpush1.bf16.msra.mxu0 0
    %535 = vmatprep.subr.bf16.mxu0 0
    %536 = vmatpush1.bf16.msra.mxu0 0
    %537 = vmatprep.subr.bf16.mxu0 0
    %538 = vmatpush1.bf16.msra.mxu0 0
    %539 = vmatprep.subr.bf16.mxu0 0
    %540 = vmatpush1.bf16.msra.mxu0 0
    %541 = vmatprep.subr.bf16.mxu0 0
    %542 = vmatpush1.bf16.msra.mxu0 0
    %543 = vmatprep.subr.bf16.mxu0 0
    %544 = vmatpush1.bf16.msra.mxu0 0
    %545 = vmatprep.subr.bf16.mxu0 0
    %546 = vmatpush1.bf16.msra.mxu0 0
    %547 = vmatprep.mubr.bf16.mxu0 0
    %548 = vmatmul.mubr.bf16.gmra.mrb[0].mxu0 %v313
    %v549 = vpop.f32.mrb[0].mxu0
    %v550 = vadd.f32 0.0, %v549
    %v551 = vpop.f32.mrb[0].mxu0
    %v552 = vadd.f32 0.0, %v551
    %v553 = vpop.f32.mrb[0].mxu0
    %v554 = vpop.f32.mrb[0].mxu0
    %555 = vdwg.mxu0
    %v560 = vrot.slane %v509, 6
    %v561 = vrot.slane %v511, 6
    %v562 = vrot.slane %v550, 6
    %v563 = vrot.slane %v552, 6
    %v568 = vadd.f32 %v247, %v560
    %v569 = vadd.f32 %v249, %v561
    %v570 = vadd.f32 %v290, %v562
    %v571 = vadd.f32 %v292, %v563
    %v572 = vtanh.pop %v568
    %v573 = vtanh.pop %v569
    %v574 = vtanh.pop %v570
    %v575 = vtanh.pop %v571
    %v576 = vmul.f32 %v572, 0.5
    %v577 = vadd.f32 %v576, 0.5
    %v578 = vmul.f32 %v573, 0.5
    %v579 = vadd.f32 %v578, 0.5
    %v580 = vmul.f32 %v574, 0.5
    %v581 = vadd.f32 %v580, 0.5
    %v583 = vrot.slane %v310, 6
    %v585 = vmul.f32 %v579, %v583
    %v586 = vmul.f32 %v577, %v575
    %v587 = vadd.f32 %v585, %v586
    %v588 = vtanh.pop %v587
    %v589 = vmul.f32 %v581, %v588
    %v590 = vpack.c.bf16 %v589, %v589
    %v592 = vrot.slane %v590, 1
    %594 = vmatprep.subr.bf16.mxu0 %v411
    %595 = vmatpush1.bf16.msra.mxu0 %v410
    %596 = vmatprep.subr.bf16.mxu0 %v415
    %597 = vmatpush1.bf16.msra.mxu0 %v414
    %598 = vmatprep.subr.bf16.mxu0 %v419
    %599 = vmatpush1.bf16.msra.mxu0 %v418
    %600 = vmatprep.subr.bf16.mxu0 %v423
    %601 = vmatpush1.bf16.msra.mxu0 %v422
    %602 = vmatprep.subr.bf16.mxu0 %v427
    %603 = vmatpush1.bf16.msra.mxu0 %v426
    %604 = vmatprep.subr.bf16.mxu0 %v431
    %605 = vmatpush1.bf16.msra.mxu0 %v430
    %606 = vmatprep.subr.bf16.mxu0 %v435
    %607 = vmatpush1.bf16.msra.mxu0 %v434
    %608 = vmatprep.subr.bf16.mxu0 %v439
    %609 = vmatpush1.bf16.msra.mxu0 %v438
    %610 = vmatprep.subr.bf16.mxu0 0
    %611 = vmatpush1.bf16.msra.mxu0 0
    %612 = vmatprep.subr.bf16.mxu0 0
    %613 = vmatpush1.bf16.msra.mxu0 0
    %614 = vmatprep.subr.bf16.mxu0 0
    %615 = vmatpush1.bf16.msra.mxu0 0
    %616 = vmatprep.subr.bf16.mxu0 0
    %617 = vmatpush1.bf16.msra.mxu0 0
    %618 = vmatprep.subr.bf16.mxu0 0
    %619 = vmatpush1.bf16.msra.mxu0 0
    %620 = vmatprep.subr.bf16.mxu0 0
    %621 = vmatpush1.bf16.msra.mxu0 0
    %622 = vmatprep.subr.bf16.mxu0 0
    %623 = vmatpush1.bf16.msra.mxu0 0
    %624 = vmatprep.subr.bf16.mxu0 0
    %625 = vmatpush1.bf16.msra.mxu0 0
    %626 = vmatprep.mubr.bf16.mxu0 0
    %627 = vmatmul.mubr.bf16.gmra.mrb[0].mxu0 %v592
    %v628 = vpop.f32.mrb[0].mxu0
    %v629 = vadd.f32 0.0, %v628
    %v630 = vpop.f32.mrb[0].mxu0
    %v631 = vadd.f32 0.0, %v630
    %v632 = vpop.f32.mrb[0].mxu0
    %v633 = vpop.f32.mrb[0].mxu0
    %634 = vdwg.mxu0
    %635 = vmatprep.subr.bf16.mxu0 %v413
    %636 = vmatpush1.bf16.msra.mxu0 %v412
    %637 = vmatprep.subr.bf16.mxu0 %v417
    %638 = vmatpush1.bf16.msra.mxu0 %v416
    %639 = vmatprep.subr.bf16.mxu0 %v421
    %640 = vmatpush1.bf16.msra.mxu0 %v420
    %641 = vmatprep.subr.bf16.mxu0 %v425
    %642 = vmatpush1.bf16.msra.mxu0 %v424
    %643 = vmatprep.subr.bf16.mxu0 %v429
    %644 = vmatpush1.bf16.msra.mxu0 %v428
    %645 = vmatprep.subr.bf16.mxu0 %v433
    %646 = vmatpush1.bf16.msra.mxu0 %v432
    %647 = vmatprep.subr.bf16.mxu0 %v437
    %648 = vmatpush1.bf16.msra.mxu0 %v436
    %649 = vmatprep.subr.bf16.mxu0 %v441
    %650 = vmatpush1.bf16.msra.mxu0 %v440
    %651 = vmatprep.subr.bf16.mxu0 0
    %652 = vmatpush1.bf16.msra.mxu0 0
    %653 = vmatprep.subr.bf16.mxu0 0
    %654 = vmatpush1.bf16.msra.mxu0 0
    %655 = vmatprep.subr.bf16.mxu0 0
    %656 = vmatpush1.bf16.msra.mxu0 0
    %657 = vmatprep.subr.bf16.mxu0 0
    %658 = vmatpush1.bf16.msra.mxu0 0
    %659 = vmatprep.subr.bf16.mxu0 0
    %660 = vmatpush1.bf16.msra.mxu0 0
    %661 = vmatprep.subr.bf16.mxu0 0
    %662 = vmatpush1.bf16.msra.mxu0 0
    %663 = vmatprep.subr.bf16.mxu0 0
    %664 = vmatpush1.bf16.msra.mxu0 0
    %665 = vmatprep.subr.bf16.mxu0 0
    %666 = vmatpush1.bf16.msra.mxu0 0
    %667 = vmatprep.mubr.bf16.mxu0 0
    %668 = vmatmul.mubr.bf16.gmra.mrb[0].mxu0 %v592
    %v669 = vpop.f32.mrb[0].mxu0
    %v670 = vadd.f32 0.0, %v669
    %v671 = vpop.f32.mrb[0].mxu0
    %v672 = vadd.f32 0.0, %v671
    %v673 = vpop.f32.mrb[0].mxu0
    %v674 = vpop.f32.mrb[0].mxu0
    %675 = vdwg.mxu0
    %v680 = vrot.slane %v629, 4
    %v681 = vrot.slane %v631, 4
    %v682 = vrot.slane %v670, 4
    %v683 = vrot.slane %v672, 4
    %v688 = vadd.f32 %v247, %v680
    %v689 = vadd.f32 %v249, %v681
    %v690 = vadd.f32 %v290, %v682
    %v691 = vadd.f32 %v292, %v683
    %v692 = vtanh.pop %v688
    %v693 = vtanh.pop %v689
    %v694 = vtanh.pop %v690
    %v695 = vtanh.pop %v691
    %v696 = vmul.f32 %v692, 0.5
    %v697 = vadd.f32 %v696, 0.5
    %v698 = vmul.f32 %v693, 0.5
    %v699 = vadd.f32 %v698, 0.5
    %v700 = vmul.f32 %v694, 0.5
    %v701 = vadd.f32 %v700, 0.5
    %v703 = vrot.slane %v587, 6
    %v705 = vmul.f32 %v699, %v703
    %v706 = vmul.f32 %v697, %v695
    %v707 = vadd.f32 %v705, %v706
    %v708 = vtanh.pop %v707
    %v709 = vmul.f32 %v701, %v708
    %v710 = vpack.c.bf16 %v709, %v709
    %v712 = vrot.slane %v710, 2
    %714 = vmatprep.subr.bf16.mxu0 %v411
    %715 = vmatpush1.bf16.msra.mxu0 %v410
    %716 = vmatprep.subr.bf16.mxu0 %v415
    %717 = vmatpush1.bf16.msra.mxu0 %v414
    %718 = vmatprep.subr.bf16.mxu0 %v419
    %719 = vmatpush1.bf16.msra.mxu0 %v418
    %720 = vmatprep.subr.bf16.mxu0 %v423
    %721 = vmatpush1.bf16.msra.mxu0 %v422
    %722 = vmatprep.subr.bf16.mxu0 %v427
    %723 = vmatpush1.bf16.msra.mxu0 %v426
    %724 = vmatprep.subr.bf16.mxu0 %v431
    %725 = vmatpush1.bf16.msra.mxu0 %v430
    %726 = vmatprep.subr.bf16.mxu0 %v435
    %727 = vmatpush1.bf16.msra.mxu0 %v434
    %728 = vmatprep.subr.bf16.mxu0 %v439
    %729 = vmatpush1.bf16.msra.mxu0 %v438
    %730 = vmatprep.subr.bf16.mxu0 0
    %731 = vmatpush1.bf16.msra.mxu0 0
    %732 = vmatprep.subr.bf16.mxu0 0
    %733 = vmatpush1.bf16.msra.mxu0 0
    %734 = vmatprep.subr.bf16.mxu0 0
    %735 = vmatpush1.bf16.msra.mxu0 0
    %736 = vmatprep.subr.bf16.mxu0 0
    %737 = vmatpush1.bf16.msra.mxu0 0
    %738 = vmatprep.subr.bf16.mxu0 0
    %739 = vmatpush1.bf16.msra.mxu0 0
    %740 = vmatprep.subr.bf16.mxu0 0
    %741 = vmatpush1.bf16.msra.mxu0 0
    %742 = vmatprep.subr.bf16.mxu0 0
    %743 = vmatpush1.bf16.msra.mxu0 0
    %744 = vmatprep.subr.bf16.mxu0 0
    %745 = vmatpush1.bf16.msra.mxu0 0
    %746 = vmatprep.mubr.bf16.mxu0 0
    %747 = vmatmul.mubr.bf16.gmra.mrb[0].mxu0 %v712
    %v748 = vpop.f32.mrb[0].mxu0
    %v749 = vadd.f32 0.0, %v748
    %v750 = vpop.f32.mrb[0].mxu0
    %v751 = vadd.f32 0.0, %v750
    %v752 = vpop.f32.mrb[0].mxu0
    %v753 = vpop.f32.mrb[0].mxu0
    %754 = vdwg.mxu0
    %755 = vmatprep.subr.bf16.mxu0 %v413
    %756 = vmatpush1.bf16.msra.mxu0 %v412
    %757 = vmatprep.subr.bf16.mxu0 %v417
    %758 = vmatpush1.bf16.msra.mxu0 %v416
    %759 = vmatprep.subr.bf16.mxu0 %v421
    %760 = vmatpush1.bf16.msra.mxu0 %v420
    %761 = vmatprep.subr.bf16.mxu0 %v425
    %762 = vmatpush1.bf16.msra.mxu0 %v424
    %763 = vmatprep.subr.bf16.mxu0 %v429
    %764 = vmatpush1.bf16.msra.mxu0 %v428
    %765 = vmatprep.subr.bf16.mxu0 %v433
    %766 = vmatpush1.bf16.msra.mxu0 %v432
    %767 = vmatprep.subr.bf16.mxu0 %v437
    %768 = vmatpush1.bf16.msra.mxu0 %v436
    %769 = vmatprep.subr.bf16.mxu0 %v441
    %770 = vmatpush1.bf16.msra.mxu0 %v440
    %771 = vmatprep.subr.bf16.mxu0 0
    %772 = vmatpush1.bf16.msra.mxu0 0
    %773 = vmatprep.subr.bf16.mxu0 0
    %774 = vmatpush1.bf16.msra.mxu0 0
    %775 = vmatprep.subr.bf16.mxu0 0
    %776 = vmatpush1.bf16.msra.mxu0 0
    %777 = vmatprep.subr.bf16.mxu0 0
    %778 = vmatpush1.bf16.msra.mxu0 0
    %779 = vmatprep.subr.bf16.mxu0 0
    %780 = vmatpush1.bf16.msra.mxu0 0
    %781 = vmatprep.subr.bf16.mxu0 0
    %782 = vmatpush1.bf16.msra.mxu0 0
    %783 = vmatprep.subr.bf16.mxu0 0
    %784 = vmatpush1.bf16.msra.mxu0 0
    %785 = vmatprep.subr.bf16.mxu0 0
    %786 = vmatpush1.bf16.msra.mxu0 0
    %787 = vmatprep.mubr.bf16.mxu0 0
    %788 = vmatmul.mubr.bf16.gmra.mrb[0].mxu0 %v712
    %v789 = vpop.f32.mrb[0].mxu0
    %v790 = vadd.f32 0.0, %v789
    %v791 = vpop.f32.mrb[0].mxu0
    %v792 = vadd.f32 0.0, %v791
    %v793 = vpop.f32.mrb[0].mxu0
    %v794 = vpop.f32.mrb[0].mxu0
    %795 = vdwg.mxu0
    %v800 = vrot.slane %v749, 2
    %v801 = vrot.slane %v751, 2
    %v802 = vrot.slane %v790, 2
    %v803 = vrot.slane %v792, 2
    %v808 = vadd.f32 %v247, %v800
    %v809 = vadd.f32 %v249, %v801
    %v810 = vadd.f32 %v290, %v802
    %v811 = vadd.f32 %v292, %v803
    %v812 = vtanh.pop %v808
    %v813 = vtanh.pop %v809
    %v814 = vtanh.pop %v810
    %v815 = vtanh.pop %v811
    %v816 = vmul.f32 %v812, 0.5
    %v817 = vadd.f32 %v816, 0.5
    %v818 = vmul.f32 %v813, 0.5
    %v819 = vadd.f32 %v818, 0.5
    %v820 = vmul.f32 %v814, 0.5
    %v821 = vadd.f32 %v820, 0.5
    %v823 = vrot.slane %v707, 6
    %v825 = vmul.f32 %v819, %v823
    %v826 = vmul.f32 %v817, %v815
    %v827 = vadd.f32 %v825, %v826
    %v828 = vtanh.pop %v827
    %v829 = vmul.f32 %v821, %v828
    %v830 = vpack.c.bf16 %v829, %v829
    %v832 = vrot.slane %v830, 3
    %834 = vmatprep.subr.bf16.mxu0 %v411
    %835 = vmatpush1.bf16.msra.mxu0 %v410
    %836 = vmatprep.subr.bf16.mxu0 %v415
    %837 = vmatpush1.bf16.msra.mxu0 %v414
    %838 = vmatprep.subr.bf16.mxu0 %v419
    %839 = vmatpush1.bf16.msra.mxu0 %v418
    %840 = vmatprep.subr.bf16.mxu0 %v423
    %841 = vmatpush1.bf16.msra.mxu0 %v422
    %842 = vmatprep.subr.bf16.mxu0 %v427
    %843 = vmatpush1.bf16.msra.mxu0 %v426
    %844 = vmatprep.subr.bf16.mxu0 %v431
    %845 = vmatpush1.bf16.msra.mxu0 %v430
    %846 = vmatprep.subr.bf16.mxu0 %v435
    %847 = vmatpush1.bf16.msra.mxu0 %v434
    %848 = vmatprep.subr.bf16.mxu0 %v439
    %849 = vmatpush1.bf16.msra.mxu0 %v438
    %850 = vmatprep.subr.bf16.mxu0 0
    %851 = vmatpush1.bf16.msra.mxu0 0
    %852 = vmatprep.subr.bf16.mxu0 0
    %853 = vmatpush1.bf16.msra.mxu0 0
    %854 = vmatprep.subr.bf16.mxu0 0
    %855 = vmatpush1.bf16.msra.mxu0 0
    %856 = vmatprep.subr.bf16.mxu0 0
    %857 = vmatpush1.bf16.msra.mxu0 0
    %858 = vmatprep.subr.bf16.mxu0 0
    %859 = vmatpush1.bf16.msra.mxu0 0
    %860 = vmatprep.subr.bf16.mxu0 0
    %861 = vmatpush1.bf16.msra.mxu0 0
    %862 = vmatprep.subr.bf16.mxu0 0
    %863 = vmatpush1.bf16.msra.mxu0 0
    %864 = vmatprep.subr.bf16.mxu0 0
    %865 = vmatpush1.bf16.msra.mxu0 0
    %866 = vmatprep.mubr.bf16.mxu0 0
    %867 = vmatmul.mubr.bf16.gmra.mrb[0].mxu0 %v832
    %v868 = vpop.f32.mrb[0].mxu0
    %v869 = vadd.f32 0.0, %v868
    %v870 = vpop.f32.mrb[0].mxu0
    %v871 = vadd.f32 0.0, %v870
    %v872 = vpop.f32.mrb[0].mxu0
    %v873 = vpop.f32.mrb[0].mxu0
    %874 = vdwg.mxu0
    %875 = vmatprep.subr.bf16.mxu0 %v413
    %876 = vmatpush1.bf16.msra.mxu0 %v412
    %877 = vmatprep.subr.bf16.mxu0 %v417
    %878 = vmatpush1.bf16.msra.mxu0 %v416
    %879 = vmatprep.subr.bf16.mxu0 %v421
    %880 = vmatpush1.bf16.msra.mxu0 %v420
    %881 = vmatprep.subr.bf16.mxu0 %v425
    %882 = vmatpush1.bf16.msra.mxu0 %v424
    %883 = vmatprep.subr.bf16.mxu0 %v429
    %884 = vmatpush1.bf16.msra.mxu0 %v428
    %885 = vmatprep.subr.bf16.mxu0 %v433
    %886 = vmatpush1.bf16.msra.mxu0 %v432
    %887 = vmatprep.subr.bf16.mxu0 %v437
    %888 = vmatpush1.bf16.msra.mxu0 %v436
    %889 = vmatprep.subr.bf16.mxu0 %v441
    %890 = vmatpush1.bf16.msra.mxu0 %v440
    %891 = vmatprep.subr.bf16.mxu0 0
    %892 = vmatpush1.bf16.msra.mxu0 0
    %893 = vmatprep.subr.bf16.mxu0 0
    %894 = vmatpush1.bf16.msra.mxu0 0
    %895 = vmatprep.subr.bf16.mxu0 0
    %896 = vmatpush1.bf16.msra.mxu0 0
    %897 = vmatprep.subr.bf16.mxu0 0
    %898 = vmatpush1.bf16.msra.mxu0 0
    %899 = vmatprep.subr.bf16.mxu0 0
    %900 = vmatpush1.bf16.msra.mxu0 0
    %901 = vmatprep.subr.bf16.mxu0 0
    %902 = vmatpush1.bf16.msra.mxu0 0
    %903 = vmatprep.subr.bf16.mxu0 0
    %904 = vmatpush1.bf16.msra.mxu0 0
    %905 = vmatprep.subr.bf16.mxu0 0
    %906 = vmatpush1.bf16.msra.mxu0 0
    %907 = vmatprep.mubr.bf16.mxu0 0
    %908 = vmatmul.mubr.bf16.gmra.mrb[0].mxu0 %v832
    %v909 = vpop.f32.mrb[0].mxu0
    %v910 = vadd.f32 0.0, %v909
    %v911 = vpop.f32.mrb[0].mxu0
    %v912 = vadd.f32 0.0, %v911
    %v913 = vpop.f32.mrb[0].mxu0
    %v914 = vpop.f32.mrb[0].mxu0
    %915 = vdwg.mxu0
    %v916 = vadd.f32 %v251, %v869
    %v917 = vadd.f32 %v253, %v871
    %v918 = vadd.f32 %v294, %v910
    %v919 = vadd.f32 %v296, %v912
    %v920 = vtanh.pop %v916
    %v921 = vtanh.pop %v917
    %v922 = vtanh.pop %v918
    %v923 = vtanh.pop %v919
    %v924 = vmul.f32 %v920, 0.5
    %v925 = vadd.f32 %v924, 0.5
    %v926 = vmul.f32 %v921, 0.5
    %v927 = vadd.f32 %v926, 0.5
    %v928 = vmul.f32 %v922, 0.5
    %v929 = vadd.f32 %v928, 0.5
    %v931 = vrot.slane %v827, 6
    %v933 = vmul.f32 %v927, %v931
    %v934 = vmul.f32 %v925, %v923
    %v935 = vadd.f32 %v933, %v934
    %v936 = vtanh.pop %v935
    %v937 = vmul.f32 %v929, %v936
    %v938 = vpack.c.bf16 %v937, %v937
    %939 = vmatprep.subr.bf16.mxu0 %v411
    %940 = vmatpush1.bf16.msra.mxu0 %v410
    %941 = vmatprep.subr.bf16.mxu0 %v415
    %942 = vmatpush1.bf16.msra.mxu0 %v414
    %943 = vmatprep.subr.bf16.mxu0 %v419
    %944 = vmatpush1.bf16.msra.mxu0 %v418
    %945 = vmatprep.subr.bf16.mxu0 %v423
    %946 = vmatpush1.bf16.msra.mxu0 %v422
    %947 = vmatprep.subr.bf16.mxu0 %v427
    %948 = vmatpush1.bf16.msra.mxu0 %v426
    %949 = vmatprep.subr.bf16.mxu0 %v431
    %950 = vmatpush1.bf16.msra.mxu0 %v430
    %951 = vmatprep.subr.bf16.mxu0 %v435
    %952 = vmatpush1.bf16.msra.mxu0 %v434
    %953 = vmatprep.subr.bf16.mxu0 %v439
    %954 = vmatpush1.bf16.msra.mxu0 %v438
    %955 = vmatprep.subr.bf16.mxu0 0
    %956 = vmatpush1.bf16.msra.mxu0 0
    %957 = vmatprep.subr.bf16.mxu0 0
    %958 = vmatpush1.bf16.msra.mxu0 0
    %959 = vmatprep.subr.bf16.mxu0 0
    %960 = vmatpush1.bf16.msra.mxu0 0
    %961 = vmatprep.subr.bf16.mxu0 0
    %962 = vmatpush1.bf16.msra.mxu0 0
    %963 = vmatprep.subr.bf16.mxu0 0
    %964 = vmatpush1.bf16.msra.mxu0 0
    %965 = vmatprep.subr.bf16.mxu0 0
    %966 = vmatpush1.bf16.msra.mxu0 0
    %967 = vmatprep.subr.bf16.mxu0 0
    %968 = vmatpush1.bf16.msra.mxu0 0
    %969 = vmatprep.subr.bf16.mxu0 0
    %970 = vmatpush1.bf16.msra.mxu0 0
    %971 = vmatprep.mubr.bf16.mxu0 0
    %972 = vmatmul.mubr.bf16.gmra.mrb[0].mxu0 %v938
    %v973 = vpop.f32.mrb[0].mxu0
    %v974 = vadd.f32 0.0, %v973
    %v975 = vpop.f32.mrb[0].mxu0
    %v976 = vadd.f32 0.0, %v975
    %v977 = vpop.f32.mrb[0].mxu0
    %v978 = vpop.f32.mrb[0].mxu0
    %979 = vdwg.mxu0
    %980 = vmatprep.subr.bf16.mxu0 %v413
    %981 = vmatpush1.bf16.msra.mxu0 %v412
    %982 = vmatprep.subr.bf16.mxu0 %v417
    %983 = vmatpush1.bf16.msra.mxu0 %v416
    %984 = vmatprep.subr.bf16.mxu0 %v421
    %985 = vmatpush1.bf16.msra.mxu0 %v420
    %986 = vmatprep.subr.bf16.mxu0 %v425
    %987 = vmatpush1.bf16.msra.mxu0 %v424
    %988 = vmatprep.subr.bf16.mxu0 %v429
    %989 = vmatpush1.bf16.msra.mxu0 %v428
    %990 = vmatprep.subr.bf16.mxu0 %v433
    %991 = vmatpush1.bf16.msra.mxu0 %v432
    %992 = vmatprep.subr.bf16.mxu0 %v437
    %993 = vmatpush1.bf16.msra.mxu0 %v436
    %994 = vmatprep.subr.bf16.mxu0 %v441
    %995 = vmatpush1.bf16.msra.mxu0 %v440
    %996 = vmatprep.subr.bf16.mxu0 0
    %997 = vmatpush1.bf16.msra.mxu0 0
    %998 = vmatprep.subr.bf16.mxu0 0
    %999 = vmatpush1.bf16.msra.mxu0 0
    %1000 = vmatprep.subr.bf16.mxu0 0
    %1001 = vmatpush1.bf16.msra.mxu0 0
    %1002 = vmatprep.subr.bf16.mxu0 0
    %1003 = vmatpush1.bf16.msra.mxu0 0
    %1004 = vmatprep.subr.bf16.mxu0 0
    %1005 = vmatpush1.bf16.msra.mxu0 0
    %1006 = vmatprep.subr.bf16.mxu0 0
    %1007 = vmatpush1.bf16.msra.mxu0 0
    %1008 = vmatprep.subr.bf16.mxu0 0
    %1009 = vmatpush1.bf16.msra.mxu0 0
    %1010 = vmatprep.subr.bf16.mxu0 0
    %1011 = vmatpush1.bf16.msra.mxu0 0
    %1012 = vmatprep.mubr.bf16.mxu0 0
    %1013 = vmatmul.mubr.bf16.gmra.mrb[0].mxu0 %v938
    %v1014 = vpop.f32.mrb[0].mxu0
    %v1015 = vadd.f32 0.0, %v1014
    %v1016 = vpop.f32.mrb[0].mxu0
    %v1017 = vadd.f32 0.0, %v1016
    %v1018 = vpop.f32.mrb[0].mxu0
    %v1019 = vpop.f32.mrb[0].mxu0
    %1020 = vdwg.mxu0
    %v1025 = vrot.slane %v974, 6
    %v1026 = vrot.slane %v976, 6
    %v1027 = vrot.slane %v1015, 6
    %v1028 = vrot.slane %v1017, 6
    %v1033 = vadd.f32 %v251, %v1025
    %v1034 = vadd.f32 %v253, %v1026
    %v1035 = vadd.f32 %v294, %v1027
    %v1036 = vadd.f32 %v296, %v1028
    %v1037 = vtanh.pop %v1033
    %v1038 = vtanh.pop %v1034
    %v1039 = vtanh.pop %v1035
    %v1040 = vtanh.pop %v1036
    %v1041 = vmul.f32 %v1037, 0.5
    %v1042 = vadd.f32 %v1041, 0.5
    %v1043 = vmul.f32 %v1038, 0.5
    %v1044 = vadd.f32 %v1043, 0.5
    %v1045 = vmul.f32 %v1039, 0.5
    %v1046 = vadd.f32 %v1045, 0.5
    %v1048 = vrot.slane %v935, 6
    %v1050 = vmul.f32 %v1044, %v1048
    %v1051 = vmul.f32 %v1042, %v1040
    %v1052 = vadd.f32 %v1050, %v1051
    %v1053 = vtanh.pop %v1052
    %v1054 = vmul.f32 %v1046, %v1053
    %v1055 = vpack.c.bf16 %v1054, %v1054
    %v1057 = vrot.slane %v1055, 1
    %1059 = vmatprep.subr.bf16.mxu0 %v411
    %1060 = vmatpush1.bf16.msra.mxu0 %v410
    %1061 = vmatprep.subr.bf16.mxu0 %v415
    %1062 = vmatpush1.bf16.msra.mxu0 %v414
    %1063 = vmatprep.subr.bf16.mxu0 %v419
    %1064 = vmatpush1.bf16.msra.mxu0 %v418
    %1065 = vmatprep.subr.bf16.mxu0 %v423
    %1066 = vmatpush1.bf16.msra.mxu0 %v422
    %1067 = vmatprep.subr.bf16.mxu0 %v427
    %1068 = vmatpush1.bf16.msra.mxu0 %v426
    %1069 = vmatprep.subr.bf16.mxu0 %v431
    %1070 = vmatpush1.bf16.msra.mxu0 %v430
    %1071 = vmatprep.subr.bf16.mxu0 %v435
    %1072 = vmatpush1.bf16.msra.mxu0 %v434
    %1073 = vmatprep.subr.bf16.mxu0 %v439
    %1074 = vmatpush1.bf16.msra.mxu0 %v438
    %1075 = vmatprep.subr.bf16.mxu0 0
    %1076 = vmatpush1.bf16.msra.mxu0 0
    %1077 = vmatprep.subr.bf16.mxu0 0
    %1078 = vmatpush1.bf16.msra.mxu0 0
    %1079 = vmatprep.subr.bf16.mxu0 0
    %1080 = vmatpush1.bf16.msra.mxu0 0
    %1081 = vmatprep.subr.bf16.mxu0 0
    %1082 = vmatpush1.bf16.msra.mxu0 0
    %1083 = vmatprep.subr.bf16.mxu0 0
    %1084 = vmatpush1.bf16.msra.mxu0 0
    %1085 = vmatprep.subr.bf16.mxu0 0
    %1086 = vmatpush1.bf16.msra.mxu0 0
    %1087 = vmatprep.subr.bf16.mxu0 0
    %1088 = vmatpush1.bf16.msra.mxu0 0
    %1089 = vmatprep.subr.bf16.mxu0 0
    %1090 = vmatpush1.bf16.msra.mxu0 0
    %1091 = vmatprep.mubr.bf16.mxu0 0
    %1092 = vmatmul.mubr.bf16.gmra.mrb[0].mxu0 %v1057
    %v1093 = vpop.f32.mrb[0].mxu0
    %v1094 = vadd.f32 0.0, %v1093
    %v1095 = vpop.f32.mrb[0].mxu0
    %v1096 = vadd.f32 0.0, %v1095
    %v1097 = vpop.f32.mrb[0].mxu0
    %v1098 = vpop.f32.mrb[0].mxu0
    %1099 = vdwg.mxu0
    %1100 = vmatprep.subr.bf16.mxu0 %v413
    %1101 = vmatpush1.bf16.msra.mxu0 %v412
    %1102 = vmatprep.subr.bf16.mxu0 %v417
    %1103 = vmatpush1.bf16.msra.mxu0 %v416
    %1104 = vmatprep.subr.bf16.mxu0 %v421
    %1105 = vmatpush1.bf16.msra.mxu0 %v420
    %1106 = vmatprep.subr.bf16.mxu0 %v425
    %1107 = vmatpush1.bf16.msra.mxu0 %v424
    %1108 = vmatprep.subr.bf16.mxu0 %v429
    %1109 = vmatpush1.bf16.msra.mxu0 %v428
    %1110 = vmatprep.subr.bf16.mxu0 %v433
    %1111 = vmatpush1.bf16.msra.mxu0 %v432
    %1112 = vmatprep.subr.bf16.mxu0 %v437
    %1113 = vmatpush1.bf16.msra.mxu0 %v436
    %1114 = vmatprep.subr.bf16.mxu0 %v441
    %1115 = vmatpush1.bf16.msra.mxu0 %v440
    %1116 = vmatprep.subr.bf16.mxu0 0
    %1117 = vmatpush1.bf16.msra.mxu0 0
    %1118 = vmatprep.subr.bf16.mxu0 0
    %1119 = vmatpush1.bf16.msra.mxu0 0
    %1120 = vmatprep.subr.bf16.mxu0 0
    %1121 = vmatpush1.bf16.msra.mxu0 0
    %1122 = vmatprep.subr.bf16.mxu0 0
    %1123 = vmatpush1.bf16.msra.mxu0 0
    %1124 = vmatprep.subr.bf16.mxu0 0
    %1125 = vmatpush1.bf16.msra.mxu0 0
    %1126 = vmatprep.subr.bf16.mxu0 0
    %1127 = vmatpush1.bf16.msra.mxu0 0
    %1128 = vmatprep.subr.bf16.mxu0 0
    %1129 = vmatpush1.bf16.msra.mxu0 0
    %1130 = vmatprep.subr.bf16.mxu0 0
    %1131 = vmatpush1.bf16.msra.mxu0 0
    %1132 = vmatprep.mubr.bf16.mxu0 0
    %1133 = vmatmul.mubr.bf16.gmra.mrb[0].mxu0 %v1057
    %v1134 = vpop.f32.mrb[0].mxu0
    %v1135 = vadd.f32 0.0, %v1134
    %v1136 = vpop.f32.mrb[0].mxu0
    %v1137 = vadd.f32 0.0, %v1136
    %v1138 = vpop.f32.mrb[0].mxu0
    %v1139 = vpop.f32.mrb[0].mxu0
    %1140 = vdwg.mxu0
    %v1145 = vrot.slane %v1094, 4
    %v1146 = vrot.slane %v1096, 4
    %v1147 = vrot.slane %v1135, 4
    %v1148 = vrot.slane %v1137, 4
    %v1153 = vadd.f32 %v251, %v1145
    %v1154 = vadd.f32 %v253, %v1146
    %v1155 = vadd.f32 %v294, %v1147
    %v1156 = vadd.f32 %v296, %v1148
    %v1157 = vtanh.pop %v1153
    %v1158 = vtanh.pop %v1154
    %v1159 = vtanh.pop %v1155
    %v1160 = vtanh.pop %v1156
    %v1161 = vmul.f32 %v1157, 0.5
    %v1162 = vadd.f32 %v1161, 0.5
    %v1163 = vmul.f32 %v1158, 0.5
    %v1164 = vadd.f32 %v1163, 0.5
    %v1165 = vmul.f32 %v1159, 0.5
    %v1166 = vadd.f32 %v1165, 0.5
    %v1168 = vrot.slane %v1052, 6
    %v1170 = vmul.f32 %v1164, %v1168
    %v1171 = vmul.f32 %v1162, %v1160
    %v1172 = vadd.f32 %v1170, %v1171
    %v1173 = vtanh.pop %v1172
    %v1174 = vmul.f32 %v1166, %v1173
    %v1175 = vpack.c.bf16 %v1174, %v1174
    %v1177 = vrot.slane %v1175, 2
    %1179 = vmatprep.subr.bf16.mxu0 %v411
    %1180 = vmatpush1.bf16.msra.mxu0 %v410
    %1181 = vmatprep.subr.bf16.mxu0 %v415
    %1182 = vmatpush1.bf16.msra.mxu0 %v414
    %1183 = vmatprep.subr.bf16.mxu0 %v419
    %1184 = vmatpush1.bf16.msra.mxu0 %v418
    %1185 = vmatprep.subr.bf16.mxu0 %v423
    %1186 = vmatpush1.bf16.msra.mxu0 %v422
    %1187 = vmatprep.subr.bf16.mxu0 %v427
    %1188 = vmatpush1.bf16.msra.mxu0 %v426
    %1189 = vmatprep.subr.bf16.mxu0 %v431
    %1190 = vmatpush1.bf16.msra.mxu0 %v430
    %1191 = vmatprep.subr.bf16.mxu0 %v435
    %1192 = vmatpush1.bf16.msra.mxu0 %v434
    %1193 = vmatprep.subr.bf16.mxu0 %v439
    %1194 = vmatpush1.bf16.msra.mxu0 %v438
    %1195 = vmatprep.subr.bf16.mxu0 0
    %1196 = vmatpush1.bf16.msra.mxu0 0
    %1197 = vmatprep.subr.bf16.mxu0 0
    %1198 = vmatpush1.bf16.msra.mxu0 0
    %1199 = vmatprep.subr.bf16.mxu0 0
    %1200 = vmatpush1.bf16.msra.mxu0 0
    %1201 = vmatprep.subr.bf16.mxu0 0
    %1202 = vmatpush1.bf16.msra.mxu0 0
    %1203 = vmatprep.subr.bf16.mxu0 0
    %1204 = vmatpush1.bf16.msra.mxu0 0
    %1205 = vmatprep.subr.bf16.mxu0 0
    %1206 = vmatpush1.bf16.msra.mxu0 0
    %1207 = vmatprep.subr.bf16.mxu0 0
    %1208 = vmatpush1.bf16.msra.mxu0 0
    %1209 = vmatprep.subr.bf16.mxu0 0
    %1210 = vmatpush1.bf16.msra.mxu0 0
    %1211 = vmatprep.mubr.bf16.mxu0 0
    %1212 = vmatmul.mubr.bf16.gmra.mrb[0].mxu0 %v1177
    %v1213 = vpop.f32.mrb[0].mxu0
    %v1214 = vadd.f32 0.0, %v1213
    %v1215 = vpop.f32.mrb[0].mxu0
    %v1216 = vadd.f32 0.0, %v1215
    %v1217 = vpop.f32.mrb[0].mxu0
    %v1218 = vpop.f32.mrb[0].mxu0
    %1219 = vdwg.mxu0
    %1220 = vmatprep.subr.bf16.mxu0 %v413
    %1221 = vmatpush1.bf16.msra.mxu0 %v412
    %1222 = vmatprep.subr.bf16.mxu0 %v417
    %1223 = vmatpush1.bf16.msra.mxu0 %v416
    %1224 = vmatprep.subr.bf16.mxu0 %v421
    %1225 = vmatpush1.bf16.msra.mxu0 %v420
    %1226 = vmatprep.subr.bf16.mxu0 %v425
    %1227 = vmatpush1.bf16.msra.mxu0 %v424
    %1228 = vmatprep.subr.bf16.mxu0 %v429
    %1229 = vmatpush1.bf16.msra.mxu0 %v428
    %1230 = vmatprep.subr.bf16.mxu0 %v433
    %1231 = vmatpush1.bf16.msra.mxu0 %v432
    %1232 = vmatprep.subr.bf16.mxu0 %v437
    %1233 = vmatpush1.bf16.msra.mxu0 %v436
    %1234 = vmatprep.subr.bf16.mxu0 %v441
    %1235 = vmatpush1.bf16.msra.mxu0 %v440
    %1236 = vmatprep.subr.bf16.mxu0 0
    %1237 = vmatpush1.bf16.msra.mxu0 0
    %1238 = vmatprep.subr.bf16.mxu0 0
    %1239 = vmatpush1.bf16.msra.mxu0 0
    %1240 = vmatprep.subr.bf16.mxu0 0
    %1241 = vmatpush1.bf16.msra.mxu0 0
    %1242 = vmatprep.subr.bf16.mxu0 0
    %1243 = vmatpush1.bf16.msra.mxu0 0
    %1244 = vmatprep.subr.bf16.mxu0 0
    %1245 = vmatpush1.bf16.msra.mxu0 0
    %1246 = vmatprep.subr.bf16.mxu0 0
    %1247 = vmatpush1.bf16.msra.mxu0 0
    %1248 = vmatprep.subr.bf16.mxu0 0
    %1249 = vmatpush1.bf16.msra.mxu0 0
    %1250 = vmatprep.subr.bf16.mxu0 0
    %1251 = vmatpush1.bf16.msra.mxu0 0
    %1252 = vmatprep.mubr.bf16.mxu0 0
    %1253 = vmatmul.mubr.bf16.gmra.mrb[0].mxu0 %v1177
    %v1254 = vpop.f32.mrb[0].mxu0
    %v1255 = vadd.f32 0.0, %v1254
    %v1256 = vpop.f32.mrb[0].mxu0
    %v1257 = vadd.f32 0.0, %v1256
    %v1258 = vpop.f32.mrb[0].mxu0
    %v1259 = vpop.f32.mrb[0].mxu0
    %1260 = vdwg.mxu0
    %v1265 = vrot.slane %v1214, 2
    %v1266 = vrot.slane %v1216, 2
    %v1267 = vrot.slane %v1255, 2
    %v1268 = vrot.slane %v1257, 2
    %v1273 = vadd.f32 %v251, %v1265
    %v1274 = vadd.f32 %v253, %v1266
    %v1275 = vadd.f32 %v294, %v1267
    %v1276 = vadd.f32 %v296, %v1268
    %v1277 = vtanh.pop %v1273
    %v1278 = vtanh.pop %v1274
    %v1279 = vtanh.pop %v1275
    %v1280 = vtanh.pop %v1276
    %v1281 = vmul.f32 %v1277, 0.5
    %v1282 = vadd.f32 %v1281, 0.5
    %v1283 = vmul.f32 %v1278, 0.5
    %v1284 = vadd.f32 %v1283, 0.5
    %v1285 = vmul.f32 %v1279, 0.5
    %v1286 = vadd.f32 %v1285, 0.5
    %v1288 = vrot.slane %v1172, 6
    %v1290 = vmul.f32 %v1284, %v1288
    %v1291 = vmul.f32 %v1282, %v1280
    %v1292 = vadd.f32 %v1290, %v1291
    %v1293 = vtanh.pop %v1292
    %v1294 = vmul.f32 %v1286, %v1293
    %vm1295 = vcmask 1041408
    %v1296 = vsel %vm1295, %v312, %v589
    %vm1297 = vcmask 1043456
    %v1298 = vsel %vm1297, %v1296, %v709
    %vm1299 = vcmask 1045504
    %v1300 = vsel %vm1299, %v1298, %v829
    %v1301 = vsel %vm1295, %v937, %v1054
    %v1302 = vsel %vm1297, %v1301, %v1174
    %v1303 = vsel %vm1299, %v1302, %v1294
    %v1304 = vpack.c.bf16 %v1303, %v1300
    %s1305 = smul.u32 4, 16
    %s1306 = smul.u32 %s1305, 4
    %s1307 = sshll.u32 %s1306, 4
    %1308 = dma.done [#allocation5], %s1307
    %s1309 = sshll.u32 %s1306, 4
    %1310 = dma.done %s76, %s1309
    %v1311 = vld [vmem:[#allocation2] sm:$0xff]
    %v1312 = vld [vmem:[#allocation2 + $0x8] sm:$0xff]
    %v1313 = vld [vmem:[#allocation2 + $0x10] sm:$0xff]
    %v1314 = vld [vmem:[#allocation2 + $0x18] sm:$0xff]
    %v1315 = vld [vmem:[#allocation2 + $0x20] sm:$0xff]
    %v1316 = vld [vmem:[#allocation2 + $0x28] sm:$0xff]
    %v1317 = vld [vmem:[#allocation2 + $0x30] sm:$0xff]
    %v1318 = vld [vmem:[#allocation2 + $0x38] sm:$0xff]
    %v1319 = vld [vmem:[#allocation2 + $0x40] sm:$0xff]
    %v1320 = vld [vmem:[#allocation2 + $0x48] sm:$0xff]
    %v1321 = vld [vmem:[#allocation2 + $0x50] sm:$0xff]
    %v1322 = vld [vmem:[#allocation2 + $0x58] sm:$0xff]
    %v1323 = vld [vmem:[#allocation2 + $0x60] sm:$0xff]
    %v1324 = vld [vmem:[#allocation2 + $0x68] sm:$0xff]
    %v1325 = vld [vmem:[#allocation2 + $0x70] sm:$0xff]
    %v1326 = vld [vmem:[#allocation2 + $0x78] sm:$0xff]
    %v1327 = vld [vmem:[#allocation2 + $0x80] sm:$0xff]
    %v1328 = vld [vmem:[#allocation2 + $0x88] sm:$0xff]
    %v1329 = vld [vmem:[#allocation2 + $0x90] sm:$0xff]
    %v1330 = vld [vmem:[#allocation2 + $0x98] sm:$0xff]
    %v1331 = vld [vmem:[#allocation2 + $0xa0] sm:$0xff]
    %v1332 = vld [vmem:[#allocation2 + $0xa8] sm:$0xff]
    %v1333 = vld [vmem:[#allocation2 + $0xb0] sm:$0xff]
    %v1334 = vld [vmem:[#allocation2 + $0xb8] sm:$0xff]
    %v1335 = vld [vmem:[#allocation2 + $0xc0] sm:$0xff]
    %v1336 = vld [vmem:[#allocation2 + $0xc8] sm:$0xff]
    %v1337 = vld [vmem:[#allocation2 + $0xd0] sm:$0xff]
    %v1338 = vld [vmem:[#allocation2 + $0xd8] sm:$0xff]
    %v1339 = vld [vmem:[#allocation2 + $0xe0] sm:$0xff]
    %v1340 = vld [vmem:[#allocation2 + $0xe8] sm:$0xff]
    %v1341 = vld [vmem:[#allocation2 + $0xf0] sm:$0xff]
    %v1342 = vld [vmem:[#allocation2 + $0xf8] sm:$0xff]
    %v1343 = vld [vmem:[#allocation3] sm:$0xff]
    %v1344 = vld [vmem:[#allocation3 + $0x8] sm:$0xff]
    %v1345 = vld [vmem:[#allocation3 + $0x10] sm:$0xff]
    %v1346 = vld [vmem:[#allocation3 + $0x18] sm:$0xff]
    %v1347 = vld [vmem:[#allocation3 + $0x20] sm:$0xff]
    %v1348 = vld [vmem:[#allocation3 + $0x28] sm:$0xff]
    %v1349 = vld [vmem:[#allocation3 + $0x30] sm:$0xff]
    %v1350 = vld [vmem:[#allocation3 + $0x38] sm:$0xff]
    %v1351 = vld [vmem:[#allocation3 + $0x40] sm:$0xff]
    %v1352 = vld [vmem:[#allocation3 + $0x48] sm:$0xff]
    %v1353 = vld [vmem:[#allocation3 + $0x50] sm:$0xff]
    %v1354 = vld [vmem:[#allocation3 + $0x58] sm:$0xff]
    %v1355 = vld [vmem:[#allocation3 + $0x60] sm:$0xff]
    %v1356 = vld [vmem:[#allocation3 + $0x68] sm:$0xff]
    %v1357 = vld [vmem:[#allocation3 + $0x70] sm:$0xff]
    %v1358 = vld [vmem:[#allocation3 + $0x78] sm:$0xff]
    %v1359 = vld [vmem:[#allocation3 + $0x80] sm:$0xff]
    %v1360 = vld [vmem:[#allocation3 + $0x88] sm:$0xff]
    %v1361 = vld [vmem:[#allocation3 + $0x90] sm:$0xff]
    %v1362 = vld [vmem:[#allocation3 + $0x98] sm:$0xff]
    %v1363 = vld [vmem:[#allocation3 + $0xa0] sm:$0xff]
    %v1364 = vld [vmem:[#allocation3 + $0xa8] sm:$0xff]
    %v1365 = vld [vmem:[#allocation3 + $0xb0] sm:$0xff]
    %v1366 = vld [vmem:[#allocation3 + $0xb8] sm:$0xff]
    %v1367 = vld [vmem:[#allocation3 + $0xc0] sm:$0xff]
    %v1368 = vld [vmem:[#allocation3 + $0xc8] sm:$0xff]
    %v1369 = vld [vmem:[#allocation3 + $0xd0] sm:$0xff]
    %v1370 = vld [vmem:[#allocation3 + $0xd8] sm:$0xff]
    %v1371 = vld [vmem:[#allocation3 + $0xe0] sm:$0xff]
    %v1372 = vld [vmem:[#allocation3 + $0xe8] sm:$0xff]
    %v1373 = vld [vmem:[#allocation3 + $0xf0] sm:$0xff]
    %v1374 = vld [vmem:[#allocation3 + $0xf8] sm:$0xff]
    %v1375 = vld [vmem:[%s6] sm:$0xf]
    %v1377 = vlaneseq
    %v1378 = vshrl.u32 %v1377, 7
    %v1379 = vsub.s32 0, %v1378
    %v1380 = vrot.slane %v1375, %v1379
    %v1381 = vlaneseq
    %v1382 = vshrl.u32 %v1381, 7
    %v1383 = vsub.s32 1, %v1382
    %v1384 = vrot.slane %v1375, %v1383
    %v1385 = vlaneseq
    %v1386 = vshrl.u32 %v1385, 7
    %v1387 = vsub.s32 2, %v1386
    %v1388 = vrot.slane %v1375, %v1387
    %v1389 = vlaneseq
    %v1390 = vshrl.u32 %v1389, 7
    %v1391 = vsub.s32 3, %v1390
    %v1392 = vrot.slane %v1375, %v1391
    %1397 = vmatprep.subr.bf16.mxu0 %v1312
    %1398 = vmatpush1.bf16.msra.mxu0 %v1311
    %1399 = vmatprep.subr.bf16.mxu0 %v1316
    %1400 = vmatpush1.bf16.msra.mxu0 %v1315
    %1401 = vmatprep.subr.bf16.mxu0 %v1320
    %1402 = vmatpush1.bf16.msra.mxu0 %v1319
    %1403 = vmatprep.subr.bf16.mxu0 %v1324
    %1404 = vmatpush1.bf16.msra.mxu0 %v1323
    %1405 = vmatprep.subr.bf16.mxu0 %v1328
    %1406 = vmatpush1.bf16.msra.mxu0 %v1327
    %1407 = vmatprep.subr.bf16.mxu0 %v1332
    %1408 = vmatpush1.bf16.msra.mxu0 %v1331
    %1409 = vmatprep.subr.bf16.mxu0 %v1336
    %1410 = vmatpush1.bf16.msra.mxu0 %v1335
    %1411 = vmatprep.subr.bf16.mxu0 %v1340
    %1412 = vmatpush1.bf16.msra.mxu0 %v1339
    %1413 = vmatprep.subr.bf16.mxu0 0
    %1414 = vmatpush1.bf16.msra.mxu0 0
    %1415 = vmatprep.subr.bf16.mxu0 0
    %1416 = vmatpush1.bf16.msra.mxu0 0
    %1417 = vmatprep.subr.bf16.mxu0 0
    %1418 = vmatpush1.bf16.msra.mxu0 0
    %1419 = vmatprep.subr.bf16.mxu0 0
    %1420 = vmatpush1.bf16.msra.mxu0 0
    %1421 = vmatprep.subr.bf16.mxu0 0
    %1422 = vmatpush1.bf16.msra.mxu0 0
    %1423 = vmatprep.subr.bf16.mxu0 0
    %1424 = vmatpush1.bf16.msra.mxu0 0
    %1425 = vmatprep.subr.bf16.mxu0 0
    %1426 = vmatpush1.bf16.msra.mxu0 0
    %1427 = vmatprep.subr.bf16.mxu0 0
    %1428 = vmatpush1.bf16.msra.mxu0 0
    %1429 = vmatprep.mubr.bf16.mxu0 0
    %1430 = vmatmul.mubr.bf16.gmra.mrb[0].mxu0 %v1304
    %v1431 = vpop.f32.mrb[0].mxu0
    %v1432 = vadd.f32 %v1380, %v1431
    %v1433 = vpop.f32.mrb[0].mxu0
    %v1434 = vadd.f32 %v1384, %v1433
    %v1435 = vpop.f32.mrb[0].mxu0
    %v1436 = vadd.f32 %v1380, %v1435
    %v1437 = vpop.f32.mrb[0].mxu0
    %v1438 = vadd.f32 %v1384, %v1437
    %1439 = vdwg.mxu0
    %1440 = vmatprep.subr.bf16.mxu0 %v1314
    %1441 = vmatpush1.bf16.msra.mxu0 %v1313
    %1442 = vmatprep.subr.bf16.mxu0 %v1318
    %1443 = vmatpush1.bf16.msra.mxu0 %v1317
    %1444 = vmatprep.subr.bf16.mxu0 %v1322
    %1445 = vmatpush1.bf16.msra.mxu0 %v1321
    %1446 = vmatprep.subr.bf16.mxu0 %v1326
    %1447 = vmatpush1.bf16.msra.mxu0 %v1325
    %1448 = vmatprep.subr.bf16.mxu0 %v1330
    %1449 = vmatpush1.bf16.msra.mxu0 %v1329
    %1450 = vmatprep.subr.bf16.mxu0 %v1334
    %1451 = vmatpush1.bf16.msra.mxu0 %v1333
    %1452 = vmatprep.subr.bf16.mxu0 %v1338
    %1453 = vmatpush1.bf16.msra.mxu0 %v1337
    %1454 = vmatprep.subr.bf16.mxu0 %v1342
    %1455 = vmatpush1.bf16.msra.mxu0 %v1341
    %1456 = vmatprep.subr.bf16.mxu0 0
    %1457 = vmatpush1.bf16.msra.mxu0 0
    %1458 = vmatprep.subr.bf16.mxu0 0
    %1459 = vmatpush1.bf16.msra.mxu0 0
    %1460 = vmatprep.subr.bf16.mxu0 0
    %1461 = vmatpush1.bf16.msra.mxu0 0
    %1462 = vmatprep.subr.bf16.mxu0 0
    %1463 = vmatpush1.bf16.msra.mxu0 0
    %1464 = vmatprep.subr.bf16.mxu0 0
    %1465 = vmatpush1.bf16.msra.mxu0 0
    %1466 = vmatprep.subr.bf16.mxu0 0
    %1467 = vmatpush1.bf16.msra.mxu0 0
    %1468 = vmatprep.subr.bf16.mxu0 0
    %1469 = vmatpush1.bf16.msra.mxu0 0
    %1470 = vmatprep.subr.bf16.mxu0 0
    %1471 = vmatpush1.bf16.msra.mxu0 0
    %1472 = vmatprep.mubr.bf16.mxu0 0
    %1473 = vmatmul.mubr.bf16.gmra.mrb[0].mxu0 %v1304
    %v1474 = vpop.f32.mrb[0].mxu0
    %v1475 = vadd.f32 %v1388, %v1474
    %v1476 = vpop.f32.mrb[0].mxu0
    %v1477 = vadd.f32 %v1392, %v1476
    %v1478 = vpop.f32.mrb[0].mxu0
    %v1479 = vadd.f32 %v1388, %v1478
    %v1480 = vpop.f32.mrb[0].mxu0
    %v1481 = vadd.f32 %v1392, %v1480
    %1482 = vdwg.mxu0
    %v1483 = vtanh.pop %v1432
    %v1484 = vtanh.pop %v1434
    %v1485 = vtanh.pop %v1475
    %v1486 = vtanh.pop %v1477
    %v1487 = vmul.f32 %v1483, 0.5
    %v1488 = vadd.f32 %v1487, 0.5
    %v1489 = vmul.f32 %v1484, 0.5
    %v1490 = vadd.f32 %v1489, 0.5
    %v1491 = vmul.f32 %v1485, 0.5
    %v1492 = vadd.f32 %v1491, 0.5
    %v1493 = vmul.f32 %v1490, 0.0
    %v1494 = vmul.f32 %v1488, %v1486
    %v1495 = vadd.f32 %v1493, %v1494
    %v1496 = vtanh.pop %v1495
    %v1497 = vmul.f32 %v1492, %v1496
    %v1498 = vpack.c.bf16 %v1497, %v1497
    %1499 = vmatprep.subr.bf16.mxu0 %v1344
    %1500 = vmatpush1.bf16.msra.mxu0 %v1343
    %1501 = vmatprep.subr.bf16.mxu0 %v1348
    %1502 = vmatpush1.bf16.msra.mxu0 %v1347
    %1503 = vmatprep.subr.bf16.mxu0 %v1352
    %1504 = vmatpush1.bf16.msra.mxu0 %v1351
    %1505 = vmatprep.subr.bf16.mxu0 %v1356
    %1506 = vmatpush1.bf16.msra.mxu0 %v1355
    %1507 = vmatprep.subr.bf16.mxu0 %v1360
    %1508 = vmatpush1.bf16.msra.mxu0 %v1359
    %1509 = vmatprep.subr.bf16.mxu0 %v1364
    %1510 = vmatpush1.bf16.msra.mxu0 %v1363
    %1511 = vmatprep.subr.bf16.mxu0 %v1368
    %1512 = vmatpush1.bf16.msra.mxu0 %v1367
    %1513 = vmatprep.subr.bf16.mxu0 %v1372
    %1514 = vmatpush1.bf16.msra.mxu0 %v1371
    %1515 = vmatprep.subr.bf16.mxu0 0
    %1516 = vmatpush1.bf16.msra.mxu0 0
    %1517 = vmatprep.subr.bf16.mxu0 0
    %1518 = vmatpush1.bf16.msra.mxu0 0
    %1519 = vmatprep.subr.bf16.mxu0 0
    %1520 = vmatpush1.bf16.msra.mxu0 0
    %1521 = vmatprep.subr.bf16.mxu0 0
    %1522 = vmatpush1.bf16.msra.mxu0 0
    %1523 = vmatprep.subr.bf16.mxu0 0
    %1524 = vmatpush1.bf16.msra.mxu0 0
    %1525 = vmatprep.subr.bf16.mxu0 0
    %1526 = vmatpush1.bf16.msra.mxu0 0
    %1527 = vmatprep.subr.bf16.mxu0 0
    %1528 = vmatpush1.bf16.msra.mxu0 0
    %1529 = vmatprep.subr.bf16.mxu0 0
    %1530 = vmatpush1.bf16.msra.mxu0 0
    %1531 = vmatprep.mubr.bf16.mxu0 0
    %1532 = vmatmul.mubr.bf16.gmra.mrb[0].mxu0 %v1498
    %v1533 = vpop.f32.mrb[0].mxu0
    %v1534 = vadd.f32 0.0, %v1533
    %v1535 = vpop.f32.mrb[0].mxu0
    %v1536 = vadd.f32 0.0, %v1535
    %v1537 = vpop.f32.mrb[0].mxu0
    %v1538 = vpop.f32.mrb[0].mxu0
    %1539 = vdwg.mxu0
    %1540 = vmatprep.subr.bf16.mxu0 %v1346
    %1541 = vmatpush1.bf16.msra.mxu0 %v1345
    %1542 = vmatprep.subr.bf16.mxu0 %v1350
    %1543 = vmatpush1.bf16.msra.mxu0 %v1349
    %1544 = vmatprep.subr.bf16.mxu0 %v1354
    %1545 = vmatpush1.bf16.msra.mxu0 %v1353
    %1546 = vmatprep.subr.bf16.mxu0 %v1358
    %1547 = vmatpush1.bf16.msra.mxu0 %v1357
    %1548 = vmatprep.subr.bf16.mxu0 %v1362
    %1549 = vmatpush1.bf16.msra.mxu0 %v1361
    %1550 = vmatprep.subr.bf16.mxu0 %v1366
    %1551 = vmatpush1.bf16.msra.mxu0 %v1365
    %1552 = vmatprep.subr.bf16.mxu0 %v1370
    %1553 = vmatpush1.bf16.msra.mxu0 %v1369
    %1554 = vmatprep.subr.bf16.mxu0 %v1374
    %1555 = vmatpush1.bf16.msra.mxu0 %v1373
    %1556 = vmatprep.subr.bf16.mxu0 0
    %1557 = vmatpush1.bf16.msra.mxu0 0
    %1558 = vmatprep.subr.bf16.mxu0 0
    %1559 = vmatpush1.bf16.msra.mxu0 0
    %1560 = vmatprep.subr.bf16.mxu0 0
    %1561 = vmatpush1.bf16.msra.mxu0 0
    %1562 = vmatprep.subr.bf16.mxu0 0
    %1563 = vmatpush1.bf16.msra.mxu0 0
    %1564 = vmatprep.subr.bf16.mxu0 0
    %1565 = vmatpush1.bf16.msra.mxu0 0
    %1566 = vmatprep.subr.bf16.mxu0 0
    %1567 = vmatpush1.bf16.msra.mxu0 0
    %1568 = vmatprep.subr.bf16.mxu0 0
    %1569 = vmatpush1.bf16.msra.mxu0 0
    %1570 = vmatprep.subr.bf16.mxu0 0
    %1571 = vmatpush1.bf16.msra.mxu0 0
    %1572 = vmatprep.mubr.bf16.mxu0 0
    %1573 = vmatmul.mubr.bf16.gmra.mrb[0].mxu0 %v1498
    %v1574 = vpop.f32.mrb[0].mxu0
    %v1575 = vadd.f32 0.0, %v1574
    %v1576 = vpop.f32.mrb[0].mxu0
    %v1577 = vadd.f32 0.0, %v1576
    %v1578 = vpop.f32.mrb[0].mxu0
    %v1579 = vpop.f32.mrb[0].mxu0
    %1580 = vdwg.mxu0
    %v1585 = vrot.slane %v1534, 6
    %v1586 = vrot.slane %v1536, 6
    %v1587 = vrot.slane %v1575, 6
    %v1588 = vrot.slane %v1577, 6
    %v1593 = vadd.f32 %v1432, %v1585
    %v1594 = vadd.f32 %v1434, %v1586
    %v1595 = vadd.f32 %v1475, %v1587
    %v1596 = vadd.f32 %v1477, %v1588
    %v1597 = vtanh.pop %v1593
    %v1598 = vtanh.pop %v1594
    %v1599 = vtanh.pop %v1595
    %v1600 = vtanh.pop %v1596
    %v1601 = vmul.f32 %v1597, 0.5
    %v1602 = vadd.f32 %v1601, 0.5
    %v1603 = vmul.f32 %v1598, 0.5
    %v1604 = vadd.f32 %v1603, 0.5
    %v1605 = vmul.f32 %v1599, 0.5
    %v1606 = vadd.f32 %v1605, 0.5
    %v1608 = vrot.slane %v1495, 6
    %v1610 = vmul.f32 %v1604, %v1608
    %v1611 = vmul.f32 %v1602, %v1600
    %v1612 = vadd.f32 %v1610, %v1611
    %v1613 = vtanh.pop %v1612
    %v1614 = vmul.f32 %v1606, %v1613
    %v1615 = vpack.c.bf16 %v1614, %v1614
    %v1617 = vrot.slane %v1615, 1
    %1619 = vmatprep.subr.bf16.mxu0 %v1344
    %1620 = vmatpush1.bf16.msra.mxu0 %v1343
    %1621 = vmatprep.subr.bf16.mxu0 %v1348
    %1622 = vmatpush1.bf16.msra.mxu0 %v1347
    %1623 = vmatprep.subr.bf16.mxu0 %v1352
    %1624 = vmatpush1.bf16.msra.mxu0 %v1351
    %1625 = vmatprep.subr.bf16.mxu0 %v1356
    %1626 = vmatpush1.bf16.msra.mxu0 %v1355
    %1627 = vmatprep.subr.bf16.mxu0 %v1360
    %1628 = vmatpush1.bf16.msra.mxu0 %v1359
    %1629 = vmatprep.subr.bf16.mxu0 %v1364
    %1630 = vmatpush1.bf16.msra.mxu0 %v1363
    %1631 = vmatprep.subr.bf16.mxu0 %v1368
    %1632 = vmatpush1.bf16.msra.mxu0 %v1367
    %1633 = vmatprep.subr.bf16.mxu0 %v1372
    %1634 = vmatpush1.bf16.msra.mxu0 %v1371
    %1635 = vmatprep.subr.bf16.mxu0 0
    %1636 = vmatpush1.bf16.msra.mxu0 0
    %1637 = vmatprep.subr.bf16.mxu0 0
    %1638 = vmatpush1.bf16.msra.mxu0 0
    %1639 = vmatprep.subr.bf16.mxu0 0
    %1640 = vmatpush1.bf16.msra.mxu0 0
    %1641 = vmatprep.subr.bf16.mxu0 0
    %1642 = vmatpush1.bf16.msra.mxu0 0
    %1643 = vmatprep.subr.bf16.mxu0 0
    %1644 = vmatpush1.bf16.msra.mxu0 0
    %1645 = vmatprep.subr.bf16.mxu0 0
    %1646 = vmatpush1.bf16.msra.mxu0 0
    %1647 = vmatprep.subr.bf16.mxu0 0
    %1648 = vmatpush1.bf16.msra.mxu0 0
    %1649 = vmatprep.subr.bf16.mxu0 0
    %1650 = vmatpush1.bf16.msra.mxu0 0
    %1651 = vmatprep.mubr.bf16.mxu0 0
    %1652 = vmatmul.mubr.bf16.gmra.mrb[0].mxu0 %v1617
    %v1653 = vpop.f32.mrb[0].mxu0
    %v1654 = vadd.f32 0.0, %v1653
    %v1655 = vpop.f32.mrb[0].mxu0
    %v1656 = vadd.f32 0.0, %v1655
    %v1657 = vpop.f32.mrb[0].mxu0
    %v1658 = vpop.f32.mrb[0].mxu0
    %1659 = vdwg.mxu0
    %1660 = vmatprep.subr.bf16.mxu0 %v1346
    %1661 = vmatpush1.bf16.msra.mxu0 %v1345
    %1662 = vmatprep.subr.bf16.mxu0 %v1350
    %1663 = vmatpush1.bf16.msra.mxu0 %v1349
    %1664 = vmatprep.subr.bf16.mxu0 %v1354
    %1665 = vmatpush1.bf16.msra.mxu0 %v1353
    %1666 = vmatprep.subr.bf16.mxu0 %v1358
    %1667 = vmatpush1.bf16.msra.mxu0 %v1357
    %1668 = vmatprep.subr.bf16.mxu0 %v1362
    %1669 = vmatpush1.bf16.msra.mxu0 %v1361
    %1670 = vmatprep.subr.bf16.mxu0 %v1366
    %1671 = vmatpush1.bf16.msra.mxu0 %v1365
    %1672 = vmatprep.subr.bf16.mxu0 %v1370
    %1673 = vmatpush1.bf16.msra.mxu0 %v1369
    %1674 = vmatprep.subr.bf16.mxu0 %v1374
    %1675 = vmatpush1.bf16.msra.mxu0 %v1373
    %1676 = vmatprep.subr.bf16.mxu0 0
    %1677 = vmatpush1.bf16.msra.mxu0 0
    %1678 = vmatprep.subr.bf16.mxu0 0
    %1679 = vmatpush1.bf16.msra.mxu0 0
    %1680 = vmatprep.subr.bf16.mxu0 0
    %1681 = vmatpush1.bf16.msra.mxu0 0
    %1682 = vmatprep.subr.bf16.mxu0 0
    %1683 = vmatpush1.bf16.msra.mxu0 0
    %1684 = vmatprep.subr.bf16.mxu0 0
    %1685 = vmatpush1.bf16.msra.mxu0 0
    %1686 = vmatprep.subr.bf16.mxu0 0
    %1687 = vmatpush1.bf16.msra.mxu0 0
    %1688 = vmatprep.subr.bf16.mxu0 0
    %1689 = vmatpush1.bf16.msra.mxu0 0
    %1690 = vmatprep.subr.bf16.mxu0 0
    %1691 = vmatpush1.bf16.msra.mxu0 0
    %1692 = vmatprep.mubr.bf16.mxu0 0
    %1693 = vmatmul.mubr.bf16.gmra.mrb[0].mxu0 %v1617
    %v1694 = vpop.f32.mrb[0].mxu0
    %v1695 = vadd.f32 0.0, %v1694
    %v1696 = vpop.f32.mrb[0].mxu0
    %v1697 = vadd.f32 0.0, %v1696
    %v1698 = vpop.f32.mrb[0].mxu0
    %v1699 = vpop.f32.mrb[0].mxu0
    %1700 = vdwg.mxu0
    %v1705 = vrot.slane %v1654, 4
    %v1706 = vrot.slane %v1656, 4
    %v1707 = vrot.slane %v1695, 4
    %v1708 = vrot.slane %v1697, 4
    %v1713 = vadd.f32 %v1432, %v1705
    %v1714 = vadd.f32 %v1434, %v1706
    %v1715 = vadd.f32 %v1475, %v1707
    %v1716 = vadd.f32 %v1477, %v1708
    %v1717 = vtanh.pop %v1713
    %v1718 = vtanh.pop %v1714
    %v1719 = vtanh.pop %v1715
    %v1720 = vtanh.pop %v1716
    %v1721 = vmul.f32 %v1717, 0.5
    %v1722 = vadd.f32 %v1721, 0.5
    %v1723 = vmul.f32 %v1718, 0.5
    %v1724 = vadd.f32 %v1723, 0.5
    %v1725 = vmul.f32 %v1719, 0.5
    %v1726 = vadd.f32 %v1725, 0.5
    %v1728 = vrot.slane %v1612, 6
    %v1730 = vmul.f32 %v1724, %v1728
    %v1731 = vmul.f32 %v1722, %v1720
    %v1732 = vadd.f32 %v1730, %v1731
    %v1733 = vtanh.pop %v1732
    %v1734 = vmul.f32 %v1726, %v1733
    %v1735 = vpack.c.bf16 %v1734, %v1734
    %v1737 = vrot.slane %v1735, 2
    %1739 = vmatprep.subr.bf16.mxu0 %v1344
    %1740 = vmatpush1.bf16.msra.mxu0 %v1343
    %1741 = vmatprep.subr.bf16.mxu0 %v1348
    %1742 = vmatpush1.bf16.msra.mxu0 %v1347
    %1743 = vmatprep.subr.bf16.mxu0 %v1352
    %1744 = vmatpush1.bf16.msra.mxu0 %v1351
    %1745 = vmatprep.subr.bf16.mxu0 %v1356
    %1746 = vmatpush1.bf16.msra.mxu0 %v1355
    %1747 = vmatprep.subr.bf16.mxu0 %v1360
    %1748 = vmatpush1.bf16.msra.mxu0 %v1359
    %1749 = vmatprep.subr.bf16.mxu0 %v1364
    %1750 = vmatpush1.bf16.msra.mxu0 %v1363
    %1751 = vmatprep.subr.bf16.mxu0 %v1368
    %1752 = vmatpush1.bf16.msra.mxu0 %v1367
    %1753 = vmatprep.subr.bf16.mxu0 %v1372
    %1754 = vmatpush1.bf16.msra.mxu0 %v1371
    %1755 = vmatprep.subr.bf16.mxu0 0
    %1756 = vmatpush1.bf16.msra.mxu0 0
    %1757 = vmatprep.subr.bf16.mxu0 0
    %1758 = vmatpush1.bf16.msra.mxu0 0
    %1759 = vmatprep.subr.bf16.mxu0 0
    %1760 = vmatpush1.bf16.msra.mxu0 0
    %1761 = vmatprep.subr.bf16.mxu0 0
    %1762 = vmatpush1.bf16.msra.mxu0 0
    %1763 = vmatprep.subr.bf16.mxu0 0
    %1764 = vmatpush1.bf16.msra.mxu0 0
    %1765 = vmatprep.subr.bf16.mxu0 0
    %1766 = vmatpush1.bf16.msra.mxu0 0
    %1767 = vmatprep.subr.bf16.mxu0 0
    %1768 = vmatpush1.bf16.msra.mxu0 0
    %1769 = vmatprep.subr.bf16.mxu0 0
    %1770 = vmatpush1.bf16.msra.mxu0 0
    %1771 = vmatprep.mubr.bf16.mxu0 0
    %1772 = vmatmul.mubr.bf16.gmra.mrb[0].mxu0 %v1737
    %v1773 = vpop.f32.mrb[0].mxu0
    %v1774 = vadd.f32 0.0, %v1773
    %v1775 = vpop.f32.mrb[0].mxu0
    %v1776 = vadd.f32 0.0, %v1775
    %v1777 = vpop.f32.mrb[0].mxu0
    %v1778 = vpop.f32.mrb[0].mxu0
    %1779 = vdwg.mxu0
    %1780 = vmatprep.subr.bf16.mxu0 %v1346
    %1781 = vmatpush1.bf16.msra.mxu0 %v1345
    %1782 = vmatprep.subr.bf16.mxu0 %v1350
    %1783 = vmatpush1.bf16.msra.mxu0 %v1349
    %1784 = vmatprep.subr.bf16.mxu0 %v1354
    %1785 = vmatpush1.bf16.msra.mxu0 %v1353
    %1786 = vmatprep.subr.bf16.mxu0 %v1358
    %1787 = vmatpush1.bf16.msra.mxu0 %v1357
    %1788 = vmatprep.subr.bf16.mxu0 %v1362
    %1789 = vmatpush1.bf16.msra.mxu0 %v1361
    %1790 = vmatprep.subr.bf16.mxu0 %v1366
    %1791 = vmatpush1.bf16.msra.mxu0 %v1365
    %1792 = vmatprep.subr.bf16.mxu0 %v1370
    %1793 = vmatpush1.bf16.msra.mxu0 %v1369
    %1794 = vmatprep.subr.bf16.mxu0 %v1374
    %1795 = vmatpush1.bf16.msra.mxu0 %v1373
    %1796 = vmatprep.subr.bf16.mxu0 0
    %1797 = vmatpush1.bf16.msra.mxu0 0
    %1798 = vmatprep.subr.bf16.mxu0 0
    %1799 = vmatpush1.bf16.msra.mxu0 0
    %1800 = vmatprep.subr.bf16.mxu0 0
    %1801 = vmatpush1.bf16.msra.mxu0 0
    %1802 = vmatprep.subr.bf16.mxu0 0
    %1803 = vmatpush1.bf16.msra.mxu0 0
    %1804 = vmatprep.subr.bf16.mxu0 0
    %1805 = vmatpush1.bf16.msra.mxu0 0
    %1806 = vmatprep.subr.bf16.mxu0 0
    %1807 = vmatpush1.bf16.msra.mxu0 0
    %1808 = vmatprep.subr.bf16.mxu0 0
    %1809 = vmatpush1.bf16.msra.mxu0 0
    %1810 = vmatprep.subr.bf16.mxu0 0
    %1811 = vmatpush1.bf16.msra.mxu0 0
    %1812 = vmatprep.mubr.bf16.mxu0 0
    %1813 = vmatmul.mubr.bf16.gmra.mrb[0].mxu0 %v1737
    %v1814 = vpop.f32.mrb[0].mxu0
    %v1815 = vadd.f32 0.0, %v1814
    %v1816 = vpop.f32.mrb[0].mxu0
    %v1817 = vadd.f32 0.0, %v1816
    %v1818 = vpop.f32.mrb[0].mxu0
    %v1819 = vpop.f32.mrb[0].mxu0
    %1820 = vdwg.mxu0
    %v1825 = vrot.slane %v1774, 2
    %v1826 = vrot.slane %v1776, 2
    %v1827 = vrot.slane %v1815, 2
    %v1828 = vrot.slane %v1817, 2
    %v1833 = vadd.f32 %v1432, %v1825
    %v1834 = vadd.f32 %v1434, %v1826
    %v1835 = vadd.f32 %v1475, %v1827
    %v1836 = vadd.f32 %v1477, %v1828
    %v1837 = vtanh.pop %v1833
    %v1838 = vtanh.pop %v1834
    %v1839 = vtanh.pop %v1835
    %v1840 = vtanh.pop %v1836
    %v1841 = vmul.f32 %v1837, 0.5
    %v1842 = vadd.f32 %v1841, 0.5
    %v1843 = vmul.f32 %v1838, 0.5
    %v1844 = vadd.f32 %v1843, 0.5
    %v1845 = vmul.f32 %v1839, 0.5
    %v1846 = vadd.f32 %v1845, 0.5
    %v1848 = vrot.slane %v1732, 6
    %v1850 = vmul.f32 %v1844, %v1848
    %v1851 = vmul.f32 %v1842, %v1840
    %v1852 = vadd.f32 %v1850, %v1851
    %v1853 = vtanh.pop %v1852
    %v1854 = vmul.f32 %v1846, %v1853
    %v1855 = vpack.c.bf16 %v1854, %v1854
    %v1857 = vrot.slane %v1855, 3
    %1859 = vmatprep.subr.bf16.mxu0 %v1344
    %1860 = vmatpush1.bf16.msra.mxu0 %v1343
    %1861 = vmatprep.subr.bf16.mxu0 %v1348
    %1862 = vmatpush1.bf16.msra.mxu0 %v1347
    %1863 = vmatprep.subr.bf16.mxu0 %v1352
    %1864 = vmatpush1.bf16.msra.mxu0 %v1351
    %1865 = vmatprep.subr.bf16.mxu0 %v1356
    %1866 = vmatpush1.bf16.msra.mxu0 %v1355
    %1867 = vmatprep.subr.bf16.mxu0 %v1360
    %1868 = vmatpush1.bf16.msra.mxu0 %v1359
    %1869 = vmatprep.subr.bf16.mxu0 %v1364
    %1870 = vmatpush1.bf16.msra.mxu0 %v1363
    %1871 = vmatprep.subr.bf16.mxu0 %v1368
    %1872 = vmatpush1.bf16.msra.mxu0 %v1367
    %1873 = vmatprep.subr.bf16.mxu0 %v1372
    %1874 = vmatpush1.bf16.msra.mxu0 %v1371
    %1875 = vmatprep.subr.bf16.mxu0 0
    %1876 = vmatpush1.bf16.msra.mxu0 0
    %1877 = vmatprep.subr.bf16.mxu0 0
    %1878 = vmatpush1.bf16.msra.mxu0 0
    %1879 = vmatprep.subr.bf16.mxu0 0
    %1880 = vmatpush1.bf16.msra.mxu0 0
    %1881 = vmatprep.subr.bf16.mxu0 0
    %1882 = vmatpush1.bf16.msra.mxu0 0
    %1883 = vmatprep.subr.bf16.mxu0 0
    %1884 = vmatpush1.bf16.msra.mxu0 0
    %1885 = vmatprep.subr.bf16.mxu0 0
    %1886 = vmatpush1.bf16.msra.mxu0 0
    %1887 = vmatprep.subr.bf16.mxu0 0
    %1888 = vmatpush1.bf16.msra.mxu0 0
    %1889 = vmatprep.subr.bf16.mxu0 0
    %1890 = vmatpush1.bf16.msra.mxu0 0
    %1891 = vmatprep.mubr.bf16.mxu0 0
    %1892 = vmatmul.mubr.bf16.gmra.mrb[0].mxu0 %v1857
    %v1893 = vpop.f32.mrb[0].mxu0
    %v1894 = vadd.f32 0.0, %v1893
    %v1895 = vpop.f32.mrb[0].mxu0
    %v1896 = vadd.f32 0.0, %v1895
    %v1897 = vpop.f32.mrb[0].mxu0
    %v1898 = vpop.f32.mrb[0].mxu0
    %1899 = vdwg.mxu0
    %1900 = vmatprep.subr.bf16.mxu0 %v1346
    %1901 = vmatpush1.bf16.msra.mxu0 %v1345
    %1902 = vmatprep.subr.bf16.mxu0 %v1350
    %1903 = vmatpush1.bf16.msra.mxu0 %v1349
    %1904 = vmatprep.subr.bf16.mxu0 %v1354
    %1905 = vmatpush1.bf16.msra.mxu0 %v1353
    %1906 = vmatprep.subr.bf16.mxu0 %v1358
    %1907 = vmatpush1.bf16.msra.mxu0 %v1357
    %1908 = vmatprep.subr.bf16.mxu0 %v1362
    %1909 = vmatpush1.bf16.msra.mxu0 %v1361
    %1910 = vmatprep.subr.bf16.mxu0 %v1366
    %1911 = vmatpush1.bf16.msra.mxu0 %v1365
    %1912 = vmatprep.subr.bf16.mxu0 %v1370
    %1913 = vmatpush1.bf16.msra.mxu0 %v1369
    %1914 = vmatprep.subr.bf16.mxu0 %v1374
    %1915 = vmatpush1.bf16.msra.mxu0 %v1373
    %1916 = vmatprep.subr.bf16.mxu0 0
    %1917 = vmatpush1.bf16.msra.mxu0 0
    %1918 = vmatprep.subr.bf16.mxu0 0
    %1919 = vmatpush1.bf16.msra.mxu0 0
    %1920 = vmatprep.subr.bf16.mxu0 0
    %1921 = vmatpush1.bf16.msra.mxu0 0
    %1922 = vmatprep.subr.bf16.mxu0 0
    %1923 = vmatpush1.bf16.msra.mxu0 0
    %1924 = vmatprep.subr.bf16.mxu0 0
    %1925 = vmatpush1.bf16.msra.mxu0 0
    %1926 = vmatprep.subr.bf16.mxu0 0
    %1927 = vmatpush1.bf16.msra.mxu0 0
    %1928 = vmatprep.subr.bf16.mxu0 0
    %1929 = vmatpush1.bf16.msra.mxu0 0
    %1930 = vmatprep.subr.bf16.mxu0 0
    %1931 = vmatpush1.bf16.msra.mxu0 0
    %1932 = vmatprep.mubr.bf16.mxu0 0
    %1933 = vmatmul.mubr.bf16.gmra.mrb[0].mxu0 %v1857
    %v1934 = vpop.f32.mrb[0].mxu0
    %v1935 = vadd.f32 0.0, %v1934
    %v1936 = vpop.f32.mrb[0].mxu0
    %v1937 = vadd.f32 0.0, %v1936
    %v1938 = vpop.f32.mrb[0].mxu0
    %v1939 = vpop.f32.mrb[0].mxu0
    %1940 = vdwg.mxu0
    %v1941 = vadd.f32 %v1436, %v1894
    %v1942 = vadd.f32 %v1438, %v1896
    %v1943 = vadd.f32 %v1479, %v1935
    %v1944 = vadd.f32 %v1481, %v1937
    %v1945 = vtanh.pop %v1941
    %v1946 = vtanh.pop %v1942
    %v1947 = vtanh.pop %v1943
    %v1948 = vtanh.pop %v1944
    %v1949 = vmul.f32 %v1945, 0.5
    %v1950 = vadd.f32 %v1949, 0.5
    %v1951 = vmul.f32 %v1946, 0.5
    %v1952 = vadd.f32 %v1951, 0.5
    %v1953 = vmul.f32 %v1947, 0.5
    %v1954 = vadd.f32 %v1953, 0.5
    %v1956 = vrot.slane %v1852, 6
    %v1958 = vmul.f32 %v1952, %v1956
    %v1959 = vmul.f32 %v1950, %v1948
    %v1960 = vadd.f32 %v1958, %v1959
    %v1961 = vtanh.pop %v1960
    %v1962 = vmul.f32 %v1954, %v1961
    %v1963 = vpack.c.bf16 %v1962, %v1962
    %1964 = vmatprep.subr.bf16.mxu0 %v1344
    %1965 = vmatpush1.bf16.msra.mxu0 %v1343
    %1966 = vmatprep.subr.bf16.mxu0 %v1348
    %1967 = vmatpush1.bf16.msra.mxu0 %v1347
    %1968 = vmatprep.subr.bf16.mxu0 %v1352
    %1969 = vmatpush1.bf16.msra.mxu0 %v1351
    %1970 = vmatprep.subr.bf16.mxu0 %v1356
    %1971 = vmatpush1.bf16.msra.mxu0 %v1355
    %1972 = vmatprep.subr.bf16.mxu0 %v1360
    %1973 = vmatpush1.bf16.msra.mxu0 %v1359
    %1974 = vmatprep.subr.bf16.mxu0 %v1364
    %1975 = vmatpush1.bf16.msra.mxu0 %v1363
    %1976 = vmatprep.subr.bf16.mxu0 %v1368
    %1977 = vmatpush1.bf16.msra.mxu0 %v1367
    %1978 = vmatprep.subr.bf16.mxu0 %v1372
    %1979 = vmatpush1.bf16.msra.mxu0 %v1371
    %1980 = vmatprep.subr.bf16.mxu0 0
    %1981 = vmatpush1.bf16.msra.mxu0 0
    %1982 = vmatprep.subr.bf16.mxu0 0
    %1983 = vmatpush1.bf16.msra.mxu0 0
    %1984 = vmatprep.subr.bf16.mxu0 0
    %1985 = vmatpush1.bf16.msra.mxu0 0
    %1986 = vmatprep.subr.bf16.mxu0 0
    %1987 = vmatpush1.bf16.msra.mxu0 0
    %1988 = vmatprep.subr.bf16.mxu0 0
    %1989 = vmatpush1.bf16.msra.mxu0 0
    %1990 = vmatprep.subr.bf16.mxu0 0
    %1991 = vmatpush1.bf16.msra.mxu0 0
    %1992 = vmatprep.subr.bf16.mxu0 0
    %1993 = vmatpush1.bf16.msra.mxu0 0
    %1994 = vmatprep.subr.bf16.mxu0 0
    %1995 = vmatpush1.bf16.msra.mxu0 0
    %1996 = vmatprep.mubr.bf16.mxu0 0
    %1997 = vmatmul.mubr.bf16.gmra.mrb[0].mxu0 %v1963
    %v1998 = vpop.f32.mrb[0].mxu0
    %v1999 = vadd.f32 0.0, %v1998
    %v2000 = vpop.f32.mrb[0].mxu0
    %v2001 = vadd.f32 0.0, %v2000
    %v2002 = vpop.f32.mrb[0].mxu0
    %v2003 = vpop.f32.mrb[0].mxu0
    %2004 = vdwg.mxu0
    %2005 = vmatprep.subr.bf16.mxu0 %v1346
    %2006 = vmatpush1.bf16.msra.mxu0 %v1345
    %2007 = vmatprep.subr.bf16.mxu0 %v1350
    %2008 = vmatpush1.bf16.msra.mxu0 %v1349
    %2009 = vmatprep.subr.bf16.mxu0 %v1354
    %2010 = vmatpush1.bf16.msra.mxu0 %v1353
    %2011 = vmatprep.subr.bf16.mxu0 %v1358
    %2012 = vmatpush1.bf16.msra.mxu0 %v1357
    %2013 = vmatprep.subr.bf16.mxu0 %v1362
    %2014 = vmatpush1.bf16.msra.mxu0 %v1361
    %2015 = vmatprep.subr.bf16.mxu0 %v1366
    %2016 = vmatpush1.bf16.msra.mxu0 %v1365
    %2017 = vmatprep.subr.bf16.mxu0 %v1370
    %2018 = vmatpush1.bf16.msra.mxu0 %v1369
    %2019 = vmatprep.subr.bf16.mxu0 %v1374
    %2020 = vmatpush1.bf16.msra.mxu0 %v1373
    %2021 = vmatprep.subr.bf16.mxu0 0
    %2022 = vmatpush1.bf16.msra.mxu0 0
    %2023 = vmatprep.subr.bf16.mxu0 0
    %2024 = vmatpush1.bf16.msra.mxu0 0
    %2025 = vmatprep.subr.bf16.mxu0 0
    %2026 = vmatpush1.bf16.msra.mxu0 0
    %2027 = vmatprep.subr.bf16.mxu0 0
    %2028 = vmatpush1.bf16.msra.mxu0 0
    %2029 = vmatprep.subr.bf16.mxu0 0
    %2030 = vmatpush1.bf16.msra.mxu0 0
    %2031 = vmatprep.subr.bf16.mxu0 0
    %2032 = vmatpush1.bf16.msra.mxu0 0
    %2033 = vmatprep.subr.bf16.mxu0 0
    %2034 = vmatpush1.bf16.msra.mxu0 0
    %2035 = vmatprep.subr.bf16.mxu0 0
    %2036 = vmatpush1.bf16.msra.mxu0 0
    %2037 = vmatprep.mubr.bf16.mxu0 0
    %2038 = vmatmul.mubr.bf16.gmra.mrb[0].mxu0 %v1963
    %v2039 = vpop.f32.mrb[0].mxu0
    %v2040 = vadd.f32 0.0, %v2039
    %v2041 = vpop.f32.mrb[0].mxu0
    %v2042 = vadd.f32 0.0, %v2041
    %v2043 = vpop.f32.mrb[0].mxu0
    %v2044 = vpop.f32.mrb[0].mxu0
    %2045 = vdwg.mxu0
    %v2050 = vrot.slane %v1999, 6
    %v2051 = vrot.slane %v2001, 6
    %v2052 = vrot.slane %v2040, 6
    %v2053 = vrot.slane %v2042, 6
    %v2058 = vadd.f32 %v1436, %v2050
    %v2059 = vadd.f32 %v1438, %v2051
    %v2060 = vadd.f32 %v1479, %v2052
    %v2061 = vadd.f32 %v1481, %v2053
    %v2062 = vtanh.pop %v2058
    %v2063 = vtanh.pop %v2059
    %v2064 = vtanh.pop %v2060
    %v2065 = vtanh.pop %v2061
    %v2066 = vmul.f32 %v2062, 0.5
    %v2067 = vadd.f32 %v2066, 0.5
    %v2068 = vmul.f32 %v2063, 0.5
    %v2069 = vadd.f32 %v2068, 0.5
    %v2070 = vmul.f32 %v2064, 0.5
    %v2071 = vadd.f32 %v2070, 0.5
    %v2073 = vrot.slane %v1960, 6
    %v2075 = vmul.f32 %v2069, %v2073
    %v2076 = vmul.f32 %v2067, %v2065
    %v2077 = vadd.f32 %v2075, %v2076
    %v2078 = vtanh.pop %v2077
    %v2079 = vmul.f32 %v2071, %v2078
    %v2080 = vpack.c.bf16 %v2079, %v2079
    %v2082 = vrot.slane %v2080, 1
    %2084 = vmatprep.subr.bf16.mxu0 %v1344
    %2085 = vmatpush1.bf16.msra.mxu0 %v1343
    %2086 = vmatprep.subr.bf16.mxu0 %v1348
    %2087 = vmatpush1.bf16.msra.mxu0 %v1347
    %2088 = vmatprep.subr.bf16.mxu0 %v1352
    %2089 = vmatpush1.bf16.msra.mxu0 %v1351
    %2090 = vmatprep.subr.bf16.mxu0 %v1356
    %2091 = vmatpush1.bf16.msra.mxu0 %v1355
    %2092 = vmatprep.subr.bf16.mxu0 %v1360
    %2093 = vmatpush1.bf16.msra.mxu0 %v1359
    %2094 = vmatprep.subr.bf16.mxu0 %v1364
    %2095 = vmatpush1.bf16.msra.mxu0 %v1363
    %2096 = vmatprep.subr.bf16.mxu0 %v1368
    %2097 = vmatpush1.bf16.msra.mxu0 %v1367
    %2098 = vmatprep.subr.bf16.mxu0 %v1372
    %2099 = vmatpush1.bf16.msra.mxu0 %v1371
    %2100 = vmatprep.subr.bf16.mxu0 0
    %2101 = vmatpush1.bf16.msra.mxu0 0
    %2102 = vmatprep.subr.bf16.mxu0 0
    %2103 = vmatpush1.bf16.msra.mxu0 0
    %2104 = vmatprep.subr.bf16.mxu0 0
    %2105 = vmatpush1.bf16.msra.mxu0 0
    %2106 = vmatprep.subr.bf16.mxu0 0
    %2107 = vmatpush1.bf16.msra.mxu0 0
    %2108 = vmatprep.subr.bf16.mxu0 0
    %2109 = vmatpush1.bf16.msra.mxu0 0
    %2110 = vmatprep.subr.bf16.mxu0 0
    %2111 = vmatpush1.bf16.msra.mxu0 0
    %2112 = vmatprep.subr.bf16.mxu0 0
    %2113 = vmatpush1.bf16.msra.mxu0 0
    %2114 = vmatprep.subr.bf16.mxu0 0
    %2115 = vmatpush1.bf16.msra.mxu0 0
    %2116 = vmatprep.mubr.bf16.mxu0 0
    %2117 = vmatmul.mubr.bf16.gmra.mrb[0].mxu0 %v2082
    %v2118 = vpop.f32.mrb[0].mxu0
    %v2119 = vadd.f32 0.0, %v2118
    %v2120 = vpop.f32.mrb[0].mxu0
    %v2121 = vadd.f32 0.0, %v2120
    %v2122 = vpop.f32.mrb[0].mxu0
    %v2123 = vpop.f32.mrb[0].mxu0
    %2124 = vdwg.mxu0
    %2125 = vmatprep.subr.bf16.mxu0 %v1346
    %2126 = vmatpush1.bf16.msra.mxu0 %v1345
    %2127 = vmatprep.subr.bf16.mxu0 %v1350
    %2128 = vmatpush1.bf16.msra.mxu0 %v1349
    %2129 = vmatprep.subr.bf16.mxu0 %v1354
    %2130 = vmatpush1.bf16.msra.mxu0 %v1353
    %2131 = vmatprep.subr.bf16.mxu0 %v1358
    %2132 = vmatpush1.bf16.msra.mxu0 %v1357
    %2133 = vmatprep.subr.bf16.mxu0 %v1362
    %2134 = vmatpush1.bf16.msra.mxu0 %v1361
    %2135 = vmatprep.subr.bf16.mxu0 %v1366
    %2136 = vmatpush1.bf16.msra.mxu0 %v1365
    %2137 = vmatprep.subr.bf16.mxu0 %v1370
    %2138 = vmatpush1.bf16.msra.mxu0 %v1369
    %2139 = vmatprep.subr.bf16.mxu0 %v1374
    %2140 = vmatpush1.bf16.msra.mxu0 %v1373
    %2141 = vmatprep.subr.bf16.mxu0 0
    %2142 = vmatpush1.bf16.msra.mxu0 0
    %2143 = vmatprep.subr.bf16.mxu0 0
    %2144 = vmatpush1.bf16.msra.mxu0 0
    %2145 = vmatprep.subr.bf16.mxu0 0
    %2146 = vmatpush1.bf16.msra.mxu0 0
    %2147 = vmatprep.subr.bf16.mxu0 0
    %2148 = vmatpush1.bf16.msra.mxu0 0
    %2149 = vmatprep.subr.bf16.mxu0 0
    %2150 = vmatpush1.bf16.msra.mxu0 0
    %2151 = vmatprep.subr.bf16.mxu0 0
    %2152 = vmatpush1.bf16.msra.mxu0 0
    %2153 = vmatprep.subr.bf16.mxu0 0
    %2154 = vmatpush1.bf16.msra.mxu0 0
    %2155 = vmatprep.subr.bf16.mxu0 0
    %2156 = vmatpush1.bf16.msra.mxu0 0
    %2157 = vmatprep.mubr.bf16.mxu0 0
    %2158 = vmatmul.mubr.bf16.gmra.mrb[0].mxu0 %v2082
    %v2159 = vpop.f32.mrb[0].mxu0
    %v2160 = vadd.f32 0.0, %v2159
    %v2161 = vpop.f32.mrb[0].mxu0
    %v2162 = vadd.f32 0.0, %v2161
    %v2163 = vpop.f32.mrb[0].mxu0
    %v2164 = vpop.f32.mrb[0].mxu0
    %2165 = vdwg.mxu0
    %v2170 = vrot.slane %v2119, 4
    %v2171 = vrot.slane %v2121, 4
    %v2172 = vrot.slane %v2160, 4
    %v2173 = vrot.slane %v2162, 4
    %v2178 = vadd.f32 %v1436, %v2170
    %v2179 = vadd.f32 %v1438, %v2171
    %v2180 = vadd.f32 %v1479, %v2172
    %v2181 = vadd.f32 %v1481, %v2173
    %v2182 = vtanh.pop %v2178
    %v2183 = vtanh.pop %v2179
    %v2184 = vtanh.pop %v2180
    %v2185 = vtanh.pop %v2181
    %v2186 = vmul.f32 %v2182, 0.5
    %v2187 = vadd.f32 %v2186, 0.5
    %v2188 = vmul.f32 %v2183, 0.5
    %v2189 = vadd.f32 %v2188, 0.5
    %v2190 = vmul.f32 %v2184, 0.5
    %v2191 = vadd.f32 %v2190, 0.5
    %v2193 = vrot.slane %v2077, 6
    %v2195 = vmul.f32 %v2189, %v2193
    %v2196 = vmul.f32 %v2187, %v2185
    %v2197 = vadd.f32 %v2195, %v2196
    %v2198 = vtanh.pop %v2197
    %v2199 = vmul.f32 %v2191, %v2198
    %v2200 = vpack.c.bf16 %v2199, %v2199
    %v2202 = vrot.slane %v2200, 2
    %2204 = vmatprep.subr.bf16.mxu0 %v1344
    %2205 = vmatpush1.bf16.msra.mxu0 %v1343
    %2206 = vmatprep.subr.bf16.mxu0 %v1348
    %2207 = vmatpush1.bf16.msra.mxu0 %v1347
    %2208 = vmatprep.subr.bf16.mxu0 %v1352
    %2209 = vmatpush1.bf16.msra.mxu0 %v1351
    %2210 = vmatprep.subr.bf16.mxu0 %v1356
    %2211 = vmatpush1.bf16.msra.mxu0 %v1355
    %2212 = vmatprep.subr.bf16.mxu0 %v1360
    %2213 = vmatpush1.bf16.msra.mxu0 %v1359
    %2214 = vmatprep.subr.bf16.mxu0 %v1364
    %2215 = vmatpush1.bf16.msra.mxu0 %v1363
    %2216 = vmatprep.subr.bf16.mxu0 %v1368
    %2217 = vmatpush1.bf16.msra.mxu0 %v1367
    %2218 = vmatprep.subr.bf16.mxu0 %v1372
    %2219 = vmatpush1.bf16.msra.mxu0 %v1371
    %2220 = vmatprep.subr.bf16.mxu0 0
    %2221 = vmatpush1.bf16.msra.mxu0 0
    %2222 = vmatprep.subr.bf16.mxu0 0
    %2223 = vmatpush1.bf16.msra.mxu0 0
    %2224 = vmatprep.subr.bf16.mxu0 0
    %2225 = vmatpush1.bf16.msra.mxu0 0
    %2226 = vmatprep.subr.bf16.mxu0 0
    %2227 = vmatpush1.bf16.msra.mxu0 0
    %2228 = vmatprep.subr.bf16.mxu0 0
    %2229 = vmatpush1.bf16.msra.mxu0 0
    %2230 = vmatprep.subr.bf16.mxu0 0
    %2231 = vmatpush1.bf16.msra.mxu0 0
    %2232 = vmatprep.subr.bf16.mxu0 0
    %2233 = vmatpush1.bf16.msra.mxu0 0
    %2234 = vmatprep.subr.bf16.mxu0 0
    %2235 = vmatpush1.bf16.msra.mxu0 0
    %2236 = vmatprep.mubr.bf16.mxu0 0
    %2237 = vmatmul.mubr.bf16.gmra.mrb[0].mxu0 %v2202
    %v2238 = vpop.f32.mrb[0].mxu0
    %v2239 = vadd.f32 0.0, %v2238
    %v2240 = vpop.f32.mrb[0].mxu0
    %v2241 = vadd.f32 0.0, %v2240
    %v2242 = vpop.f32.mrb[0].mxu0
    %v2243 = vpop.f32.mrb[0].mxu0
    %2244 = vdwg.mxu0
    %2245 = vmatprep.subr.bf16.mxu0 %v1346
    %2246 = vmatpush1.bf16.msra.mxu0 %v1345
    %2247 = vmatprep.subr.bf16.mxu0 %v1350
    %2248 = vmatpush1.bf16.msra.mxu0 %v1349
    %2249 = vmatprep.subr.bf16.mxu0 %v1354
    %2250 = vmatpush1.bf16.msra.mxu0 %v1353
    %2251 = vmatprep.subr.bf16.mxu0 %v1358
    %2252 = vmatpush1.bf16.msra.mxu0 %v1357
    %2253 = vmatprep.subr.bf16.mxu0 %v1362
    %2254 = vmatpush1.bf16.msra.mxu0 %v1361
    %2255 = vmatprep.subr.bf16.mxu0 %v1366
    %2256 = vmatpush1.bf16.msra.mxu0 %v1365
    %2257 = vmatprep.subr.bf16.mxu0 %v1370
    %2258 = vmatpush1.bf16.msra.mxu0 %v1369
    %2259 = vmatprep.subr.bf16.mxu0 %v1374
    %2260 = vmatpush1.bf16.msra.mxu0 %v1373
    %2261 = vmatprep.subr.bf16.mxu0 0
    %2262 = vmatpush1.bf16.msra.mxu0 0
    %2263 = vmatprep.subr.bf16.mxu0 0
    %2264 = vmatpush1.bf16.msra.mxu0 0
    %2265 = vmatprep.subr.bf16.mxu0 0
    %2266 = vmatpush1.bf16.msra.mxu0 0
    %2267 = vmatprep.subr.bf16.mxu0 0
    %2268 = vmatpush1.bf16.msra.mxu0 0
    %2269 = vmatprep.subr.bf16.mxu0 0
    %2270 = vmatpush1.bf16.msra.mxu0 0
    %2271 = vmatprep.subr.bf16.mxu0 0
    %2272 = vmatpush1.bf16.msra.mxu0 0
    %2273 = vmatprep.subr.bf16.mxu0 0
    %2274 = vmatpush1.bf16.msra.mxu0 0
    %2275 = vmatprep.subr.bf16.mxu0 0
    %2276 = vmatpush1.bf16.msra.mxu0 0
    %2277 = vmatprep.mubr.bf16.mxu0 0
    %2278 = vmatmul.mubr.bf16.gmra.mrb[0].mxu0 %v2202
    %v2279 = vpop.f32.mrb[0].mxu0
    %v2280 = vadd.f32 0.0, %v2279
    %v2281 = vpop.f32.mrb[0].mxu0
    %v2282 = vadd.f32 0.0, %v2281
    %v2283 = vpop.f32.mrb[0].mxu0
    %v2284 = vpop.f32.mrb[0].mxu0
    %2285 = vdwg.mxu0
    %v2290 = vrot.slane %v2239, 2
    %v2291 = vrot.slane %v2241, 2
    %v2292 = vrot.slane %v2280, 2
    %v2293 = vrot.slane %v2282, 2
    %v2298 = vadd.f32 %v1436, %v2290
    %v2299 = vadd.f32 %v1438, %v2291
    %v2300 = vadd.f32 %v1479, %v2292
    %v2301 = vadd.f32 %v1481, %v2293
    %v2302 = vtanh.pop %v2298
    %v2303 = vtanh.pop %v2299
    %v2304 = vtanh.pop %v2300
    %v2305 = vtanh.pop %v2301
    %v2306 = vmul.f32 %v2302, 0.5
    %v2307 = vadd.f32 %v2306, 0.5
    %v2308 = vmul.f32 %v2303, 0.5
    %v2309 = vadd.f32 %v2308, 0.5
    %v2310 = vmul.f32 %v2304, 0.5
    %v2311 = vadd.f32 %v2310, 0.5
    %v2313 = vrot.slane %v2197, 6
    %v2315 = vmul.f32 %v2309, %v2313
    %v2316 = vmul.f32 %v2307, %v2305
    %v2317 = vadd.f32 %v2315, %v2316
    %v2318 = vtanh.pop %v2317
    %v2319 = vmul.f32 %v2311, %v2318
    %s2320 = smul.u32 %s1305, 1
    %s2321 = sshll.u32 %s2320, 4
    %2322 = dma.done %s111, %s2321
    %v2323 = vpack.c.bf16 %v2319, %v2319
    %v2324 = vld [vmem:[#allocation4] sm:$0xff]
    %v2325 = vld [vmem:[#allocation4 + $0x8] sm:$0xff]
    %v2326 = vld [vmem:[#allocation4 + $0x10] sm:$0xff]
    %v2327 = vld [vmem:[#allocation4 + $0x18] sm:$0xff]
    %v2328 = vld [vmem:[#allocation4 + $0x20] sm:$0xff]
    %v2329 = vld [vmem:[#allocation4 + $0x28] sm:$0xff]
    %v2330 = vld [vmem:[#allocation4 + $0x30] sm:$0xff]
    %v2331 = vld [vmem:[#allocation4 + $0x38] sm:$0xff]
    %v2332 = vld [vmem:[%s8] sm:$0x1]
    %v2334 = vlaneseq
    %v2335 = vshrl.u32 %v2334, 7
    %v2336 = vsub.s32 0, %v2335
    %v2337 = vrot.slane %v2332, %v2336
    %v2340 = vrot.slane %v2323, 3
    %2342 = vmatprep.subr.bf16.mxu0 0
    %2343 = vmatpush1.bf16.msra.mxu0 %v2324
    %2344 = vmatprep.subr.bf16.mxu0 0
    %2345 = vmatpush1.bf16.msra.mxu0 %v2325
    %2346 = vmatprep.subr.bf16.mxu0 0
    %2347 = vmatpush1.bf16.msra.mxu0 %v2326
    %2348 = vmatprep.subr.bf16.mxu0 0
    %2349 = vmatpush1.bf16.msra.mxu0 %v2327
    %2350 = vmatprep.subr.bf16.mxu0 0
    %2351 = vmatpush1.bf16.msra.mxu0 %v2328
    %2352 = vmatprep.subr.bf16.mxu0 0
    %2353 = vmatpush1.bf16.msra.mxu0 %v2329
    %2354 = vmatprep.subr.bf16.mxu0 0
    %2355 = vmatpush1.bf16.msra.mxu0 %v2330
    %2356 = vmatprep.subr.bf16.mxu0 0
    %2357 = vmatpush1.bf16.msra.mxu0 %v2331
    %2358 = vmatprep.subr.bf16.mxu0 0
    %2359 = vmatpush1.bf16.msra.mxu0 0
    %2360 = vmatprep.subr.bf16.mxu0 0
    %2361 = vmatpush1.bf16.msra.mxu0 0
    %2362 = vmatprep.subr.bf16.mxu0 0
    %2363 = vmatpush1.bf16.msra.mxu0 0
    %2364 = vmatprep.subr.bf16.mxu0 0
    %2365 = vmatpush1.bf16.msra.mxu0 0
    %2366 = vmatprep.subr.bf16.mxu0 0
    %2367 = vmatpush1.bf16.msra.mxu0 0
    %2368 = vmatprep.subr.bf16.mxu0 0
    %2369 = vmatpush1.bf16.msra.mxu0 0
    %2370 = vmatprep.subr.bf16.mxu0 0
    %2371 = vmatpush1.bf16.msra.mxu0 0
    %2372 = vmatprep.subr.bf16.mxu0 0
    %2373 = vmatpush1.bf16.msra.mxu0 0
    %2374 = vmatprep.mubr.bf16.mxu0 0
    %2375 = vmatmul.mubr.bf16.gmra.mrb[0].mxu0 %v2340
    %v2376 = vpop.f32.mrb[0].mxu0
    %v2377 = vadd.f32 %v2337, %v2376
    %v2378 = vpop.f32.mrb[0].mxu0
    %v2379 = vpop.f32.mrb[0].mxu0
    %v2380 = vpop.f32.mrb[0].mxu0
    %2381 = vdwg.mxu0
    %2382 = vst [vmem:[%s9] sm:$0x3] %v2377
    // Predicated region
    $region34: #{lstm_model_forward.1} parent=1 // pred_check
      _
    $region35: #{lstm_model_forward.1} parent=1 // pred_check_branch
      %2384 = sbr.rel (0) target = $region37
    $region36: #{lstm_model_forward.1} parent=1 // pred_region
      _
    $region37: #{lstm_model_forward.1} parent=1 // pred_fallthru
      _
    // Predicated region
    $region38: #{lstm_model_forward.1} parent=1 // pred_check
      _
    $region39: #{lstm_model_forward.1} parent=1 // pred_check_branch
      %2386 = sbr.rel (0) target = $region41
    $region40: #{lstm_model_forward.1} parent=1 // pred_region
      _
    $region41: #{lstm_model_forward.1} parent=1 // pred_fallthru
      _
    %2387 = vsyncpa [#allocation7], 1
  %2388 = vsyncmov [#allocation5]
  %s2389 = vpop.sfrf %2388
  %p2390 = scmp.eq.s32.totalorder %s2389, 0
  %p2391 = pneg %p2390
  %2393 = shalt.err (%p2391)
  %s2394 = scalar_lea.sflag [#allocation5], 1
  %2395 = vsyncmov %s2394
  %s2396 = vpop.sfrf %2395
  %p2397 = scmp.eq.s32.totalorder %s2396, 0
  %p2398 = pneg %p2397
  %2400 = shalt.err (%p2398)
  %s2401 = scalar_lea.sflag [#allocation5], 2
  %2402 = vsyncmov %s2401
  %s2403 = vpop.sfrf %2402
  %p2404 = scmp.eq.s32.totalorder %s2403, 0
  %p2405 = pneg %p2404
  %2407 = shalt.err (%p2405)

</llo_original>
